<compile_context>
chip_gen: v6e
topology: v6e:2x2x1
jax: 0.10.0
libtpu: 0.0.40
codegen_flags: <defaults>
</compile_context>

<pallas_src>
import math

import jax
import jax.numpy as jnp
import numpy as np
from jax.experimental import pallas as pl
from jax.experimental.pallas import tpu as pltpu


# ----------------------------------------------------------------------------
# Pallas kernels
# ----------------------------------------------------------------------------
def _conv_relu_pool_kernel(x_ref, m_ref, b_ref, o_ref):
    """Fused conv2d + bias + relu + 2x2 maxpool for one batch element.

    x_ref: [1, 2, Hq, Wp*Cin]        padded NHWC input, rows split by parity
    m_ref: [2, KH, Wp*Cin, Wpool*Cout] banded weight matrices, indexed (dw, kh)
    b_ref: [1, Wpool*Cout]           bias tiled to the output column layout
    o_ref: [1, Hpool, Wpool*Cout]    pooled output (NHWC, last two dims flat)

    out[hp, wp*Cout+co] = relu(b[co] + max_{dh,dw} conv(x)[2hp+dh, 2wp+dw, co])
    (relu/bias commute with the window max, so pooling is done on the raw
    conv accumulators while they are VMEM/register resident).
    """
    KH = m_ref.shape[1]
    Hpool = o_ref.shape[1]
    pooled = None
    for dh in range(2):                      # pooling phase in H
        for dw in range(2):                  # pooling phase in W
            acc = None
            for kh in range(KH):             # conv taps in H
                u = dh + kh
                rows = x_ref[0, u % 2, pl.ds(u // 2, Hpool), :]   # [Hpool, Wp*Cin]
                part = jnp.dot(rows, m_ref[dw, kh],
                               preferred_element_type=jnp.float32)
                acc = part if acc is None else acc + part
            pooled = acc if pooled is None else jnp.maximum(pooled, acc)
    out = jnp.maximum(pooled + b_ref[...], 0.0)
    o_ref[0] = out.astype(o_ref.dtype)


def _mlp_kernel(x_ref, w1_ref, b1_ref, w2_ref, b2_ref, o_ref):
    """Fused fc1(relu) + fc2; the [rows, 100] intermediate never leaves VMEM."""
    h = jnp.dot(x_ref[...], w1_ref[...], preferred_element_type=jnp.float32)
    h = jnp.maximum(h + b1_ref[...], 0.0)
    o = jnp.dot(h, w2_ref[...], preferred_element_type=jnp.float32) + b2_ref[...]
    o_ref[...] = o.astype(o_ref.dtype)


# ----------------------------------------------------------------------------
# Pallas wrappers
# ----------------------------------------------------------------------------
def conv_relu_pool(x2d, m, bias_row):
    """x2d: [N, Hp, Wp*Cin] padded NHWC input with (w, cin) flattened.
    m: [2, KH, Wp*Cin, Wpool*Cout] banded weights; bias_row: [1, Wpool*Cout].
    Returns maxpool2x2(relu(conv + b)) as [N, Hpool, Wpool*Cout] (NHWC-flat)."""
    N, Hp, WC = x2d.shape
    _, KH, WC2, WCo = m.shape
    assert WC == WC2
    Hq = Hp // 2
    Hpool = (Hp - KH + 1) // 2
    # Tiny layout glue: split rows by parity so the fused pooling in the kernel
    # needs only contiguous (unstrided) slices of the VMEM-resident input.
    xs = jnp.stack([x2d[:, 0::2, :], x2d[:, 1::2, :]], axis=1)   # [N, 2, Hq, WC]
    return pl.pallas_call(
        _conv_relu_pool_kernel,
        out_shape=jax.ShapeDtypeStruct((N, Hpool, WCo), jnp.float32),
        grid=(N,),
        in_specs=[
            pl.BlockSpec((1, 2, Hq, WC), lambda n: (n, 0, 0, 0)),
            pl.BlockSpec((2, KH, WC, WCo), lambda n: (0, 0, 0, 0)),  # resident
            pl.BlockSpec((1, WCo), lambda n: (0, 0)),
        ],
        out_specs=pl.BlockSpec((1, Hpool, WCo), lambda n: (n, 0, 0)),
        compiler_params=pltpu.CompilerParams(
            dimension_semantics=("parallel",)),
    )(xs, m, bias_row)


def mlp_fused(x, w1, b1, w2, b2, *, max_rows=128):
    """Fused fc1+fc2 over row blocks of the batch (parallel, pipelined)."""
    N, K = x.shape
    _, H = w1.shape
    _, O = w2.shape
    rb = N if N <= max_rows else max_rows
    n_pad = (-N) % rb
    if n_pad:
        x = jnp.pad(x, ((0, n_pad), (0, 0)))
    npad = N + n_pad
    out = pl.pallas_call(
        _mlp_kernel,
        out_shape=jax.ShapeDtypeStruct((npad, O), jnp.float32),
        grid=(npad // rb,),
        in_specs=[
            pl.BlockSpec((rb, K), lambda i: (i, 0)),
            pl.BlockSpec((K, H), lambda i: (0, 0)),
            pl.BlockSpec((1, H), lambda i: (0, 0)),
            pl.BlockSpec((H, O), lambda i: (0, 0)),
            pl.BlockSpec((1, O), lambda i: (0, 0)),
        ],
        out_specs=pl.BlockSpec((rb, O), lambda i: (i, 0)),
        compiler_params=pltpu.CompilerParams(
            dimension_semantics=("parallel",)),
    )(x, w1, b1, w2, b2)
    return out[:N]


# ----------------------------------------------------------------------------
# One-time parameter preprocessing (outside the hot path)
# ----------------------------------------------------------------------------
def _banded_conv_weights(w_oihw, w_padded_width):
    """OIHW conv weights -> M[dw, kh, Wp*Cin, Wpool*Cout] such that
        conv(x)[2hp+dh, 2wp+dw, co] = sum_kh x2d[2hp+dh+kh, :] @ M[dw, kh]
    with x2d[h, w*Cin+ci] the padded NHWC input, (w, ci) flattened into lanes.
    """
    Cout, Cin, KH, KW = map(int, w_oihw.shape)
    Wp = int(w_padded_width)
    Wpool = (Wp - KW + 1) // 2
    sel = np.zeros((2, KW, Wp, Wpool), np.float32)
    for dw in range(2):
        for kw in range(KW):
            for wp in range(Wpool):
                f = 2 * wp + dw + kw
                if f < Wp:
                    sel[dw, kw, f, wp] = 1.0
    # M6[dw, kh, wpf, ci, wp, co] = sum_kw w[co, ci, kh, kw] * sel[dw, kw, wpf, wp]
    m6 = jnp.einsum("ocik,dkfp->difcpo", w_oihw, jnp.asarray(sel))
    return m6.reshape(2, KH, Wp * Cin, Wpool * Cout)


def prepare_params(p):
    """Fold all weight-only layout work out of the per-call forward pass."""
    m1 = _banded_conv_weights(p["w1"], 58)      # conv1 sees 56+2*pad = 58 wide
    m2 = _banded_conv_weights(p["w2"], 28)      # conv2 sees 28 wide (no pad)
    brow1 = jnp.tile(p["b1"], m1.shape[-1] // p["b1"].shape[0]).reshape(1, -1)
    brow2 = jnp.tile(p["b2"], m2.shape[-1] // p["b2"].shape[0]).reshape(1, -1)
    # fc1: our conv2 output flattens as (h, w, c); PyTorch's x.view flattens the
    # NCHW tensor as (c, h, w). Fold that permutation into fc1's columns and
    # pre-transpose both fc weights so no per-call transposes remain.
    H = W = 12
    C = 8
    hh = np.arange(H)[:, None, None]
    ww = np.arange(W)[None, :, None]
    cc = np.arange(C)[None, None, :]
    idx = (cc * (H * W) + hh * W + ww).reshape(-1)   # (h,w,c) position -> chw idx
    wfc1_t = jnp.asarray(p["wfc1"])[:, idx].T        # [1152, 100]
    wfc2_t = p["wfc2"].T                             # [100, 10]
    return {
        "M1": m1, "brow1": brow1,
        "M2": m2, "brow2": brow2,
        "wfc1_t": wfc1_t, "bfc1": p["bfc1"].reshape(1, -1),
        "wfc2_t": wfc2_t, "bfc2": p["bfc2"].reshape(1, -1),
    }


# ----------------------------------------------------------------------------
# Full forward pass (matches CNN_Part3.forward semantics)
# ----------------------------------------------------------------------------
def cnn_part3_forward(x_nchw, prep):
    N = x_nchw.shape[0]
    x = jnp.transpose(x_nchw, (0, 2, 3, 1))                # NCHW -> NHWC
    x = jnp.pad(x, ((0, 0), (1, 1), (1, 1), (0, 0)))       # conv1 padding=1
    x = x.reshape(N, x.shape[1], -1)                        # [N, 58, 58*3]
    x = conv_relu_pool(x, prep["M1"], prep["brow1"])        # [N, 28, 28*4]
    x = conv_relu_pool(x, prep["M2"], prep["brow2"])        # [N, 12, 12*8]
    x = x.reshape(N, -1)                                    # [N, 1152] (h,w,c)
    return mlp_fused(x, prep["wfc1_t"], prep["bfc1"],
                     prep["wfc2_t"], prep["bfc2"])          # [N, 10]


# ----------------------------------------------------------------------------
# Pure-JAX reference for correctness checking
# ----------------------------------------------------------------------------
def reference_forward(x_nchw, p):
    dn = ("NCHW", "OIHW", "NCHW")
    y = jax.lax.conv_general_dilated(x_nchw, p["w1"], (1, 1), ((1, 1), (1, 1)),
                                     dimension_numbers=dn)
    y = jax.nn.relu(y + p["b1"][None, :, None, None])
    y = jax.lax.reduce_window(y, -jnp.inf, jax.lax.max,
                              (1, 1, 2, 2), (1, 1, 2, 2), "VALID")
    y = jax.lax.conv_general_dilated(y, p["w2"], (1, 1), ((0, 0), (0, 0)),
                                     dimension_numbers=dn)
    y = jax.nn.relu(y + p["b2"][None, :, None, None])
    y = jax.lax.reduce_window(y, -jnp.inf, jax.lax.max,
                              (1, 1, 2, 2), (1, 1, 2, 2), "VALID")
    y = y.reshape(y.shape[0], -1)
    y = jax.nn.relu(y @ p["wfc1"].T + p["bfc1"])
    y = y @ p["wfc2"].T + p["bfc2"]
    return y


# ----------------------------------------------------------------------------
# Deterministic parameter init (PyTorch-style uniform(-1/sqrt(fan_in), ...))
# ----------------------------------------------------------------------------
def init_params(key):
    ks = jax.random.split(key, 8)

    def u(k, shape, fan_in):
        bound = 1.0 / math.sqrt(fan_in)
        return jax.random.uniform(k, shape, jnp.float32, -bound, bound)

    return {
        "w1": u(ks[0], (4, 3, 3, 3), 3 * 3 * 3),             # conv1: OIHW
        "b1": u(ks[1], (4,), 3 * 3 * 3),
        "w2": u(ks[2], (8, 4, 5, 5), 4 * 5 * 5),             # conv2: OIHW
        "b2": u(ks[3], (8,), 4 * 5 * 5),
        "wfc1": u(ks[4], (100, 8 * 12 * 12), 8 * 12 * 12),   # fc1: [out, in]
        "bfc1": u(ks[5], (100,), 8 * 12 * 12),
        "wfc2": u(ks[6], (10, 100), 100),                    # fc2: [out, in]
        "bfc2": u(ks[7], (10,), 100),
    }


if __name__ == "__main__":
    key = jax.random.PRNGKey(0)
    kp, kx = jax.random.split(key)
    params = init_params(kp)
    prep = prepare_params(params)            # one-time weight preprocessing
    # Input spatial size 56x56 is fixed by fc1's expected 8*12*12 features.
    x = jax.random.normal(kx, (2, 3, 56, 56), jnp.float32)

    fwd = jax.jit(cnn_part3_forward)
    out = jax.block_until_ready(fwd(x, prep))

    ref = jax.block_until_ready(reference_forward(x, params))
    np.testing.assert_allclose(np.asarray(out), np.asarray(ref),
                               rtol=1e-2, atol=1e-2)
    assert out.shape == (2, 10)

    print("KERNEL_OK")
</pallas_src>

<mosaic_0001>
module attributes {stable_mosaic.version = 11 : i64} {
  func.func @_conv_relu_pool_kernel(%arg0: i32, %arg1: memref<1x2x29x174xf32, #tpu.memory_space<vmem>>, %arg2: memref<2x3x174x112xf32, #tpu.memory_space<vmem>>, %arg3: memref<1x112xf32, #tpu.memory_space<vmem>>, %arg4: memref<1x28x112xf32, #tpu.memory_space<vmem>>) attributes {dimension_semantics = [#tpu.dimension_semantics<parallel>], iteration_bounds = array<i64: 2>, scalar_prefetch = 0 : i64, scratch_operands = 0 : i64, tpu.core_type = #tpu.core_type<tc>, window_params = [{transform_indices = @transform_0, window_bounds = array<i64: 1, 2, 29, 174>}, {pipeline_mode = #tpu.pipeline_mode<synchronous>, transform_indices = @transform_1, window_bounds = array<i64: 2, 3, 174, 112>}, {pipeline_mode = #tpu.pipeline_mode<synchronous>, transform_indices = @transform_2, window_bounds = array<i64: 1, 112>}, {transform_indices = @transform_3, window_bounds = array<i64: 1, 28, 112>}]} {
    %c0 = arith.constant 0 : index
    %c0_0 = arith.constant 0 : index
    %c0_1 = arith.constant 0 : index
    %c0_2 = arith.constant 0 : index
    %0 = vector.load %arg1[%c0, %c0_0, %c0_1, %c0_2] : memref<1x2x29x174xf32, #tpu.memory_space<vmem>>, vector<1x1x28x174xf32>
    %1 = vector.shape_cast %0 : vector<1x1x28x174xf32> to vector<28x174xf32>
    %c0_3 = arith.constant 0 : index
    %c0_4 = arith.constant 0 : index
    %c0_5 = arith.constant 0 : index
    %c0_6 = arith.constant 0 : index
    %2 = vector.load %arg2[%c0_3, %c0_4, %c0_5, %c0_6] : memref<2x3x174x112xf32, #tpu.memory_space<vmem>>, vector<1x1x174x112xf32>
    %3 = vector.shape_cast %2 : vector<1x1x174x112xf32> to vector<174x112xf32>
    %cst = arith.constant dense<0.000000e+00> : vector<28x112xf32>
    %4 = tpu.matmul %1, %3, %cst {dimension_numbers = #tpu.dot_dimension_numbers<[1], [0], [0], [1], [0, 0, 1, 1], [], []>} : vector<28x174xf32>, vector<174x112xf32>, vector<28x112xf32> -> vector<28x112xf32>
    %c0_7 = arith.constant 0 : index
    %c1 = arith.constant 1 : index
    %c0_8 = arith.constant 0 : index
    %c0_9 = arith.constant 0 : index
    %5 = vector.load %arg1[%c0_7, %c1, %c0_8, %c0_9] : memref<1x2x29x174xf32, #tpu.memory_space<vmem>>, vector<1x1x28x174xf32>
    %6 = vector.shape_cast %5 : vector<1x1x28x174xf32> to vector<28x174xf32>
    %c0_10 = arith.constant 0 : index
    %c1_11 = arith.constant 1 : index
    %c0_12 = arith.constant 0 : index
    %c0_13 = arith.constant 0 : index
    %7 = vector.load %arg2[%c0_10, %c1_11, %c0_12, %c0_13] : memref<2x3x174x112xf32, #tpu.memory_space<vmem>>, vector<1x1x174x112xf32>
    %8 = vector.shape_cast %7 : vector<1x1x174x112xf32> to vector<174x112xf32>
    %cst_14 = arith.constant dense<0.000000e+00> : vector<28x112xf32>
    %9 = tpu.matmul %6, %8, %cst_14 {dimension_numbers = #tpu.dot_dimension_numbers<[1], [0], [0], [1], [0, 0, 1, 1], [], []>} : vector<28x174xf32>, vector<174x112xf32>, vector<28x112xf32> -> vector<28x112xf32>
    %10 = arith.addf %4, %9 : vector<28x112xf32>
    %c0_15 = arith.constant 0 : index
    %c0_16 = arith.constant 0 : index
    %c1_17 = arith.constant 1 : index
    %c0_18 = arith.constant 0 : index
    %11 = vector.load %arg1[%c0_15, %c0_16, %c1_17, %c0_18] : memref<1x2x29x174xf32, #tpu.memory_space<vmem>>, vector<1x1x28x174xf32>
    %12 = vector.shape_cast %11 : vector<1x1x28x174xf32> to vector<28x174xf32>
    %c0_19 = arith.constant 0 : index
    %c2 = arith.constant 2 : index
    %c0_20 = arith.constant 0 : index
    %c0_21 = arith.constant 0 : index
    %13 = vector.load %arg2[%c0_19, %c2, %c0_20, %c0_21] : memref<2x3x174x112xf32, #tpu.memory_space<vmem>>, vector<1x1x174x112xf32>
    %14 = vector.shape_cast %13 : vector<1x1x174x112xf32> to vector<174x112xf32>
    %cst_22 = arith.constant dense<0.000000e+00> : vector<28x112xf32>
    %15 = tpu.matmul %12, %14, %cst_22 {dimension_numbers = #tpu.dot_dimension_numbers<[1], [0], [0], [1], [0, 0, 1, 1], [], []>} : vector<28x174xf32>, vector<174x112xf32>, vector<28x112xf32> -> vector<28x112xf32>
    %16 = arith.addf %10, %15 : vector<28x112xf32>
    %c0_23 = arith.constant 0 : index
    %c0_24 = arith.constant 0 : index
    %c0_25 = arith.constant 0 : index
    %c0_26 = arith.constant 0 : index
    %17 = vector.load %arg1[%c0_23, %c0_24, %c0_25, %c0_26] : memref<1x2x29x174xf32, #tpu.memory_space<vmem>>, vector<1x1x28x174xf32>
    %18 = vector.shape_cast %17 : vector<1x1x28x174xf32> to vector<28x174xf32>
    %c1_27 = arith.constant 1 : index
    %c0_28 = arith.constant 0 : index
    %c0_29 = arith.constant 0 : index
    %c0_30 = arith.constant 0 : index
    %19 = vector.load %arg2[%c1_27, %c0_28, %c0_29, %c0_30] : memref<2x3x174x112xf32, #tpu.memory_space<vmem>>, vector<1x1x174x112xf32>
    %20 = vector.shape_cast %19 : vector<1x1x174x112xf32> to vector<174x112xf32>
    %cst_31 = arith.constant dense<0.000000e+00> : vector<28x112xf32>
    %21 = tpu.matmul %18, %20, %cst_31 {dimension_numbers = #tpu.dot_dimension_numbers<[1], [0], [0], [1], [0, 0, 1, 1], [], []>} : vector<28x174xf32>, vector<174x112xf32>, vector<28x112xf32> -> vector<28x112xf32>
    %c0_32 = arith.constant 0 : index
    %c1_33 = arith.constant 1 : index
    %c0_34 = arith.constant 0 : index
    %c0_35 = arith.constant 0 : index
    %22 = vector.load %arg1[%c0_32, %c1_33, %c0_34, %c0_35] : memref<1x2x29x174xf32, #tpu.memory_space<vmem>>, vector<1x1x28x174xf32>
    %23 = vector.shape_cast %22 : vector<1x1x28x174xf32> to vector<28x174xf32>
    %c1_36 = arith.constant 1 : index
    %c1_37 = arith.constant 1 : index
    %c0_38 = arith.constant 0 : index
    %c0_39 = arith.constant 0 : index
    %24 = vector.load %arg2[%c1_36, %c1_37, %c0_38, %c0_39] : memref<2x3x174x112xf32, #tpu.memory_space<vmem>>, vector<1x1x174x112xf32>
    %25 = vector.shape_cast %24 : vector<1x1x174x112xf32> to vector<174x112xf32>
    %cst_40 = arith.constant dense<0.000000e+00> : vector<28x112xf32>
    %26 = tpu.matmul %23, %25, %cst_40 {dimension_numbers = #tpu.dot_dimension_numbers<[1], [0], [0], [1], [0, 0, 1, 1], [], []>} : vector<28x174xf32>, vector<174x112xf32>, vector<28x112xf32> -> vector<28x112xf32>
    %27 = arith.addf %21, %26 : vector<28x112xf32>
    %c0_41 = arith.constant 0 : index
    %c0_42 = arith.constant 0 : index
    %c1_43 = arith.constant 1 : index
    %c0_44 = arith.constant 0 : index
    %28 = vector.load %arg1[%c0_41, %c0_42, %c1_43, %c0_44] : memref<1x2x29x174xf32, #tpu.memory_space<vmem>>, vector<1x1x28x174xf32>
    %29 = vector.shape_cast %28 : vector<1x1x28x174xf32> to vector<28x174xf32>
    %c1_45 = arith.constant 1 : index
    %c2_46 = arith.constant 2 : index
    %c0_47 = arith.constant 0 : index
    %c0_48 = arith.constant 0 : index
    %30 = vector.load %arg2[%c1_45, %c2_46, %c0_47, %c0_48] : memref<2x3x174x112xf32, #tpu.memory_space<vmem>>, vector<1x1x174x112xf32>
    %31 = vector.shape_cast %30 : vector<1x1x174x112xf32> to vector<174x112xf32>
    %cst_49 = arith.constant dense<0.000000e+00> : vector<28x112xf32>
    %32 = tpu.matmul %29, %31, %cst_49 {dimension_numbers = #tpu.dot_dimension_numbers<[1], [0], [0], [1], [0, 0, 1, 1], [], []>} : vector<28x174xf32>, vector<174x112xf32>, vector<28x112xf32> -> vector<28x112xf32>
    %33 = arith.addf %27, %32 : vector<28x112xf32>
    %34 = arith.maximumf %16, %33 : vector<28x112xf32>
    %c0_50 = arith.constant 0 : index
    %c1_51 = arith.constant 1 : index
    %c0_52 = arith.constant 0 : index
    %c0_53 = arith.constant 0 : index
    %35 = vector.load %arg1[%c0_50, %c1_51, %c0_52, %c0_53] : memref<1x2x29x174xf32, #tpu.memory_space<vmem>>, vector<1x1x28x174xf32>
    %36 = vector.shape_cast %35 : vector<1x1x28x174xf32> to vector<28x174xf32>
    %c0_54 = arith.constant 0 : index
    %c0_55 = arith.constant 0 : index
    %c0_56 = arith.constant 0 : index
    %c0_57 = arith.constant 0 : index
    %37 = vector.load %arg2[%c0_54, %c0_55, %c0_56, %c0_57] : memref<2x3x174x112xf32, #tpu.memory_space<vmem>>, vector<1x1x174x112xf32>
    %38 = vector.shape_cast %37 : vector<1x1x174x112xf32> to vector<174x112xf32>
    %cst_58 = arith.constant dense<0.000000e+00> : vector<28x112xf32>
    %39 = tpu.matmul %36, %38, %cst_58 {dimension_numbers = #tpu.dot_dimension_numbers<[1], [0], [0], [1], [0, 0, 1, 1], [], []>} : vector<28x174xf32>, vector<174x112xf32>, vector<28x112xf32> -> vector<28x112xf32>
    %c0_59 = arith.constant 0 : index
    %c0_60 = arith.constant 0 : index
    %c1_61 = arith.constant 1 : index
    %c0_62 = arith.constant 0 : index
    %40 = vector.load %arg1[%c0_59, %c0_60, %c1_61, %c0_62] : memref<1x2x29x174xf32, #tpu.memory_space<vmem>>, vector<1x1x28x174xf32>
    %41 = vector.shape_cast %40 : vector<1x1x28x174xf32> to vector<28x174xf32>
    %c0_63 = arith.constant 0 : index
    %c1_64 = arith.constant 1 : index
    %c0_65 = arith.constant 0 : index
    %c0_66 = arith.constant 0 : index
    %42 = vector.load %arg2[%c0_63, %c1_64, %c0_65, %c0_66] : memref<2x3x174x112xf32, #tpu.memory_space<vmem>>, vector<1x1x174x112xf32>
    %43 = vector.shape_cast %42 : vector<1x1x174x112xf32> to vector<174x112xf32>
    %cst_67 = arith.constant dense<0.000000e+00> : vector<28x112xf32>
    %44 = tpu.matmul %41, %43, %cst_67 {dimension_numbers = #tpu.dot_dimension_numbers<[1], [0], [0], [1], [0, 0, 1, 1], [], []>} : vector<28x174xf32>, vector<174x112xf32>, vector<28x112xf32> -> vector<28x112xf32>
    %45 = arith.addf %39, %44 : vector<28x112xf32>
    %c0_68 = arith.constant 0 : index
    %c1_69 = arith.constant 1 : index
    %c1_70 = arith.constant 1 : index
    %c0_71 = arith.constant 0 : index
    %46 = vector.load %arg1[%c0_68, %c1_69, %c1_70, %c0_71] : memref<1x2x29x174xf32, #tpu.memory_space<vmem>>, vector<1x1x28x174xf32>
    %47 = vector.shape_cast %46 : vector<1x1x28x174xf32> to vector<28x174xf32>
    %c0_72 = arith.constant 0 : index
    %c2_73 = arith.constant 2 : index
    %c0_74 = arith.constant 0 : index
    %c0_75 = arith.constant 0 : index
    %48 = vector.load %arg2[%c0_72, %c2_73, %c0_74, %c0_75] : memref<2x3x174x112xf32, #tpu.memory_space<vmem>>, vector<1x1x174x112xf32>
    %49 = vector.shape_cast %48 : vector<1x1x174x112xf32> to vector<174x112xf32>
    %cst_76 = arith.constant dense<0.000000e+00> : vector<28x112xf32>
    %50 = tpu.matmul %47, %49, %cst_76 {dimension_numbers = #tpu.dot_dimension_numbers<[1], [0], [0], [1], [0, 0, 1, 1], [], []>} : vector<28x174xf32>, vector<174x112xf32>, vector<28x112xf32> -> vector<28x112xf32>
    %51 = arith.addf %45, %50 : vector<28x112xf32>
    %52 = arith.maximumf %34, %51 : vector<28x112xf32>
    %c0_77 = arith.constant 0 : index
    %c1_78 = arith.constant 1 : index
    %c0_79 = arith.constant 0 : index
    %c0_80 = arith.constant 0 : index
    %53 = vector.load %arg1[%c0_77, %c1_78, %c0_79, %c0_80] : memref<1x2x29x174xf32, #tpu.memory_space<vmem>>, vector<1x1x28x174xf32>
    %54 = vector.shape_cast %53 : vector<1x1x28x174xf32> to vector<28x174xf32>
    %c1_81 = arith.constant 1 : index
    %c0_82 = arith.constant 0 : index
    %c0_83 = arith.constant 0 : index
    %c0_84 = arith.constant 0 : index
    %55 = vector.load %arg2[%c1_81, %c0_82, %c0_83, %c0_84] : memref<2x3x174x112xf32, #tpu.memory_space<vmem>>, vector<1x1x174x112xf32>
    %56 = vector.shape_cast %55 : vector<1x1x174x112xf32> to vector<174x112xf32>
    %cst_85 = arith.constant dense<0.000000e+00> : vector<28x112xf32>
    %57 = tpu.matmul %54, %56, %cst_85 {dimension_numbers = #tpu.dot_dimension_numbers<[1], [0], [0], [1], [0, 0, 1, 1], [], []>} : vector<28x174xf32>, vector<174x112xf32>, vector<28x112xf32> -> vector<28x112xf32>
    %c0_86 = arith.constant 0 : index
    %c0_87 = arith.constant 0 : index
    %c1_88 = arith.constant 1 : index
    %c0_89 = arith.constant 0 : index
    %58 = vector.load %arg1[%c0_86, %c0_87, %c1_88, %c0_89] : memref<1x2x29x174xf32, #tpu.memory_space<vmem>>, vector<1x1x28x174xf32>
    %59 = vector.shape_cast %58 : vector<1x1x28x174xf32> to vector<28x174xf32>
    %c1_90 = arith.constant 1 : index
    %c1_91 = arith.constant 1 : index
    %c0_92 = arith.constant 0 : index
    %c0_93 = arith.constant 0 : index
    %60 = vector.load %arg2[%c1_90, %c1_91, %c0_92, %c0_93] : memref<2x3x174x112xf32, #tpu.memory_space<vmem>>, vector<1x1x174x112xf32>
    %61 = vector.shape_cast %60 : vector<1x1x174x112xf32> to vector<174x112xf32>
    %cst_94 = arith.constant dense<0.000000e+00> : vector<28x112xf32>
    %62 = tpu.matmul %59, %61, %cst_94 {dimension_numbers = #tpu.dot_dimension_numbers<[1], [0], [0], [1], [0, 0, 1, 1], [], []>} : vector<28x174xf32>, vector<174x112xf32>, vector<28x112xf32> -> vector<28x112xf32>
    %63 = arith.addf %57, %62 : vector<28x112xf32>
    %c0_95 = arith.constant 0 : index
    %c1_96 = arith.constant 1 : index
    %c1_97 = arith.constant 1 : index
    %c0_98 = arith.constant 0 : index
    %64 = vector.load %arg1[%c0_95, %c1_96, %c1_97, %c0_98] : memref<1x2x29x174xf32, #tpu.memory_space<vmem>>, vector<1x1x28x174xf32>
    %65 = vector.shape_cast %64 : vector<1x1x28x174xf32> to vector<28x174xf32>
    %c1_99 = arith.constant 1 : index
    %c2_100 = arith.constant 2 : index
    %c0_101 = arith.constant 0 : index
    %c0_102 = arith.constant 0 : index
    %66 = vector.load %arg2[%c1_99, %c2_100, %c0_101, %c0_102] : memref<2x3x174x112xf32, #tpu.memory_space<vmem>>, vector<1x1x174x112xf32>
    %67 = vector.shape_cast %66 : vector<1x1x174x112xf32> to vector<174x112xf32>
    %cst_103 = arith.constant dense<0.000000e+00> : vector<28x112xf32>
    %68 = tpu.matmul %65, %67, %cst_103 {dimension_numbers = #tpu.dot_dimension_numbers<[1], [0], [0], [1], [0, 0, 1, 1], [], []>} : vector<28x174xf32>, vector<174x112xf32>, vector<28x112xf32> -> vector<28x112xf32>
    %69 = arith.addf %63, %68 : vector<28x112xf32>
    %70 = arith.maximumf %52, %69 : vector<28x112xf32>
    %c0_104 = arith.constant 0 : index
    %c0_105 = arith.constant 0 : index
    %71 = vector.load %arg3[%c0_104, %c0_105] : memref<1x112xf32, #tpu.memory_space<vmem>>, vector<1x112xf32>
    %72 = vector.broadcast %71 : vector<1x112xf32> to vector<28x112xf32>
    %73 = arith.addf %70, %72 : vector<28x112xf32>
    %cst_106 = arith.constant 0.000000e+00 : f32
    %74 = vector.broadcast %cst_106 : f32 to vector<28x112xf32>
    %75 = arith.maximumf %73, %74 : vector<28x112xf32>
    %c0_107 = arith.constant 0 : index
    %c0_108 = arith.constant 0 : index
    %c0_109 = arith.constant 0 : index
    %76 = vector.load %arg4[%c0_107, %c0_108, %c0_109] : memref<1x28x112xf32, #tpu.memory_space<vmem>>, vector<1x28x112xf32>
    %77 = vector.shape_cast %76 : vector<1x28x112xf32> to vector<28x112xf32>
    %78 = vector.shape_cast %75 : vector<28x112xf32> to vector<1x28x112xf32>
    tpu.vector_store %arg4[%c0_107, %c0_108, %c0_109], %78 {strides = array<i32>} : memref<1x28x112xf32, #tpu.memory_space<vmem>>, vector<1x28x112xf32>,
    return
  }
  func.func @transform_0(%arg0: i32) -> (i32, i32, i32, i32) {
    %c0_i32 = arith.constant 0 : i32
    %c0_i32_0 = arith.constant 0 : i32
    %c0_i32_1 = arith.constant 0 : i32
    %c0_i32_2 = arith.constant 0 : i32
    return %arg0, %c0_i32, %c0_i32_0, %c0_i32_1 : i32, i32, i32, i32
  }
  func.func @transform_1(%arg0: i32) -> (i32, i32, i32, i32) {
    %c0_i32 = arith.constant 0 : i32
    %c0_i32_0 = arith.constant 0 : i32
    %c0_i32_1 = arith.constant 0 : i32
    %c0_i32_2 = arith.constant 0 : i32
    %c0_i32_3 = arith.constant 0 : i32
    return %c0_i32, %c0_i32_0, %c0_i32_1, %c0_i32_2 : i32, i32, i32, i32
  }
  func.func @transform_2(%arg0: i32) -> (i32, i32) {
    %c0_i32 = arith.constant 0 : i32
    %c0_i32_0 = arith.constant 0 : i32
    %c0_i32_1 = arith.constant 0 : i32
    return %c0_i32, %c0_i32_0 : i32, i32
  }
  func.func @transform_3(%arg0: i32) -> (i32, i32, i32) {
    %c0_i32 = arith.constant 0 : i32
    %c0_i32_0 = arith.constant 0 : i32
    %c0_i32_1 = arith.constant 0 : i32
    return %arg0, %c0_i32, %c0_i32_0 : i32, i32, i32
  }
}

module attributes {stable_mosaic.version = 11 : i64} {
  func.func @_conv_relu_pool_kernel(%arg0: i32, %arg1: memref<1x2x14x112xf32, #tpu.memory_space<vmem>>, %arg2: memref<2x5x112x96xf32, #tpu.memory_space<vmem>>, %arg3: memref<1x96xf32, #tpu.memory_space<vmem>>, %arg4: memref<1x12x96xf32, #tpu.memory_space<vmem>>) attributes {dimension_semantics = [#tpu.dimension_semantics<parallel>], iteration_bounds = array<i64: 2>, scalar_prefetch = 0 : i64, scratch_operands = 0 : i64, tpu.core_type = #tpu.core_type<tc>, window_params = [{transform_indices = @transform_0, window_bounds = array<i64: 1, 2, 14, 112>}, {pipeline_mode = #tpu.pipeline_mode<synchronous>, transform_indices = @transform_1, window_bounds = array<i64: 2, 5, 112, 96>}, {pipeline_mode = #tpu.pipeline_mode<synchronous>, transform_indices = @transform_2, window_bounds = array<i64: 1, 96>}, {transform_indices = @transform_3, window_bounds = array<i64: 1, 12, 96>}]} {
    %c0 = arith.constant 0 : index
    %c0_0 = arith.constant 0 : index
    %c0_1 = arith.constant 0 : index
    %c0_2 = arith.constant 0 : index
    %0 = vector.load %arg1[%c0, %c0_0, %c0_1, %c0_2] : memref<1x2x14x112xf32, #tpu.memory_space<vmem>>, vector<1x1x12x112xf32>
    %1 = vector.shape_cast %0 : vector<1x1x12x112xf32> to vector<12x112xf32>
    %c0_3 = arith.constant 0 : index
    %c0_4 = arith.constant 0 : index
    %c0_5 = arith.constant 0 : index
    %c0_6 = arith.constant 0 : index
    %2 = vector.load %arg2[%c0_3, %c0_4, %c0_5, %c0_6] : memref<2x5x112x96xf32, #tpu.memory_space<vmem>>, vector<1x1x112x96xf32>
    %3 = vector.shape_cast %2 : vector<1x1x112x96xf32> to vector<112x96xf32>
    %cst = arith.constant dense<0.000000e+00> : vector<12x96xf32>
    %4 = tpu.matmul %1, %3, %cst {dimension_numbers = #tpu.dot_dimension_numbers<[1], [0], [0], [1], [0, 0, 1, 1], [], []>} : vector<12x112xf32>, vector<112x96xf32>, vector<12x96xf32> -> vector<12x96xf32>
    %c0_7 = arith.constant 0 : index
    %c1 = arith.constant 1 : index
    %c0_8 = arith.constant 0 : index
    %c0_9 = arith.constant 0 : index
    %5 = vector.load %arg1[%c0_7, %c1, %c0_8, %c0_9] : memref<1x2x14x112xf32, #tpu.memory_space<vmem>>, vector<1x1x12x112xf32>
    %6 = vector.shape_cast %5 : vector<1x1x12x112xf32> to vector<12x112xf32>
    %c0_10 = arith.constant 0 : index
    %c1_11 = arith.constant 1 : index
    %c0_12 = arith.constant 0 : index
    %c0_13 = arith.constant 0 : index
    %7 = vector.load %arg2[%c0_10, %c1_11, %c0_12, %c0_13] : memref<2x5x112x96xf32, #tpu.memory_space<vmem>>, vector<1x1x112x96xf32>
    %8 = vector.shape_cast %7 : vector<1x1x112x96xf32> to vector<112x96xf32>
    %cst_14 = arith.constant dense<0.000000e+00> : vector<12x96xf32>
    %9 = tpu.matmul %6, %8, %cst_14 {dimension_numbers = #tpu.dot_dimension_numbers<[1], [0], [0], [1], [0, 0, 1, 1], [], []>} : vector<12x112xf32>, vector<112x96xf32>, vector<12x96xf32> -> vector<12x96xf32>
    %10 = arith.addf %4, %9 : vector<12x96xf32>
    %c0_15 = arith.constant 0 : index
    %c0_16 = arith.constant 0 : index
    %c1_17 = arith.constant 1 : index
    %c0_18 = arith.constant 0 : index
    %11 = vector.load %arg1[%c0_15, %c0_16, %c1_17, %c0_18] : memref<1x2x14x112xf32, #tpu.memory_space<vmem>>, vector<1x1x12x112xf32>
    %12 = vector.shape_cast %11 : vector<1x1x12x112xf32> to vector<12x112xf32>
    %c0_19 = arith.constant 0 : index
    %c2 = arith.constant 2 : index
    %c0_20 = arith.constant 0 : index
    %c0_21 = arith.constant 0 : index
    %13 = vector.load %arg2[%c0_19, %c2, %c0_20, %c0_21] : memref<2x5x112x96xf32, #tpu.memory_space<vmem>>, vector<1x1x112x96xf32>
    %14 = vector.shape_cast %13 : vector<1x1x112x96xf32> to vector<112x96xf32>
    %cst_22 = arith.constant dense<0.000000e+00> : vector<12x96xf32>
    %15 = tpu.matmul %12, %14, %cst_22 {dimension_numbers = #tpu.dot_dimension_numbers<[1], [0], [0], [1], [0, 0, 1, 1], [], []>} : vector<12x112xf32>, vector<112x96xf32>, vector<12x96xf32> -> vector<12x96xf32>
    %16 = arith.addf %10, %15 : vector<12x96xf32>
    %c0_23 = arith.constant 0 : index
    %c1_24 = arith.constant 1 : index
    %c1_25 = arith.constant 1 : index
    %c0_26 = arith.constant 0 : index
    %17 = vector.load %arg1[%c0_23, %c1_24, %c1_25, %c0_26] : memref<1x2x14x112xf32, #tpu.memory_space<vmem>>, vector<1x1x12x112xf32>
    %18 = vector.shape_cast %17 : vector<1x1x12x112xf32> to vector<12x112xf32>
    %c0_27 = arith.constant 0 : index
    %c3 = arith.constant 3 : index
    %c0_28 = arith.constant 0 : index
    %c0_29 = arith.constant 0 : index
    %19 = vector.load %arg2[%c0_27, %c3, %c0_28, %c0_29] : memref<2x5x112x96xf32, #tpu.memory_space<vmem>>, vector<1x1x112x96xf32>
    %20 = vector.shape_cast %19 : vector<1x1x112x96xf32> to vector<112x96xf32>
    %cst_30 = arith.constant dense<0.000000e+00> : vector<12x96xf32>
    %21 = tpu.matmul %18, %20, %cst_30 {dimension_numbers = #tpu.dot_dimension_numbers<[1], [0], [0], [1], [0, 0, 1, 1], [], []>} : vector<12x112xf32>, vector<112x96xf32>, vector<12x96xf32> -> vector<12x96xf32>
    %22 = arith.addf %16, %21 : vector<12x96xf32>
    %c0_31 = arith.constant 0 : index
    %c0_32 = arith.constant 0 : index
    %c2_33 = arith.constant 2 : index
    %c0_34 = arith.constant 0 : index
    %23 = vector.load %arg1[%c0_31, %c0_32, %c2_33, %c0_34] : memref<1x2x14x112xf32, #tpu.memory_space<vmem>>, vector<1x1x12x112xf32>
    %24 = vector.shape_cast %23 : vector<1x1x12x112xf32> to vector<12x112xf32>
    %c0_35 = arith.constant 0 : index
    %c4 = arith.constant 4 : index
    %c0_36 = arith.constant 0 : index
    %c0_37 = arith.constant 0 : index
    %25 = vector.load %arg2[%c0_35, %c4, %c0_36, %c0_37] : memref<2x5x112x96xf32, #tpu.memory_space<vmem>>, vector<1x1x112x96xf32>
    %26 = vector.shape_cast %25 : vector<1x1x112x96xf32> to vector<112x96xf32>
    %cst_38 = arith.constant dense<0.000000e+00> : vector<12x96xf32>
    %27 = tpu.matmul %24, %26, %cst_38 {dimension_numbers = #tpu.dot_dimension_numbers<[1], [0], [0], [1], [0, 0, 1, 1], [], []>} : vector<12x112xf32>, vector<112x96xf32>, vector<12x96xf32> -> vector<12x96xf32>
    %28 = arith.addf %22, %27 : vector<12x96xf32>
    %c0_39 = arith.constant 0 : index
    %c0_40 = arith.constant 0 : index
    %c0_41 = arith.constant 0 : index
    %c0_42 = arith.constant 0 : index
    %29 = vector.load %arg1[%c0_39, %c0_40, %c0_41, %c0_42] : memref<1x2x14x112xf32, #tpu.memory_space<vmem>>, vector<1x1x12x112xf32>
    %30 = vector.shape_cast %29 : vector<1x1x12x112xf32> to vector<12x112xf32>
    %c1_43 = arith.constant 1 : index
    %c0_44 = arith.constant 0 : index
    %c0_45 = arith.constant 0 : index
    %c0_46 = arith.constant 0 : index
    %31 = vector.load %arg2[%c1_43, %c0_44, %c0_45, %c0_46] : memref<2x5x112x96xf32, #tpu.memory_space<vmem>>, vector<1x1x112x96xf32>
    %32 = vector.shape_cast %31 : vector<1x1x112x96xf32> to vector<112x96xf32>
    %cst_47 = arith.constant dense<0.000000e+00> : vector<12x96xf32>
    %33 = tpu.matmul %30, %32, %cst_47 {dimension_numbers = #tpu.dot_dimension_numbers<[1], [0], [0], [1], [0, 0, 1, 1], [], []>} : vector<12x112xf32>, vector<112x96xf32>, vector<12x96xf32> -> vector<12x96xf32>
    %c0_48 = arith.constant 0 : index
    %c1_49 = arith.constant 1 : index
    %c0_50 = arith.constant 0 : index
    %c0_51 = arith.constant 0 : index
    %34 = vector.load %arg1[%c0_48, %c1_49, %c0_50, %c0_51] : memref<1x2x14x112xf32, #tpu.memory_space<vmem>>, vector<1x1x12x112xf32>
    %35 = vector.shape_cast %34 : vector<1x1x12x112xf32> to vector<12x112xf32>
    %c1_52 = arith.constant 1 : index
    %c1_53 = arith.constant 1 : index
    %c0_54 = arith.constant 0 : index
    %c0_55 = arith.constant 0 : index
    %36 = vector.load %arg2[%c1_52, %c1_53, %c0_54, %c0_55] : memref<2x5x112x96xf32, #tpu.memory_space<vmem>>, vector<1x1x112x96xf32>
    %37 = vector.shape_cast %36 : vector<1x1x112x96xf32> to vector<112x96xf32>
    %cst_56 = arith.constant dense<0.000000e+00> : vector<12x96xf32>
    %38 = tpu.matmul %35, %37, %cst_56 {dimension_numbers = #tpu.dot_dimension_numbers<[1], [0], [0], [1], [0, 0, 1, 1], [], []>} : vector<12x112xf32>, vector<112x96xf32>, vector<12x96xf32> -> vector<12x96xf32>
    %39 = arith.addf %33, %38 : vector<12x96xf32>
    %c0_57 = arith.constant 0 : index
    %c0_58 = arith.constant 0 : index
    %c1_59 = arith.constant 1 : index
    %c0_60 = arith.constant 0 : index
    %40 = vector.load %arg1[%c0_57, %c0_58, %c1_59, %c0_60] : memref<1x2x14x112xf32, #tpu.memory_space<vmem>>, vector<1x1x12x112xf32>
    %41 = vector.shape_cast %40 : vector<1x1x12x112xf32> to vector<12x112xf32>
    %c1_61 = arith.constant 1 : index
    %c2_62 = arith.constant 2 : index
    %c0_63 = arith.constant 0 : index
    %c0_64 = arith.constant 0 : index
    %42 = vector.load %arg2[%c1_61, %c2_62, %c0_63, %c0_64] : memref<2x5x112x96xf32, #tpu.memory_space<vmem>>, vector<1x1x112x96xf32>
    %43 = vector.shape_cast %42 : vector<1x1x112x96xf32> to vector<112x96xf32>
    %cst_65 = arith.constant dense<0.000000e+00> : vector<12x96xf32>
    %44 = tpu.matmul %41, %43, %cst_65 {dimension_numbers = #tpu.dot_dimension_numbers<[1], [0], [0], [1], [0, 0, 1, 1], [], []>} : vector<12x112xf32>, vector<112x96xf32>, vector<12x96xf32> -> vector<12x96xf32>
    %45 = arith.addf %39, %44 : vector<12x96xf32>
    %c0_66 = arith.constant 0 : index
    %c1_67 = arith.constant 1 : index
    %c1_68 = arith.constant 1 : index
    %c0_69 = arith.constant 0 : index
    %46 = vector.load %arg1[%c0_66, %c1_67, %c1_68, %c0_69] : memref<1x2x14x112xf32, #tpu.memory_space<vmem>>, vector<1x1x12x112xf32>
    %47 = vector.shape_cast %46 : vector<1x1x12x112xf32> to vector<12x112xf32>
    %c1_70 = arith.constant 1 : index
    %c3_71 = arith.constant 3 : index
    %c0_72 = arith.constant 0 : index
    %c0_73 = arith.constant 0 : index
    %48 = vector.load %arg2[%c1_70, %c3_71, %c0_72, %c0_73] : memref<2x5x112x96xf32, #tpu.memory_space<vmem>>, vector<1x1x112x96xf32>
    %49 = vector.shape_cast %48 : vector<1x1x112x96xf32> to vector<112x96xf32>
    %cst_74 = arith.constant dense<0.000000e+00> : vector<12x96xf32>
    %50 = tpu.matmul %47, %49, %cst_74 {dimension_numbers = #tpu.dot_dimension_numbers<[1], [0], [0], [1], [0, 0, 1, 1], [], []>} : vector<12x112xf32>, vector<112x96xf32>, vector<12x96xf32> -> vector<12x96xf32>
    %51 = arith.addf %45, %50 : vector<12x96xf32>
    %c0_75 = arith.constant 0 : index
    %c0_76 = arith.constant 0 : index
    %c2_77 = arith.constant 2 : index
    %c0_78 = arith.constant 0 : index
    %52 = vector.load %arg1[%c0_75, %c0_76, %c2_77, %c0_78] : memref<1x2x14x112xf32, #tpu.memory_space<vmem>>, vector<1x1x12x112xf32>
    %53 = vector.shape_cast %52 : vector<1x1x12x112xf32> to vector<12x112xf32>
    %c1_79 = arith.constant 1 : index
    %c4_80 = arith.constant 4 : index
    %c0_81 = arith.constant 0 : index
    %c0_82 = arith.constant 0 : index
    %54 = vector.load %arg2[%c1_79, %c4_80, %c0_81, %c0_82] : memref<2x5x112x96xf32, #tpu.memory_space<vmem>>, vector<1x1x112x96xf32>
    %55 = vector.shape_cast %54 : vector<1x1x112x96xf32> to vector<112x96xf32>
    %cst_83 = arith.constant dense<0.000000e+00> : vector<12x96xf32>
    %56 = tpu.matmul %53, %55, %cst_83 {dimension_numbers = #tpu.dot_dimension_numbers<[1], [0], [0], [1], [0, 0, 1, 1], [], []>} : vector<12x112xf32>, vector<112x96xf32>, vector<12x96xf32> -> vector<12x96xf32>
    %57 = arith.addf %51, %56 : vector<12x96xf32>
    %58 = arith.maximumf %28, %57 : vector<12x96xf32>
    %c0_84 = arith.constant 0 : index
    %c1_85 = arith.constant 1 : index
    %c0_86 = arith.constant 0 : index
    %c0_87 = arith.constant 0 : index
    %59 = vector.load %arg1[%c0_84, %c1_85, %c0_86, %c0_87] : memref<1x2x14x112xf32, #tpu.memory_space<vmem>>, vector<1x1x12x112xf32>
    %60 = vector.shape_cast %59 : vector<1x1x12x112xf32> to vector<12x112xf32>
    %c0_88 = arith.constant 0 : index
    %c0_89 = arith.constant 0 : index
    %c0_90 = arith.constant 0 : index
    %c0_91 = arith.constant 0 : index
    %61 = vector.load %arg2[%c0_88, %c0_89, %c0_90, %c0_91] : memref<2x5x112x96xf32, #tpu.memory_space<vmem>>, vector<1x1x112x96xf32>
    %62 = vector.shape_cast %61 : vector<1x1x112x96xf32> to vector<112x96xf32>
    %cst_92 = arith.constant dense<0.000000e+00> : vector<12x96xf32>
    %63 = tpu.matmul %60, %62, %cst_92 {dimension_numbers = #tpu.dot_dimension_numbers<[1], [0], [0], [1], [0, 0, 1, 1], [], []>} : vector<12x112xf32>, vector<112x96xf32>, vector<12x96xf32> -> vector<12x96xf32>
    %c0_93 = arith.constant 0 : index
    %c0_94 = arith.constant 0 : index
    %c1_95 = arith.constant 1 : index
    %c0_96 = arith.constant 0 : index
    %64 = vector.load %arg1[%c0_93, %c0_94, %c1_95, %c0_96] : memref<1x2x14x112xf32, #tpu.memory_space<vmem>>, vector<1x1x12x112xf32>
    %65 = vector.shape_cast %64 : vector<1x1x12x112xf32> to vector<12x112xf32>
    %c0_97 = arith.constant 0 : index
    %c1_98 = arith.constant 1 : index
    %c0_99 = arith.constant 0 : index
    %c0_100 = arith.constant 0 : index
    %66 = vector.load %arg2[%c0_97, %c1_98, %c0_99, %c0_100] : memref<2x5x112x96xf32, #tpu.memory_space<vmem>>, vector<1x1x112x96xf32>
    %67 = vector.shape_cast %66 : vector<1x1x112x96xf32> to vector<112x96xf32>
    %cst_101 = arith.constant dense<0.000000e+00> : vector<12x96xf32>
    %68 = tpu.matmul %65, %67, %cst_101 {dimension_numbers = #tpu.dot_dimension_numbers<[1], [0], [0], [1], [0, 0, 1, 1], [], []>} : vector<12x112xf32>, vector<112x96xf32>, vector<12x96xf32> -> vector<12x96xf32>
    %69 = arith.addf %63, %68 : vector<12x96xf32>
    %c0_102 = arith.constant 0 : index
    %c1_103 = arith.constant 1 : index
    %c1_104 = arith.constant 1 : index
    %c0_105 = arith.constant 0 : index
    %70 = vector.load %arg1[%c0_102, %c1_103, %c1_104, %c0_105] : memref<1x2x14x112xf32, #tpu.memory_space<vmem>>, vector<1x1x12x112xf32>
    %71 = vector.shape_cast %70 : vector<1x1x12x112xf32> to vector<12x112xf32>
    %c0_106 = arith.constant 0 : index
    %c2_107 = arith.constant 2 : index
    %c0_108 = arith.constant 0 : index
    %c0_109 = arith.constant 0 : index
    %72 = vector.load %arg2[%c0_106, %c2_107, %c0_108, %c0_109] : memref<2x5x112x96xf32, #tpu.memory_space<vmem>>, vector<1x1x112x96xf32>
    %73 = vector.shape_cast %72 : vector<1x1x112x96xf32> to vector<112x96xf32>
    %cst_110 = arith.constant dense<0.000000e+00> : vector<12x96xf32>
    %74 = tpu.matmul %71, %73, %cst_110 {dimension_numbers = #tpu.dot_dimension_numbers<[1], [0], [0], [1], [0, 0, 1, 1], [], []>} : vector<12x112xf32>, vector<112x96xf32>, vector<12x96xf32> -> vector<12x96xf32>
    %75 = arith.addf %69, %74 : vector<12x96xf32>
    %c0_111 = arith.constant 0 : index
    %c0_112 = arith.constant 0 : index
    %c2_113 = arith.constant 2 : index
    %c0_114 = arith.constant 0 : index
    %76 = vector.load %arg1[%c0_111, %c0_112, %c2_113, %c0_114] : memref<1x2x14x112xf32, #tpu.memory_space<vmem>>, vector<1x1x12x112xf32>
    %77 = vector.shape_cast %76 : vector<1x1x12x112xf32> to vector<12x112xf32>
    %c0_115 = arith.constant 0 : index
    %c3_116 = arith.constant 3 : index
    %c0_117 = arith.constant 0 : index
    %c0_118 = arith.constant 0 : index
    %78 = vector.load %arg2[%c0_115, %c3_116, %c0_117, %c0_118] : memref<2x5x112x96xf32, #tpu.memory_space<vmem>>, vector<1x1x112x96xf32>
    %79 = vector.shape_cast %78 : vector<1x1x112x96xf32> to vector<112x96xf32>
    %cst_119 = arith.constant dense<0.000000e+00> : vector<12x96xf32>
    %80 = tpu.matmul %77, %79, %cst_119 {dimension_numbers = #tpu.dot_dimension_numbers<[1], [0], [0], [1], [0, 0, 1, 1], [], []>} : vector<12x112xf32>, vector<112x96xf32>, vector<12x96xf32> -> vector<12x96xf32>
    %81 = arith.addf %75, %80 : vector<12x96xf32>
    %c0_120 = arith.constant 0 : index
    %c1_121 = arith.constant 1 : index
    %c2_122 = arith.constant 2 : index
    %c0_123 = arith.constant 0 : index
    %82 = vector.load %arg1[%c0_120, %c1_121, %c2_122, %c0_123] : memref<1x2x14x112xf32, #tpu.memory_space<vmem>>, vector<1x1x12x112xf32>
    %83 = vector.shape_cast %82 : vector<1x1x12x112xf32> to vector<12x112xf32>
    %c0_124 = arith.constant 0 : index
    %c4_125 = arith.constant 4 : index
    %c0_126 = arith.constant 0 : index
    %c0_127 = arith.constant 0 : index
    %84 = vector.load %arg2[%c0_124, %c4_125, %c0_126, %c0_127] : memref<2x5x112x96xf32, #tpu.memory_space<vmem>>, vector<1x1x112x96xf32>
    %85 = vector.shape_cast %84 : vector<1x1x112x96xf32> to vector<112x96xf32>
    %cst_128 = arith.constant dense<0.000000e+00> : vector<12x96xf32>
    %86 = tpu.matmul %83, %85, %cst_128 {dimension_numbers = #tpu.dot_dimension_numbers<[1], [0], [0], [1], [0, 0, 1, 1], [], []>} : vector<12x112xf32>, vector<112x96xf32>, vector<12x96xf32> -> vector<12x96xf32>
    %87 = arith.addf %81, %86 : vector<12x96xf32>
    %88 = arith.maximumf %58, %87 : vector<12x96xf32>
    %c0_129 = arith.constant 0 : index
    %c1_130 = arith.constant 1 : index
    %c0_131 = arith.constant 0 : index
    %c0_132 = arith.constant 0 : index
    %89 = vector.load %arg1[%c0_129, %c1_130, %c0_131, %c0_132] : memref<1x2x14x112xf32, #tpu.memory_space<vmem>>, vector<1x1x12x112xf32>
    %90 = vector.shape_cast %89 : vector<1x1x12x112xf32> to vector<12x112xf32>
    %c1_133 = arith.constant 1 : index
    %c0_134 = arith.constant 0 : index
    %c0_135 = arith.constant 0 : index
    %c0_136 = arith.constant 0 : index
    %91 = vector.load %arg2[%c1_133, %c0_134, %c0_135, %c0_136] : memref<2x5x112x96xf32, #tpu.memory_space<vmem>>, vector<1x1x112x96xf32>
    %92 = vector.shape_cast %91 : vector<1x1x112x96xf32> to vector<112x96xf32>
    %cst_137 = arith.constant dense<0.000000e+00> : vector<12x96xf32>
    %93 = tpu.matmul %90, %92, %cst_137 {dimension_numbers = #tpu.dot_dimension_numbers<[1], [0], [0], [1], [0, 0, 1, 1], [], []>} : vector<12x112xf32>, vector<112x96xf32>, vector<12x96xf32> -> vector<12x96xf32>
    %c0_138 = arith.constant 0 : index
    %c0_139 = arith.constant 0 : index
    %c1_140 = arith.constant 1 : index
    %c0_141 = arith.constant 0 : index
    %94 = vector.load %arg1[%c0_138, %c0_139, %c1_140, %c0_141] : memref<1x2x14x112xf32, #tpu.memory_space<vmem>>, vector<1x1x12x112xf32>
    %95 = vector.shape_cast %94 : vector<1x1x12x112xf32> to vector<12x112xf32>
    %c1_142 = arith.constant 1 : index
    %c1_143 = arith.constant 1 : index
    %c0_144 = arith.constant 0 : index
    %c0_145 = arith.constant 0 : index
    %96 = vector.load %arg2[%c1_142, %c1_143, %c0_144, %c0_145] : memref<2x5x112x96xf32, #tpu.memory_space<vmem>>, vector<1x1x112x96xf32>
    %97 = vector.shape_cast %96 : vector<1x1x112x96xf32> to vector<112x96xf32>
    %cst_146 = arith.constant dense<0.000000e+00> : vector<12x96xf32>
    %98 = tpu.matmul %95, %97, %cst_146 {dimension_numbers = #tpu.dot_dimension_numbers<[1], [0], [0], [1], [0, 0, 1, 1], [], []>} : vector<12x112xf32>, vector<112x96xf32>, vector<12x96xf32> -> vector<12x96xf32>
    %99 = arith.addf %93, %98 : vector<12x96xf32>
    %c0_147 = arith.constant 0 : index
    %c1_148 = arith.constant 1 : index
    %c1_149 = arith.constant 1 : index
    %c0_150 = arith.constant 0 : index
    %100 = vector.load %arg1[%c0_147, %c1_148, %c1_149, %c0_150] : memref<1x2x14x112xf32, #tpu.memory_space<vmem>>, vector<1x1x12x112xf32>
    %101 = vector.shape_cast %100 : vector<1x1x12x112xf32> to vector<12x112xf32>
    %c1_151 = arith.constant 1 : index
    %c2_152 = arith.constant 2 : index
    %c0_153 = arith.constant 0 : index
    %c0_154 = arith.constant 0 : index
    %102 = vector.load %arg2[%c1_151, %c2_152, %c0_153, %c0_154] : memref<2x5x112x96xf32, #tpu.memory_space<vmem>>, vector<1x1x112x96xf32>
    %103 = vector.shape_cast %102 : vector<1x1x112x96xf32> to vector<112x96xf32>
    %cst_155 = arith.constant dense<0.000000e+00> : vector<12x96xf32>
    %104 = tpu.matmul %101, %103, %cst_155 {dimension_numbers = #tpu.dot_dimension_numbers<[1], [0], [0], [1], [0, 0, 1, 1], [], []>} : vector<12x112xf32>, vector<112x96xf32>, vector<12x96xf32> -> vector<12x96xf32>
    %105 = arith.addf %99, %104 : vector<12x96xf32>
    %c0_156 = arith.constant 0 : index
    %c0_157 = arith.constant 0 : index
    %c2_158 = arith.constant 2 : index
    %c0_159 = arith.constant 0 : index
    %106 = vector.load %arg1[%c0_156, %c0_157, %c2_158, %c0_159] : memref<1x2x14x112xf32, #tpu.memory_space<vmem>>, vector<1x1x12x112xf32>
    %107 = vector.shape_cast %106 : vector<1x1x12x112xf32> to vector<12x112xf32>
    %c1_160 = arith.constant 1 : index
    %c3_161 = arith.constant 3 : index
    %c0_162 = arith.constant 0 : index
    %c0_163 = arith.constant 0 : index
    %108 = vector.load %arg2[%c1_160, %c3_161, %c0_162, %c0_163] : memref<2x5x112x96xf32, #tpu.memory_space<vmem>>, vector<1x1x112x96xf32>
    %109 = vector.shape_cast %108 : vector<1x1x112x96xf32> to vector<112x96xf32>
    %cst_164 = arith.constant dense<0.000000e+00> : vector<12x96xf32>
    %110 = tpu.matmul %107, %109, %cst_164 {dimension_numbers = #tpu.dot_dimension_numbers<[1], [0], [0], [1], [0, 0, 1, 1], [], []>} : vector<12x112xf32>, vector<112x96xf32>, vector<12x96xf32> -> vector<12x96xf32>
    %111 = arith.addf %105, %110 : vector<12x96xf32>
    %c0_165 = arith.constant 0 : index
    %c1_166 = arith.constant 1 : index
    %c2_167 = arith.constant 2 : index
    %c0_168 = arith.constant 0 : index
    %112 = vector.load %arg1[%c0_165, %c1_166, %c2_167, %c0_168] : memref<1x2x14x112xf32, #tpu.memory_space<vmem>>, vector<1x1x12x112xf32>
    %113 = vector.shape_cast %112 : vector<1x1x12x112xf32> to vector<12x112xf32>
    %c1_169 = arith.constant 1 : index
    %c4_170 = arith.constant 4 : index
    %c0_171 = arith.constant 0 : index
    %c0_172 = arith.constant 0 : index
    %114 = vector.load %arg2[%c1_169, %c4_170, %c0_171, %c0_172] : memref<2x5x112x96xf32, #tpu.memory_space<vmem>>, vector<1x1x112x96xf32>
    %115 = vector.shape_cast %114 : vector<1x1x112x96xf32> to vector<112x96xf32>
    %cst_173 = arith.constant dense<0.000000e+00> : vector<12x96xf32>
    %116 = tpu.matmul %113, %115, %cst_173 {dimension_numbers = #tpu.dot_dimension_numbers<[1], [0], [0], [1], [0, 0, 1, 1], [], []>} : vector<12x112xf32>, vector<112x96xf32>, vector<12x96xf32> -> vector<12x96xf32>
    %117 = arith.addf %111, %116 : vector<12x96xf32>
    %118 = arith.maximumf %88, %117 : vector<12x96xf32>
    %c0_174 = arith.constant 0 : index
    %c0_175 = arith.constant 0 : index
    %119 = vector.load %arg3[%c0_174, %c0_175] : memref<1x96xf32, #tpu.memory_space<vmem>>, vector<1x96xf32>
    %120 = vector.broadcast %119 : vector<1x96xf32> to vector<12x96xf32>
    %121 = arith.addf %118, %120 : vector<12x96xf32>
    %cst_176 = arith.constant 0.000000e+00 : f32
    %122 = vector.broadcast %cst_176 : f32 to vector<12x96xf32>
    %123 = arith.maximumf %121, %122 : vector<12x96xf32>
    %c0_177 = arith.constant 0 : index
    %c0_178 = arith.constant 0 : index
    %c0_179 = arith.constant 0 : index
    %124 = vector.load %arg4[%c0_177, %c0_178, %c0_179] : memref<1x12x96xf32, #tpu.memory_space<vmem>>, vector<1x12x96xf32>
    %125 = vector.shape_cast %124 : vector<1x12x96xf32> to vector<12x96xf32>
    %126 = vector.shape_cast %123 : vector<12x96xf32> to vector<1x12x96xf32>
    tpu.vector_store %arg4[%c0_177, %c0_178, %c0_179], %126 {strides = array<i32>} : memref<1x12x96xf32, #tpu.memory_space<vmem>>, vector<1x12x96xf32>,
    return
  }
  func.func @transform_0(%arg0: i32) -> (i32, i32, i32, i32) {
    %c0_i32 = arith.constant 0 : i32
    %c0_i32_0 = arith.constant 0 : i32
    %c0_i32_1 = arith.constant 0 : i32
    %c0_i32_2 = arith.constant 0 : i32
    return %arg0, %c0_i32, %c0_i32_0, %c0_i32_1 : i32, i32, i32, i32
  }
  func.func @transform_1(%arg0: i32) -> (i32, i32, i32, i32) {
    %c0_i32 = arith.constant 0 : i32
    %c0_i32_0 = arith.constant 0 : i32
    %c0_i32_1 = arith.constant 0 : i32
    %c0_i32_2 = arith.constant 0 : i32
    %c0_i32_3 = arith.constant 0 : i32
    return %c0_i32, %c0_i32_0, %c0_i32_1, %c0_i32_2 : i32, i32, i32, i32
  }
  func.func @transform_2(%arg0: i32) -> (i32, i32) {
    %c0_i32 = arith.constant 0 : i32
    %c0_i32_0 = arith.constant 0 : i32
    %c0_i32_1 = arith.constant 0 : i32
    return %c0_i32, %c0_i32_0 : i32, i32
  }
  func.func @transform_3(%arg0: i32) -> (i32, i32, i32) {
    %c0_i32 = arith.constant 0 : i32
    %c0_i32_0 = arith.constant 0 : i32
    %c0_i32_1 = arith.constant 0 : i32
    return %arg0, %c0_i32, %c0_i32_0 : i32, i32, i32
  }
}

module attributes {stable_mosaic.version = 11 : i64} {
  func.func @_mlp_kernel(%arg0: i32, %arg1: memref<2x1152xf32, #tpu.memory_space<vmem>>, %arg2: memref<1152x100xf32, #tpu.memory_space<vmem>>, %arg3: memref<1x100xf32, #tpu.memory_space<vmem>>, %arg4: memref<100x10xf32, #tpu.memory_space<vmem>>, %arg5: memref<1x10xf32, #tpu.memory_space<vmem>>, %arg6: memref<2x10xf32, #tpu.memory_space<vmem>>) attributes {dimension_semantics = [#tpu.dimension_semantics<parallel>], iteration_bounds = array<i64: 1>, scalar_prefetch = 0 : i64, scratch_operands = 0 : i64, tpu.core_type = #tpu.core_type<tc>, window_params = [{transform_indices = @transform_0, window_bounds = array<i64: 2, 1152>}, {pipeline_mode = #tpu.pipeline_mode<synchronous>, transform_indices = @transform_1, window_bounds = array<i64: 1152, 100>}, {pipeline_mode = #tpu.pipeline_mode<synchronous>, transform_indices = @transform_2, window_bounds = array<i64: 1, 100>}, {pipeline_mode = #tpu.pipeline_mode<synchronous>, transform_indices = @transform_3, window_bounds = array<i64: 100, 10>}, {pipeline_mode = #tpu.pipeline_mode<synchronous>, transform_indices = @transform_4, window_bounds = array<i64: 1, 10>}, {transform_indices = @transform_5, window_bounds = array<i64: 2, 10>}]} {
    %c0 = arith.constant 0 : index
    %c0_0 = arith.constant 0 : index
    %0 = vector.load %arg1[%c0, %c0_0] : memref<2x1152xf32, #tpu.memory_space<vmem>>, vector<2x1152xf32>
    %c0_1 = arith.constant 0 : index
    %c0_2 = arith.constant 0 : index
    %1 = vector.load %arg2[%c0_1, %c0_2] : memref<1152x100xf32, #tpu.memory_space<vmem>>, vector<1152x100xf32>
    %cst = arith.constant dense<0.000000e+00> : vector<2x100xf32>
    %2 = tpu.matmul %0, %1, %cst {dimension_numbers = #tpu.dot_dimension_numbers<[1], [0], [0], [1], [0, 0, 1, 1], [], []>} : vector<2x1152xf32>, vector<1152x100xf32>, vector<2x100xf32> -> vector<2x100xf32>
    %c0_3 = arith.constant 0 : index
    %c0_4 = arith.constant 0 : index
    %3 = vector.load %arg3[%c0_3, %c0_4] : memref<1x100xf32, #tpu.memory_space<vmem>>, vector<1x100xf32>
    %4 = vector.broadcast %3 : vector<1x100xf32> to vector<2x100xf32>
    %5 = arith.addf %2, %4 : vector<2x100xf32>
    %cst_5 = arith.constant 0.000000e+00 : f32
    %6 = vector.broadcast %cst_5 : f32 to vector<2x100xf32>
    %7 = arith.maximumf %5, %6 : vector<2x100xf32>
    %c0_6 = arith.constant 0 : index
    %c0_7 = arith.constant 0 : index
    %8 = vector.load %arg4[%c0_6, %c0_7] : memref<100x10xf32, #tpu.memory_space<vmem>>, vector<100x10xf32>
    %cst_8 = arith.constant dense<0.000000e+00> : vector<2x10xf32>
    %9 = tpu.matmul %7, %8, %cst_8 {dimension_numbers = #tpu.dot_dimension_numbers<[1], [0], [0], [1], [0, 0, 1, 1], [], []>} : vector<2x100xf32>, vector<100x10xf32>, vector<2x10xf32> -> vector<2x10xf32>
    %c0_9 = arith.constant 0 : index
    %c0_10 = arith.constant 0 : index
    %10 = vector.load %arg5[%c0_9, %c0_10] : memref<1x10xf32, #tpu.memory_space<vmem>>, vector<1x10xf32>
    %11 = vector.broadcast %10 : vector<1x10xf32> to vector<2x10xf32>
    %12 = arith.addf %9, %11 : vector<2x10xf32>
    %c0_11 = arith.constant 0 : index
    %c0_12 = arith.constant 0 : index
    %13 = vector.load %arg6[%c0_11, %c0_12] : memref<2x10xf32, #tpu.memory_space<vmem>>, vector<2x10xf32>
    tpu.vector_store %arg6[%c0_11, %c0_12], %12 {strides = array<i32>} : memref<2x10xf32, #tpu.memory_space<vmem>>, vector<2x10xf32>,
    return
  }
  func.func @transform_0(%arg0: i32) -> (i32, i32) {
    %c0_i32 = arith.constant 0 : i32
    %c0_i32_0 = arith.constant 0 : i32
    return %arg0, %c0_i32 : i32, i32
  }
  func.func @transform_1(%arg0: i32) -> (i32, i32) {
    %c0_i32 = arith.constant 0 : i32
    %c0_i32_0 = arith.constant 0 : i32
    %c0_i32_1 = arith.constant 0 : i32
    return %c0_i32, %c0_i32_0 : i32, i32
  }
  func.func @transform_2(%arg0: i32) -> (i32, i32) {
    %c0_i32 = arith.constant 0 : i32
    %c0_i32_0 = arith.constant 0 : i32
    %c0_i32_1 = arith.constant 0 : i32
    return %c0_i32, %c0_i32_0 : i32, i32
  }
  func.func @transform_3(%arg0: i32) -> (i32, i32) {
    %c0_i32 = arith.constant 0 : i32
    %c0_i32_0 = arith.constant 0 : i32
    %c0_i32_1 = arith.constant 0 : i32
    return %c0_i32, %c0_i32_0 : i32, i32
  }
  func.func @transform_4(%arg0: i32) -> (i32, i32) {
    %c0_i32 = arith.constant 0 : i32
    %c0_i32_0 = arith.constant 0 : i32
    %c0_i32_1 = arith.constant 0 : i32
    return %c0_i32, %c0_i32_0 : i32, i32
  }
  func.func @transform_5(%arg0: i32) -> (i32, i32) {
    %c0_i32 = arith.constant 0 : i32
    %c0_i32_0 = arith.constant 0 : i32
    return %arg0, %c0_i32 : i32, i32
  }
}

</mosaic_0001>

<llo_original>
// kernel: cnn_part3_forward.3
$region0: #{cnn_part3_forward.3}
  #allocation0 [shape = 'u32[]', space=smem, size = 0x4, offset = 0x4, fixed_abs, tag = 'smem constant byte address 0x4 - core index']
  #allocation1 [shape = 'u32[144,128]{1,0:T(1,128)}', space=vmem, size = 0x12000, scoped, tag = 'internal scratch']
  %s0 = inlined_call_operand.vmem [shape: f32[2,2,29,174], index: 0, kind: input, shape index: {}]
  %s1 = inlined_call_operand.vmem [shape: f32[2,3,174,112], index: 1, kind: input, shape index: {}]
  %s2 = inlined_call_operand.vmem [shape: f32[1,112], index: 2, kind: input, shape index: {}]
  %s3 = inlined_call_operand.vmem [shape: f32[2,28,112], index: 3, kind: output, shape index: {}]
  %s4 = sld [smem:[#allocation0]]
  $region45: #{cnn_part3_forward.3} parent=0
    _
  %s6 = ssub.s32 1, %s4
  %s7 = scalar_select 0, %s6, %s4
  loop: start=0, step=1, limit=4
  $region2: #{cnn_part3_forward.3} parent=0 // loop_pre_header
    _
  $region3: #{cnn_part3_forward.3} parent=0 // loop_header
    %s9 = sphi 0, %s13
    %p10 = scmp.ge.s32.totalorder %s9, 4
    %s19 = sphi 0, %s21
    %s22 = sphi 0, %s19
    %s23 = sphi 0, %s22
    %s39 = sphi 0, %s23
    %s43 = sphi 0, %s43
    %s45 = sphi 0, %s43
    %s46 = sphi 0, %s45
    %s60 = sphi 0, %s46
    %s64 = sphi 0, %s64
    %s66 = sphi 0, %s64
    %s67 = sphi 0, %s66
    %s81 = sphi 0, %s67
    %s87 = sphi 0, %s89
    %s90 = sphi 0, %s87
    %s91 = sphi 0, %s90
    %s107 = sphi 0, %s91
  $region4: #{cnn_part3_forward.3} parent=0 // loop_header_branch
    %12 = sbr.rel (%p10) target = $region8
  $region5: #{cnn_part3_forward.3} parent=0 // loop_body
    %s14 = ssub.s32 %s9, 1
    %s15 = ssub.s32 %s9, 2
    %s16 = sadd.s32 %s9, 1
    %s17 = ssub.s32 %s9, %s16
    %p18 = scmp.eq.s32.totalorder %s17, 0
    %s20 = sadd.s32 %s19, 1
    %s21 = scalar_select %p18, %s19, %s20
    %p24 = pneg %p18
    %p25 = scmp.eq.s32.totalorder %s9, 1
    %p26 = por %p24, %p25
    %p27 = scmp.ne.s32.totalorder %s19, %s22
    %p28 = scmp.eq.s32.totalorder %s9, 0
    %p29 = por %p27, %p28
    %p30 = scmp.ne.s32.totalorder %s19, %s22
    %p31 = scmp.eq.s32.totalorder %s14, 1
    %p32 = por %p30, %p31
    %p33 = scmp.ne.s32.totalorder %s22, %s23
    %p34 = scmp.eq.s32.totalorder %s14, 0
    %p35 = por %p33, %p34
    %p36 = scmp.ne.s32.totalorder %s22, %s23
    %p37 = scmp.eq.s32.totalorder %s15, 1
    %p38 = por %p36, %p37
    %p40 = scmp.ne.s32.totalorder %s23, %s39
    %p41 = scmp.eq.s32.totalorder %s15, 0
    %p42 = por %p40, %p41
    %s44 = sadd.s32 %s43, 1
    %p47 = scmp.eq.s32.totalorder %s9, 1
    %p48 = scmp.ne.s32.totalorder %s43, %s45
    %p49 = scmp.eq.s32.totalorder %s9, 0
    %p50 = por %p48, %p49
    %p51 = scmp.ne.s32.totalorder %s43, %s45
    %p52 = scmp.eq.s32.totalorder %s14, 1
    %p53 = por %p51, %p52
    %p54 = scmp.ne.s32.totalorder %s45, %s46
    %p55 = scmp.eq.s32.totalorder %s14, 0
    %p56 = por %p54, %p55
    %p57 = scmp.ne.s32.totalorder %s45, %s46
    %p58 = scmp.eq.s32.totalorder %s15, 1
    %p59 = por %p57, %p58
    %p61 = scmp.ne.s32.totalorder %s46, %s60
    %p62 = scmp.eq.s32.totalorder %s15, 0
    %p63 = por %p61, %p62
    %s65 = sadd.s32 %s64, 1
    %p68 = scmp.eq.s32.totalorder %s9, 1
    %p69 = scmp.ne.s32.totalorder %s64, %s66
    %p70 = scmp.eq.s32.totalorder %s9, 0
    %p71 = por %p69, %p70
    %p72 = scmp.ne.s32.totalorder %s64, %s66
    %p73 = scmp.eq.s32.totalorder %s14, 1
    %p74 = por %p72, %p73
    %p75 = scmp.ne.s32.totalorder %s66, %s67
    %p76 = scmp.eq.s32.totalorder %s14, 0
    %p77 = por %p75, %p76
    %p78 = scmp.ne.s32.totalorder %s66, %s67
    %p79 = scmp.eq.s32.totalorder %s15, 1
    %p80 = por %p78, %p79
    %p82 = scmp.ne.s32.totalorder %s67, %s81
    %p83 = scmp.eq.s32.totalorder %s15, 0
    %p84 = por %p82, %p83
    %s85 = ssub.s32 %s9, %s16
    %p86 = scmp.eq.s32.totalorder %s85, 0
    %s88 = sadd.s32 %s87, 1
    %s89 = scalar_select %p86, %s87, %s88
    %p92 = pneg %p86
    %p93 = scmp.eq.s32.totalorder %s9, 1
    %p94 = por %p92, %p93
    %p95 = scmp.ne.s32.totalorder %s87, %s90
    %p96 = scmp.eq.s32.totalorder %s9, 0
    %p97 = por %p95, %p96
    %p98 = scmp.ne.s32.totalorder %s87, %s90
    %p99 = scmp.eq.s32.totalorder %s14, 1
    %p100 = por %p98, %p99
    %p101 = scmp.ne.s32.totalorder %s90, %s91
    %p102 = scmp.eq.s32.totalorder %s14, 0
    %p103 = por %p101, %p102
    %p104 = scmp.ne.s32.totalorder %s90, %s91
    %p105 = scmp.eq.s32.totalorder %s15, 1
    %p106 = por %p104, %p105
    %p108 = scmp.ne.s32.totalorder %s91, %s107
    %p109 = scmp.eq.s32.totalorder %s15, 0
    %p110 = por %p108, %p109
    %p111 = scmp.le.s32.totalorder 1, %s9
    %p112 = scmp.lt.s32.totalorder %s9, 3
    %p113 = pnand %p111, %p112
    %p114 = pneg %p113
    // Predicated region
    $region9: #{cnn_part3_forward.3} parent=5 // pred_check
      _
    $region10: #{cnn_part3_forward.3} parent=5 // pred_check_branch
      %116 = sbr.rel (%p113) target = $region12
    $region11: #{cnn_part3_forward.3} parent=5 // pred_region
      %s117 = ssub.s32 %s9, 1
      // Predicated region
      $region13: #{cnn_part3_forward.3} parent=11 // pred_check
        %p118 = pneg %p56
      $region14: #{cnn_part3_forward.3} parent=11 // pred_check_branch
        %120 = sbr.rel (%p118) target = $region16
      $region15: #{cnn_part3_forward.3} parent=11 // pred_region
        _
      $region16: #{cnn_part3_forward.3} parent=11 // pred_fallthru
        _
      // Predicated region
      $region17: #{cnn_part3_forward.3} parent=11 // pred_check
        %p121 = pneg %p77
      $region18: #{cnn_part3_forward.3} parent=11 // pred_check_branch
        %123 = sbr.rel (%p121) target = $region20
      $region19: #{cnn_part3_forward.3} parent=11 // pred_region
        _
      $region20: #{cnn_part3_forward.3} parent=11 // pred_fallthru
        _
    $region12: #{cnn_part3_forward.3} parent=5 // pred_fallthru
      _
    %p124 = scmp.lt.s32.totalorder %s9, 2
    // Predicated region
    $region21: #{cnn_part3_forward.3} parent=5 // pred_check
      %p125 = pneg %p124
    $region22: #{cnn_part3_forward.3} parent=5 // pred_check_branch
      %127 = sbr.rel (%p125) target = $region24
    $region23: #{cnn_part3_forward.3} parent=5 // pred_region
      // Predicated region
      $region25: #{cnn_part3_forward.3} parent=23 // pred_check
        %p128 = pneg %p29
      $region26: #{cnn_part3_forward.3} parent=23 // pred_check_branch
        %130 = sbr.rel (%p128) target = $region28
      $region27: #{cnn_part3_forward.3} parent=23 // pred_region
        %p131 = scmp.lt.s32.totalorder %s9, 1
        %s132 = scalar_select %p131, %s9, 1
        %s133 = smul.addr %s132, 16
        %s134 = smul.addr %s133, 8
        %s135 = scalar_lea.vmem %s0, %s134
      $region28: #{cnn_part3_forward.3} parent=23 // pred_fallthru
        _
    $region24: #{cnn_part3_forward.3} parent=5 // pred_fallthru
      _
    %p136 = scmp.le.s32.totalorder 1, %s9
    %p137 = scmp.lt.s32.totalorder %s9, 3
    %p138 = pnand %p136, %p137
    %p139 = pneg %p138
    // Predicated region
    $region29: #{cnn_part3_forward.3} parent=5 // pred_check
      _
    $region30: #{cnn_part3_forward.3} parent=5 // pred_check_branch
      %141 = sbr.rel (%p138) target = $region32
    $region31: #{cnn_part3_forward.3} parent=5 // pred_region
      %s142 = ssub.s32 %s9, 1
      %p143 = scmp.lt.s32.totalorder %s14, 1
      %s144 = scalar_select %p143, %s14, 1
      %s145 = smul.addr %s144, 16
      %s146 = smul.addr %s145, 8
      %s147 = scalar_lea.vmem %s0, %s146
      %p148 = pneg %p35
      %p149 = pneg %p32
      %p150 = pneg %p56
      %p151 = pneg %p53
      %p152 = pneg %p77
      %p153 = pneg %p74
      %p154 = pneg %p103
      %p155 = pneg %p100
      %p156 = scmp.lt.s32.totalorder %s14, 1
      %s157 = scalar_select %p156, %s14, 1
      %s158 = smul.addr %s157, 4
      %s159 = smul.addr %s158, 8
      %s160 = scalar_lea.vmem %s3, %s159
      %p161 = scmp.lt.s32.totalorder %s14, 1
      %s162 = scalar_select %p161, %s14, 1
      %s163 = smul.addr %s162, 16
      %s164 = smul.addr %s163, 8
      %s165 = scalar_lea.vmem %s0, %s164
      %p166 = scmp.lt.s32.totalorder %s14, 1
      %s167 = scalar_select %p166, %s14, 1
      %s168 = smul.addr %s167, 4
      %s169 = smul.addr %s168, 8
      %s170 = scalar_lea.vmem %s3, %s169
      %v171 = vld [vmem:[%s165] sm:$0xff]
      %v172 = vld [vmem:[%s165 + $0x8] sm:$0xff]
      %v173 = vld [vmem:[%s165 + $0x10] sm:$0xff]
      %v174 = vld [vmem:[%s165 + $0x18] sm:$0xff]
      %v175 = vld [vmem:[%s165 + $0x20] sm:$0xff]
      %v176 = vld [vmem:[%s165 + $0x28] sm:$0xff]
      %v177 = vld [vmem:[%s165 + $0x30] sm:$0xf]
      %v178 = vld [vmem:[%s165 + $0x38] sm:$0xf]
      %v179 = vld [vmem:[%s1] sm:$0xff]
      %v180 = vld [vmem:[%s1 + $0x8] sm:$0xff]
      %v181 = vld [vmem:[%s1 + $0x10] sm:$0xff]
      %v182 = vld [vmem:[%s1 + $0x18] sm:$0xff]
      %v183 = vld [vmem:[%s1 + $0x20] sm:$0xff]
      %v184 = vld [vmem:[%s1 + $0x28] sm:$0xff]
      %v185 = vld [vmem:[%s1 + $0x30] sm:$0xff]
      %v186 = vld [vmem:[%s1 + $0x38] sm:$0xff]
      %v187 = vld [vmem:[%s1 + $0x40] sm:$0xff]
      %v188 = vld [vmem:[%s1 + $0x48] sm:$0xff]
      %v189 = vld [vmem:[%s1 + $0x50] sm:$0xff]
      %v190 = vld [vmem:[%s1 + $0x58] sm:$0xff]
      %v191 = vld [vmem:[%s1 + $0x60] sm:$0xff]
      %v192 = vld [vmem:[%s1 + $0x68] sm:$0xff]
      %v193 = vld [vmem:[%s1 + $0x70] sm:$0xff]
      %v194 = vld [vmem:[%s1 + $0x78] sm:$0xff]
      %v195 = vld [vmem:[%s1 + $0x80] sm:$0xff]
      %v196 = vld [vmem:[%s1 + $0x88] sm:$0xff]
      %v197 = vld [vmem:[%s1 + $0x90] sm:$0xff]
      %v198 = vld [vmem:[%s1 + $0x98] sm:$0xff]
      %v199 = vld [vmem:[%s1 + $0xa0] sm:$0xff]
      %v200 = vld [vmem:[%s1 + $0xa8] sm:$0x3f]
      %s201 = scalar_lea.vmem %s165, 64
      %v202 = vld [vmem:[%s201] sm:$0xff]
      %v203 = vld [vmem:[%s201 + $0x8] sm:$0xff]
      %v204 = vld [vmem:[%s201 + $0x10] sm:$0xff]
      %v205 = vld [vmem:[%s201 + $0x18] sm:$0xff]
      %v206 = vld [vmem:[%s201 + $0x20] sm:$0xff]
      %v207 = vld [vmem:[%s201 + $0x28] sm:$0xff]
      %v208 = vld [vmem:[%s201 + $0x30] sm:$0xf]
      %v209 = vld [vmem:[%s201 + $0x38] sm:$0xf]
      %s210 = scalar_lea.vmem %s1, 176
      %v211 = vld [vmem:[%s210] sm:$0xff]
      %v212 = vld [vmem:[%s210 + $0x8] sm:$0xff]
      %v213 = vld [vmem:[%s210 + $0x10] sm:$0xff]
      %v214 = vld [vmem:[%s210 + $0x18] sm:$0xff]
      %v215 = vld [vmem:[%s210 + $0x20] sm:$0xff]
      %v216 = vld [vmem:[%s210 + $0x28] sm:$0xff]
      %v217 = vld [vmem:[%s210 + $0x30] sm:$0xff]
      %v218 = vld [vmem:[%s210 + $0x38] sm:$0xff]
      %v219 = vld [vmem:[%s210 + $0x40] sm:$0xff]
      %v220 = vld [vmem:[%s210 + $0x48] sm:$0xff]
      %v221 = vld [vmem:[%s210 + $0x50] sm:$0xff]
      %v222 = vld [vmem:[%s210 + $0x58] sm:$0xff]
      %v223 = vld [vmem:[%s210 + $0x60] sm:$0xff]
      %v224 = vld [vmem:[%s210 + $0x68] sm:$0xff]
      %v225 = vld [vmem:[%s210 + $0x70] sm:$0xff]
      %v226 = vld [vmem:[%s210 + $0x78] sm:$0xff]
      %v227 = vld [vmem:[%s210 + $0x80] sm:$0xff]
      %v228 = vld [vmem:[%s210 + $0x88] sm:$0xff]
      %v229 = vld [vmem:[%s210 + $0x90] sm:$0xff]
      %v230 = vld [vmem:[%s210 + $0x98] sm:$0xff]
      %v231 = vld [vmem:[%s210 + $0xa0] sm:$0xff]
      %v232 = vld [vmem:[%s210 + $0xa8] sm:$0x3f]
      %vm233 = vcmask 375808
      %v235 = vsel %vm233, %v203, 0
      %v238 = vsel %vm233, %v205, 0
      %v241 = vsel %vm233, %v207, 0
      %v244 = vsel %vm233, %v209, 0
      %vm246 = vcmask 1045504
      %v248 = vsel %vm246, %v232, 0
      %250 = vmatprep.subr.mxu0 0.0
      %251 = vmatpush1.msra.mxu0 %v226
      %252 = vmatprep.subr.mxu0 0.0
      %253 = vmatpush1.msra.mxu0 %v225
      %254 = vmatprep.subr.mxu0 0.0
      %255 = vmatpush1.msra.mxu0 %v224
      %256 = vmatprep.subr.mxu0 0.0
      %257 = vmatpush1.msra.mxu0 %v223
      %258 = vmatprep.subr.mxu0 0.0
      %259 = vmatpush1.msra.mxu0 %v222
      %260 = vmatprep.subr.mxu0 0.0
      %261 = vmatpush1.msra.mxu0 %v221
      %262 = vmatprep.subr.mxu0 0.0
      %263 = vmatpush1.msra.mxu0 %v220
      %264 = vmatprep.subr.mxu0 0.0
      %265 = vmatpush1.msra.mxu0 %v219
      %266 = vmatprep.subr.mxu0 0.0
      %267 = vmatpush1.msra.mxu0 %v218
      %268 = vmatprep.subr.mxu0 0.0
      %269 = vmatpush1.msra.mxu0 %v217
      %270 = vmatprep.subr.mxu0 0.0
      %271 = vmatpush1.msra.mxu0 %v216
      %272 = vmatprep.subr.mxu0 0.0
      %273 = vmatpush1.msra.mxu0 %v215
      %274 = vmatprep.subr.mxu0 0.0
      %275 = vmatpush1.msra.mxu0 %v214
      %276 = vmatprep.subr.mxu0 0.0
      %277 = vmatpush1.msra.mxu0 %v213
      %278 = vmatprep.subr.mxu0 0.0
      %279 = vmatpush1.msra.mxu0 %v212
      %280 = vmatprep.subr.mxu0 0.0
      %281 = vmatpush1.msra.mxu0 %v211
      %282 = vmatprep.subr.mxu0 0.0
      %283 = vmatpush2.msra.mxu0 0.0
      %284 = vmatprep.subr.mxu0 0.0
      %285 = vmatpush2.msra.mxu0 0.0
      %286 = vmatprep.subr.mxu0 0.0
      %287 = vmatpush2.msra.mxu0 0.0
      %288 = vmatprep.subr.mxu0 0.0
      %289 = vmatpush2.msra.mxu0 0.0
      %290 = vmatprep.subr.mxu0 0.0
      %291 = vmatpush2.msra.mxu0 0.0
      %292 = vmatprep.subr.mxu0 0.0
      %293 = vmatpush2.msra.mxu0 0.0
      %294 = vmatprep.subr.mxu0 0.0
      %295 = vmatpush2.msra.mxu0 0.0
      %296 = vmatprep.subr.mxu0 0.0
      %297 = vmatpush2.msra.mxu0 0.0
      %298 = vmatprep.subr.mxu0 0.0
      %299 = vmatpush2.msra.mxu0 0.0
      %300 = vmatprep.subr.mxu0 0.0
      %301 = vmatpush2.msra.mxu0 0.0
      %302 = vmatprep.subr.mxu0 0.0
      %303 = vmatpush2.msra.mxu0 %v248
      %304 = vmatprep.subr.mxu0 0.0
      %305 = vmatpush2.msra.mxu0 %v231
      %306 = vmatprep.subr.mxu0 0.0
      %307 = vmatpush2.msra.mxu0 %v230
      %308 = vmatprep.subr.mxu0 0.0
      %309 = vmatpush2.msra.mxu0 %v229
      %310 = vmatprep.subr.mxu0 0.0
      %311 = vmatpush2.msra.mxu0 %v228
      %312 = vmatprep.subr.mxu0 0.0
      %313 = vmatpush2.msra.mxu0 %v227
      %314 = vmatprep.mubr.f32.mxu0 %v235
      %315 = vmatmul.mubr.f32.gmra.mxu0 %v202
      %v316 = vpop.f32.mrf.mxu0
      %v317 = vadd.f32 0.0, %v316
      %v318 = vpop.f32.mrf.mxu0
      %319 = vmatprep.mubr.f32.mxu0 %v238
      %320 = vmatmul.mubr.f32.gmra.mxu0 %v204
      %v321 = vpop.f32.mrf.mxu0
      %v322 = vadd.f32 0.0, %v321
      %v323 = vpop.f32.mrf.mxu0
      %324 = vmatprep.mubr.f32.mxu0 %v241
      %325 = vmatmul.mubr.f32.gmra.mxu0 %v206
      %v326 = vpop.f32.mrf.mxu0
      %v327 = vadd.f32 0.0, %v326
      %v328 = vpop.f32.mrf.mxu0
      %329 = vmatprep.mubr.f32.mxu0 %v244
      %330 = vmatmul.mubr.f32.gmra.mxu0 %v208
      %v331 = vpop.f32.mrf.mxu0
      %v332 = vadd.f32 0.0, %v331
      %v333 = vpop.f32.mrf.mxu0
      %334 = vdwg.mxu0
      %v336 = vsel %vm233, %v172, 0
      %v339 = vsel %vm233, %v174, 0
      %v342 = vsel %vm233, %v176, 0
      %v345 = vsel %vm233, %v178, 0
      %v348 = vsel %vm246, %v200, 0
      %350 = vmatprep.subr.mxu0 0.0
      %351 = vmatpush1.msra.mxu0 %v194
      %352 = vmatprep.subr.mxu0 0.0
      %353 = vmatpush1.msra.mxu0 %v193
      %354 = vmatprep.subr.mxu0 0.0
      %355 = vmatpush1.msra.mxu0 %v192
      %356 = vmatprep.subr.mxu0 0.0
      %357 = vmatpush1.msra.mxu0 %v191
      %358 = vmatprep.subr.mxu0 0.0
      %359 = vmatpush1.msra.mxu0 %v190
      %360 = vmatprep.subr.mxu0 0.0
      %361 = vmatpush1.msra.mxu0 %v189
      %362 = vmatprep.subr.mxu0 0.0
      %363 = vmatpush1.msra.mxu0 %v188
      %364 = vmatprep.subr.mxu0 0.0
      %365 = vmatpush1.msra.mxu0 %v187
      %366 = vmatprep.subr.mxu0 0.0
      %367 = vmatpush1.msra.mxu0 %v186
      %368 = vmatprep.subr.mxu0 0.0
      %369 = vmatpush1.msra.mxu0 %v185
      %370 = vmatprep.subr.mxu0 0.0
      %371 = vmatpush1.msra.mxu0 %v184
      %372 = vmatprep.subr.mxu0 0.0
      %373 = vmatpush1.msra.mxu0 %v183
      %374 = vmatprep.subr.mxu0 0.0
      %375 = vmatpush1.msra.mxu0 %v182
      %376 = vmatprep.subr.mxu0 0.0
      %377 = vmatpush1.msra.mxu0 %v181
      %378 = vmatprep.subr.mxu0 0.0
      %379 = vmatpush1.msra.mxu0 %v180
      %380 = vmatprep.subr.mxu0 0.0
      %381 = vmatpush1.msra.mxu0 %v179
      %382 = vmatprep.subr.mxu0 0.0
      %383 = vmatpush2.msra.mxu0 0.0
      %384 = vmatprep.subr.mxu0 0.0
      %385 = vmatpush2.msra.mxu0 0.0
      %386 = vmatprep.subr.mxu0 0.0
      %387 = vmatpush2.msra.mxu0 0.0
      %388 = vmatprep.subr.mxu0 0.0
      %389 = vmatpush2.msra.mxu0 0.0
      %390 = vmatprep.subr.mxu0 0.0
      %391 = vmatpush2.msra.mxu0 0.0
      %392 = vmatprep.subr.mxu0 0.0
      %393 = vmatpush2.msra.mxu0 0.0
      %394 = vmatprep.subr.mxu0 0.0
      %395 = vmatpush2.msra.mxu0 0.0
      %396 = vmatprep.subr.mxu0 0.0
      %397 = vmatpush2.msra.mxu0 0.0
      %398 = vmatprep.subr.mxu0 0.0
      %399 = vmatpush2.msra.mxu0 0.0
      %400 = vmatprep.subr.mxu0 0.0
      %401 = vmatpush2.msra.mxu0 0.0
      %402 = vmatprep.subr.mxu0 0.0
      %403 = vmatpush2.msra.mxu0 %v348
      %404 = vmatprep.subr.mxu0 0.0
      %405 = vmatpush2.msra.mxu0 %v199
      %406 = vmatprep.subr.mxu0 0.0
      %407 = vmatpush2.msra.mxu0 %v198
      %408 = vmatprep.subr.mxu0 0.0
      %409 = vmatpush2.msra.mxu0 %v197
      %410 = vmatprep.subr.mxu0 0.0
      %411 = vmatpush2.msra.mxu0 %v196
      %412 = vmatprep.subr.mxu0 0.0
      %413 = vmatpush2.msra.mxu0 %v195
      %414 = vmatprep.mubr.f32.mxu0 %v336
      %415 = vmatmul.mubr.f32.gmra.mxu0 %v171
      %v416 = vpop.f32.mrf.mxu0
      %v417 = vadd.f32 %v317, %v416
      %v418 = vpop.f32.mrf.mxu0
      %419 = vmatprep.mubr.f32.mxu0 %v339
      %420 = vmatmul.mubr.f32.gmra.mxu0 %v173
      %v421 = vpop.f32.mrf.mxu0
      %v422 = vadd.f32 %v322, %v421
      %v423 = vpop.f32.mrf.mxu0
      %424 = vmatprep.mubr.f32.mxu0 %v342
      %425 = vmatmul.mubr.f32.gmra.mxu0 %v175
      %v426 = vpop.f32.mrf.mxu0
      %v427 = vadd.f32 %v327, %v426
      %v428 = vpop.f32.mrf.mxu0
      %429 = vmatprep.mubr.f32.mxu0 %v345
      %430 = vmatmul.mubr.f32.gmra.mxu0 %v177
      %v431 = vpop.f32.mrf.mxu0
      %v432 = vadd.f32 %v332, %v431
      %v433 = vpop.f32.mrf.mxu0
      %434 = vdwg.mxu0
      %v435 = vld [vmem:[%s165] sm:$0xfe]
      %v436 = vld [vmem:[%s165 + $0x8] sm:$0xfe]
      %v437 = vld [vmem:[%s165 + $0x30] sm:$0x1f]
      %v438 = vld [vmem:[%s165 + $0x38] sm:$0x1f]
      %s439 = scalar_lea.vmem %s1, 352
      %v440 = vld [vmem:[%s439] sm:$0xff]
      %v441 = vld [vmem:[%s439 + $0x8] sm:$0xff]
      %v442 = vld [vmem:[%s439 + $0x10] sm:$0xff]
      %v443 = vld [vmem:[%s439 + $0x18] sm:$0xff]
      %v444 = vld [vmem:[%s439 + $0x20] sm:$0xff]
      %v445 = vld [vmem:[%s439 + $0x28] sm:$0xff]
      %v446 = vld [vmem:[%s439 + $0x30] sm:$0xff]
      %v447 = vld [vmem:[%s439 + $0x38] sm:$0xff]
      %v448 = vld [vmem:[%s439 + $0x40] sm:$0xff]
      %v449 = vld [vmem:[%s439 + $0x48] sm:$0xff]
      %v450 = vld [vmem:[%s439 + $0x50] sm:$0xff]
      %v451 = vld [vmem:[%s439 + $0x58] sm:$0xff]
      %v452 = vld [vmem:[%s439 + $0x60] sm:$0xff]
      %v453 = vld [vmem:[%s439 + $0x68] sm:$0xff]
      %v454 = vld [vmem:[%s439 + $0x70] sm:$0xff]
      %v455 = vld [vmem:[%s439 + $0x78] sm:$0xff]
      %v456 = vld [vmem:[%s439 + $0x80] sm:$0xff]
      %v457 = vld [vmem:[%s439 + $0x88] sm:$0xff]
      %v458 = vld [vmem:[%s439 + $0x90] sm:$0xff]
      %v459 = vld [vmem:[%s439 + $0x98] sm:$0xff]
      %v460 = vld [vmem:[%s439 + $0xa0] sm:$0xff]
      %v461 = vld [vmem:[%s439 + $0xa8] sm:$0x3f]
      %vm468 = vcmask 1046528
      %v469 = vrot.slane %v435, 1
      %v470 = vrot.slane %v173, 1
      %v471 = vsel %vm468, %v469, %v470
      %v472 = vrot.slane %v436, 1
      %v473 = vrot.slane %v174, 1
      %v474 = vsel %vm468, %v472, %v473
      %v475 = vrot.slane %v175, 1
      %v476 = vsel %vm468, %v470, %v475
      %v477 = vrot.slane %v176, 1
      %v478 = vsel %vm468, %v473, %v477
      %v479 = vrot.slane %v437, 1
      %v480 = vsel %vm468, %v475, %v479
      %v481 = vrot.slane %v438, 1
      %v482 = vsel %vm468, %v477, %v481
      %v487 = vsel %vm233, %v474, 0
      %v489 = vsel %vm233, %v478, 0
      %v491 = vsel %vm233, %v482, 0
      %v493 = vsel %vm233, %v481, 0
      %v496 = vsel %vm246, %v461, 0
      %498 = vmatprep.subr.mxu0 0.0
      %499 = vmatpush1.msra.mxu0 %v455
      %500 = vmatprep.subr.mxu0 0.0
      %501 = vmatpush1.msra.mxu0 %v454
      %502 = vmatprep.subr.mxu0 0.0
      %503 = vmatpush1.msra.mxu0 %v453
      %504 = vmatprep.subr.mxu0 0.0
      %505 = vmatpush1.msra.mxu0 %v452
      %506 = vmatprep.subr.mxu0 0.0
      %507 = vmatpush1.msra.mxu0 %v451
      %508 = vmatprep.subr.mxu0 0.0
      %509 = vmatpush1.msra.mxu0 %v450
      %510 = vmatprep.subr.mxu0 0.0
      %511 = vmatpush1.msra.mxu0 %v449
      %512 = vmatprep.subr.mxu0 0.0
      %513 = vmatpush1.msra.mxu0 %v448
      %514 = vmatprep.subr.mxu0 0.0
      %515 = vmatpush1.msra.mxu0 %v447
      %516 = vmatprep.subr.mxu0 0.0
      %517 = vmatpush1.msra.mxu0 %v446
      %518 = vmatprep.subr.mxu0 0.0
      %519 = vmatpush1.msra.mxu0 %v445
      %520 = vmatprep.subr.mxu0 0.0
      %521 = vmatpush1.msra.mxu0 %v444
      %522 = vmatprep.subr.mxu0 0.0
      %523 = vmatpush1.msra.mxu0 %v443
      %524 = vmatprep.subr.mxu0 0.0
      %525 = vmatpush1.msra.mxu0 %v442
      %526 = vmatprep.subr.mxu0 0.0
      %527 = vmatpush1.msra.mxu0 %v441
      %528 = vmatprep.subr.mxu0 0.0
      %529 = vmatpush1.msra.mxu0 %v440
      %530 = vmatprep.subr.mxu0 0.0
      %531 = vmatpush2.msra.mxu0 0.0
      %532 = vmatprep.subr.mxu0 0.0
      %533 = vmatpush2.msra.mxu0 0.0
      %534 = vmatprep.subr.mxu0 0.0
      %535 = vmatpush2.msra.mxu0 0.0
      %536 = vmatprep.subr.mxu0 0.0
      %537 = vmatpush2.msra.mxu0 0.0
      %538 = vmatprep.subr.mxu0 0.0
      %539 = vmatpush2.msra.mxu0 0.0
      %540 = vmatprep.subr.mxu0 0.0
      %541 = vmatpush2.msra.mxu0 0.0
      %542 = vmatprep.subr.mxu0 0.0
      %543 = vmatpush2.msra.mxu0 0.0
      %544 = vmatprep.subr.mxu0 0.0
      %545 = vmatpush2.msra.mxu0 0.0
      %546 = vmatprep.subr.mxu0 0.0
      %547 = vmatpush2.msra.mxu0 0.0
      %548 = vmatprep.subr.mxu0 0.0
      %549 = vmatpush2.msra.mxu0 0.0
      %550 = vmatprep.subr.mxu0 0.0
      %551 = vmatpush2.msra.mxu0 %v496
      %552 = vmatprep.subr.mxu0 0.0
      %553 = vmatpush2.msra.mxu0 %v460
      %554 = vmatprep.subr.mxu0 0.0
      %555 = vmatpush2.msra.mxu0 %v459
      %556 = vmatprep.subr.mxu0 0.0
      %557 = vmatpush2.msra.mxu0 %v458
      %558 = vmatprep.subr.mxu0 0.0
      %559 = vmatpush2.msra.mxu0 %v457
      %560 = vmatprep.subr.mxu0 0.0
      %561 = vmatpush2.msra.mxu0 %v456
      %562 = vmatprep.mubr.f32.mxu0 %v487
      %563 = vmatmul.mubr.f32.gmra.mxu0 %v471
      %v564 = vpop.f32.mrf.mxu0
      %v565 = vadd.f32 0.0, %v564
      %v566 = vpop.f32.mrf.mxu0
      %567 = vmatprep.mubr.f32.mxu0 %v489
      %568 = vmatmul.mubr.f32.gmra.mxu0 %v476
      %v569 = vpop.f32.mrf.mxu0
      %v570 = vadd.f32 0.0, %v569
      %v571 = vpop.f32.mrf.mxu0
      %572 = vmatprep.mubr.f32.mxu0 %v491
      %573 = vmatmul.mubr.f32.gmra.mxu0 %v480
      %v574 = vpop.f32.mrf.mxu0
      %v575 = vadd.f32 0.0, %v574
      %v576 = vpop.f32.mrf.mxu0
      %577 = vmatprep.mubr.f32.mxu0 %v493
      %578 = vmatmul.mubr.f32.gmra.mxu0 %v479
      %v579 = vpop.f32.mrf.mxu0
      %v580 = vadd.f32 0.0, %v579
      %v581 = vpop.f32.mrf.mxu0
      %582 = vdwg.mxu0
      %v583 = vadd.f32 %v417, %v565
      %v584 = vadd.f32 %v422, %v570
      %v585 = vadd.f32 %v427, %v575
      %v586 = vadd.f32 %v432, %v580
      %s587 = scalar_lea.vmem %s1, 528
      %v588 = vld [vmem:[%s587] sm:$0xff]
      %v589 = vld [vmem:[%s587 + $0x8] sm:$0xff]
      %v590 = vld [vmem:[%s587 + $0x10] sm:$0xff]
      %v591 = vld [vmem:[%s587 + $0x18] sm:$0xff]
      %v592 = vld [vmem:[%s587 + $0x20] sm:$0xff]
      %v593 = vld [vmem:[%s587 + $0x28] sm:$0xff]
      %v594 = vld [vmem:[%s587 + $0x30] sm:$0xff]
      %v595 = vld [vmem:[%s587 + $0x38] sm:$0xff]
      %v596 = vld [vmem:[%s587 + $0x40] sm:$0xff]
      %v597 = vld [vmem:[%s587 + $0x48] sm:$0xff]
      %v598 = vld [vmem:[%s587 + $0x50] sm:$0xff]
      %v599 = vld [vmem:[%s587 + $0x58] sm:$0xff]
      %v600 = vld [vmem:[%s587 + $0x60] sm:$0xff]
      %v601 = vld [vmem:[%s587 + $0x68] sm:$0xff]
      %v602 = vld [vmem:[%s587 + $0x70] sm:$0xff]
      %v603 = vld [vmem:[%s587 + $0x78] sm:$0xff]
      %v604 = vld [vmem:[%s587 + $0x80] sm:$0xff]
      %v605 = vld [vmem:[%s587 + $0x88] sm:$0xff]
      %v606 = vld [vmem:[%s587 + $0x90] sm:$0xff]
      %v607 = vld [vmem:[%s587 + $0x98] sm:$0xff]
      %v608 = vld [vmem:[%s587 + $0xa0] sm:$0xff]
      %v609 = vld [vmem:[%s587 + $0xa8] sm:$0x3f]
      %s610 = scalar_lea.vmem %s1, 704
      %v611 = vld [vmem:[%s610] sm:$0xff]
      %v612 = vld [vmem:[%s610 + $0x8] sm:$0xff]
      %v613 = vld [vmem:[%s610 + $0x10] sm:$0xff]
      %v614 = vld [vmem:[%s610 + $0x18] sm:$0xff]
      %v615 = vld [vmem:[%s610 + $0x20] sm:$0xff]
      %v616 = vld [vmem:[%s610 + $0x28] sm:$0xff]
      %v617 = vld [vmem:[%s610 + $0x30] sm:$0xff]
      %v618 = vld [vmem:[%s610 + $0x38] sm:$0xff]
      %v619 = vld [vmem:[%s610 + $0x40] sm:$0xff]
      %v620 = vld [vmem:[%s610 + $0x48] sm:$0xff]
      %v621 = vld [vmem:[%s610 + $0x50] sm:$0xff]
      %v622 = vld [vmem:[%s610 + $0x58] sm:$0xff]
      %v623 = vld [vmem:[%s610 + $0x60] sm:$0xff]
      %v624 = vld [vmem:[%s610 + $0x68] sm:$0xff]
      %v625 = vld [vmem:[%s610 + $0x70] sm:$0xff]
      %v626 = vld [vmem:[%s610 + $0x78] sm:$0xff]
      %v627 = vld [vmem:[%s610 + $0x80] sm:$0xff]
      %v628 = vld [vmem:[%s610 + $0x88] sm:$0xff]
      %v629 = vld [vmem:[%s610 + $0x90] sm:$0xff]
      %v630 = vld [vmem:[%s610 + $0x98] sm:$0xff]
      %v631 = vld [vmem:[%s610 + $0xa0] sm:$0xff]
      %v632 = vld [vmem:[%s610 + $0xa8] sm:$0x3f]
      %v634 = vsel %vm246, %v632, 0
      %636 = vmatprep.subr.mxu0 0.0
      %637 = vmatpush1.msra.mxu0 %v626
      %638 = vmatprep.subr.mxu0 0.0
      %639 = vmatpush1.msra.mxu0 %v625
      %640 = vmatprep.subr.mxu0 0.0
      %641 = vmatpush1.msra.mxu0 %v624
      %642 = vmatprep.subr.mxu0 0.0
      %643 = vmatpush1.msra.mxu0 %v623
      %644 = vmatprep.subr.mxu0 0.0
      %645 = vmatpush1.msra.mxu0 %v622
      %646 = vmatprep.subr.mxu0 0.0
      %647 = vmatpush1.msra.mxu0 %v621
      %648 = vmatprep.subr.mxu0 0.0
      %649 = vmatpush1.msra.mxu0 %v620
      %650 = vmatprep.subr.mxu0 0.0
      %651 = vmatpush1.msra.mxu0 %v619
      %652 = vmatprep.subr.mxu0 0.0
      %653 = vmatpush1.msra.mxu0 %v618
      %654 = vmatprep.subr.mxu0 0.0
      %655 = vmatpush1.msra.mxu0 %v617
      %656 = vmatprep.subr.mxu0 0.0
      %657 = vmatpush1.msra.mxu0 %v616
      %658 = vmatprep.subr.mxu0 0.0
      %659 = vmatpush1.msra.mxu0 %v615
      %660 = vmatprep.subr.mxu0 0.0
      %661 = vmatpush1.msra.mxu0 %v614
      %662 = vmatprep.subr.mxu0 0.0
      %663 = vmatpush1.msra.mxu0 %v613
      %664 = vmatprep.subr.mxu0 0.0
      %665 = vmatpush1.msra.mxu0 %v612
      %666 = vmatprep.subr.mxu0 0.0
      %667 = vmatpush1.msra.mxu0 %v611
      %668 = vmatprep.subr.mxu0 0.0
      %669 = vmatpush2.msra.mxu0 0.0
      %670 = vmatprep.subr.mxu0 0.0
      %671 = vmatpush2.msra.mxu0 0.0
      %672 = vmatprep.subr.mxu0 0.0
      %673 = vmatpush2.msra.mxu0 0.0
      %674 = vmatprep.subr.mxu0 0.0
      %675 = vmatpush2.msra.mxu0 0.0
      %676 = vmatprep.subr.mxu0 0.0
      %677 = vmatpush2.msra.mxu0 0.0
      %678 = vmatprep.subr.mxu0 0.0
      %679 = vmatpush2.msra.mxu0 0.0
      %680 = vmatprep.subr.mxu0 0.0
      %681 = vmatpush2.msra.mxu0 0.0
      %682 = vmatprep.subr.mxu0 0.0
      %683 = vmatpush2.msra.mxu0 0.0
      %684 = vmatprep.subr.mxu0 0.0
      %685 = vmatpush2.msra.mxu0 0.0
      %686 = vmatprep.subr.mxu0 0.0
      %687 = vmatpush2.msra.mxu0 0.0
      %688 = vmatprep.subr.mxu0 0.0
      %689 = vmatpush2.msra.mxu0 %v634
      %690 = vmatprep.subr.mxu0 0.0
      %691 = vmatpush2.msra.mxu0 %v631
      %692 = vmatprep.subr.mxu0 0.0
      %693 = vmatpush2.msra.mxu0 %v630
      %694 = vmatprep.subr.mxu0 0.0
      %695 = vmatpush2.msra.mxu0 %v629
      %696 = vmatprep.subr.mxu0 0.0
      %697 = vmatpush2.msra.mxu0 %v628
      %698 = vmatprep.subr.mxu0 0.0
      %699 = vmatpush2.msra.mxu0 %v627
      %700 = vmatprep.mubr.f32.mxu0 %v235
      %701 = vmatmul.mubr.f32.gmra.mxu0 %v202
      %v702 = vpop.f32.mrf.mxu0
      %v703 = vadd.f32 0.0, %v702
      %v704 = vpop.f32.mrf.mxu0
      %705 = vmatprep.mubr.f32.mxu0 %v238
      %706 = vmatmul.mubr.f32.gmra.mxu0 %v204
      %v707 = vpop.f32.mrf.mxu0
      %v708 = vadd.f32 0.0, %v707
      %v709 = vpop.f32.mrf.mxu0
      %710 = vmatprep.mubr.f32.mxu0 %v241
      %711 = vmatmul.mubr.f32.gmra.mxu0 %v206
      %v712 = vpop.f32.mrf.mxu0
      %v713 = vadd.f32 0.0, %v712
      %v714 = vpop.f32.mrf.mxu0
      %715 = vmatprep.mubr.f32.mxu0 %v244
      %716 = vmatmul.mubr.f32.gmra.mxu0 %v208
      %v717 = vpop.f32.mrf.mxu0
      %v718 = vadd.f32 0.0, %v717
      %v719 = vpop.f32.mrf.mxu0
      %720 = vdwg.mxu0
      %v722 = vsel %vm246, %v609, 0
      %724 = vmatprep.subr.mxu0 0.0
      %725 = vmatpush1.msra.mxu0 %v603
      %726 = vmatprep.subr.mxu0 0.0
      %727 = vmatpush1.msra.mxu0 %v602
      %728 = vmatprep.subr.mxu0 0.0
      %729 = vmatpush1.msra.mxu0 %v601
      %730 = vmatprep.subr.mxu0 0.0
      %731 = vmatpush1.msra.mxu0 %v600
      %732 = vmatprep.subr.mxu0 0.0
      %733 = vmatpush1.msra.mxu0 %v599
      %734 = vmatprep.subr.mxu0 0.0
      %735 = vmatpush1.msra.mxu0 %v598
      %736 = vmatprep.subr.mxu0 0.0
      %737 = vmatpush1.msra.mxu0 %v597
      %738 = vmatprep.subr.mxu0 0.0
      %739 = vmatpush1.msra.mxu0 %v596
      %740 = vmatprep.subr.mxu0 0.0
      %741 = vmatpush1.msra.mxu0 %v595
      %742 = vmatprep.subr.mxu0 0.0
      %743 = vmatpush1.msra.mxu0 %v594
      %744 = vmatprep.subr.mxu0 0.0
      %745 = vmatpush1.msra.mxu0 %v593
      %746 = vmatprep.subr.mxu0 0.0
      %747 = vmatpush1.msra.mxu0 %v592
      %748 = vmatprep.subr.mxu0 0.0
      %749 = vmatpush1.msra.mxu0 %v591
      %750 = vmatprep.subr.mxu0 0.0
      %751 = vmatpush1.msra.mxu0 %v590
      %752 = vmatprep.subr.mxu0 0.0
      %753 = vmatpush1.msra.mxu0 %v589
      %754 = vmatprep.subr.mxu0 0.0
      %755 = vmatpush1.msra.mxu0 %v588
      %756 = vmatprep.subr.mxu0 0.0
      %757 = vmatpush2.msra.mxu0 0.0
      %758 = vmatprep.subr.mxu0 0.0
      %759 = vmatpush2.msra.mxu0 0.0
      %760 = vmatprep.subr.mxu0 0.0
      %761 = vmatpush2.msra.mxu0 0.0
      %762 = vmatprep.subr.mxu0 0.0
      %763 = vmatpush2.msra.mxu0 0.0
      %764 = vmatprep.subr.mxu0 0.0
      %765 = vmatpush2.msra.mxu0 0.0
      %766 = vmatprep.subr.mxu0 0.0
      %767 = vmatpush2.msra.mxu0 0.0
      %768 = vmatprep.subr.mxu0 0.0
      %769 = vmatpush2.msra.mxu0 0.0
      %770 = vmatprep.subr.mxu0 0.0
      %771 = vmatpush2.msra.mxu0 0.0
      %772 = vmatprep.subr.mxu0 0.0
      %773 = vmatpush2.msra.mxu0 0.0
      %774 = vmatprep.subr.mxu0 0.0
      %775 = vmatpush2.msra.mxu0 0.0
      %776 = vmatprep.subr.mxu0 0.0
      %777 = vmatpush2.msra.mxu0 %v722
      %778 = vmatprep.subr.mxu0 0.0
      %779 = vmatpush2.msra.mxu0 %v608
      %780 = vmatprep.subr.mxu0 0.0
      %781 = vmatpush2.msra.mxu0 %v607
      %782 = vmatprep.subr.mxu0 0.0
      %783 = vmatpush2.msra.mxu0 %v606
      %784 = vmatprep.subr.mxu0 0.0
      %785 = vmatpush2.msra.mxu0 %v605
      %786 = vmatprep.subr.mxu0 0.0
      %787 = vmatpush2.msra.mxu0 %v604
      %788 = vmatprep.mubr.f32.mxu0 %v336
      %789 = vmatmul.mubr.f32.gmra.mxu0 %v171
      %v790 = vpop.f32.mrf.mxu0
      %v791 = vadd.f32 %v703, %v790
      %v792 = vpop.f32.mrf.mxu0
      %793 = vmatprep.mubr.f32.mxu0 %v339
      %794 = vmatmul.mubr.f32.gmra.mxu0 %v173
      %v795 = vpop.f32.mrf.mxu0
      %v796 = vadd.f32 %v708, %v795
      %v797 = vpop.f32.mrf.mxu0
      %798 = vmatprep.mubr.f32.mxu0 %v342
      %799 = vmatmul.mubr.f32.gmra.mxu0 %v175
      %v800 = vpop.f32.mrf.mxu0
      %v801 = vadd.f32 %v713, %v800
      %v802 = vpop.f32.mrf.mxu0
      %803 = vmatprep.mubr.f32.mxu0 %v345
      %804 = vmatmul.mubr.f32.gmra.mxu0 %v177
      %v805 = vpop.f32.mrf.mxu0
      %v806 = vadd.f32 %v718, %v805
      %v807 = vpop.f32.mrf.mxu0
      %808 = vdwg.mxu0
      %s809 = scalar_lea.vmem %s1, 880
      %v810 = vld [vmem:[%s809] sm:$0xff]
      %v811 = vld [vmem:[%s809 + $0x8] sm:$0xff]
      %v812 = vld [vmem:[%s809 + $0x10] sm:$0xff]
      %v813 = vld [vmem:[%s809 + $0x18] sm:$0xff]
      %v814 = vld [vmem:[%s809 + $0x20] sm:$0xff]
      %v815 = vld [vmem:[%s809 + $0x28] sm:$0xff]
      %v816 = vld [vmem:[%s809 + $0x30] sm:$0xff]
      %v817 = vld [vmem:[%s809 + $0x38] sm:$0xff]
      %v818 = vld [vmem:[%s809 + $0x40] sm:$0xff]
      %v819 = vld [vmem:[%s809 + $0x48] sm:$0xff]
      %v820 = vld [vmem:[%s809 + $0x50] sm:$0xff]
      %v821 = vld [vmem:[%s809 + $0x58] sm:$0xff]
      %v822 = vld [vmem:[%s809 + $0x60] sm:$0xff]
      %v823 = vld [vmem:[%s809 + $0x68] sm:$0xff]
      %v824 = vld [vmem:[%s809 + $0x70] sm:$0xff]
      %v825 = vld [vmem:[%s809 + $0x78] sm:$0xff]
      %v826 = vld [vmem:[%s809 + $0x80] sm:$0xff]
      %v827 = vld [vmem:[%s809 + $0x88] sm:$0xff]
      %v828 = vld [vmem:[%s809 + $0x90] sm:$0xff]
      %v829 = vld [vmem:[%s809 + $0x98] sm:$0xff]
      %v830 = vld [vmem:[%s809 + $0xa0] sm:$0xff]
      %v831 = vld [vmem:[%s809 + $0xa8] sm:$0x3f]
      %v833 = vsel %vm246, %v831, 0
      %835 = vmatprep.subr.mxu0 0.0
      %836 = vmatpush1.msra.mxu0 %v825
      %837 = vmatprep.subr.mxu0 0.0
      %838 = vmatpush1.msra.mxu0 %v824
      %839 = vmatprep.subr.mxu0 0.0
      %840 = vmatpush1.msra.mxu0 %v823
      %841 = vmatprep.subr.mxu0 0.0
      %842 = vmatpush1.msra.mxu0 %v822
      %843 = vmatprep.subr.mxu0 0.0
      %844 = vmatpush1.msra.mxu0 %v821
      %845 = vmatprep.subr.mxu0 0.0
      %846 = vmatpush1.msra.mxu0 %v820
      %847 = vmatprep.subr.mxu0 0.0
      %848 = vmatpush1.msra.mxu0 %v819
      %849 = vmatprep.subr.mxu0 0.0
      %850 = vmatpush1.msra.mxu0 %v818
      %851 = vmatprep.subr.mxu0 0.0
      %852 = vmatpush1.msra.mxu0 %v817
      %853 = vmatprep.subr.mxu0 0.0
      %854 = vmatpush1.msra.mxu0 %v816
      %855 = vmatprep.subr.mxu0 0.0
      %856 = vmatpush1.msra.mxu0 %v815
      %857 = vmatprep.subr.mxu0 0.0
      %858 = vmatpush1.msra.mxu0 %v814
      %859 = vmatprep.subr.mxu0 0.0
      %860 = vmatpush1.msra.mxu0 %v813
      %861 = vmatprep.subr.mxu0 0.0
      %862 = vmatpush1.msra.mxu0 %v812
      %863 = vmatprep.subr.mxu0 0.0
      %864 = vmatpush1.msra.mxu0 %v811
      %865 = vmatprep.subr.mxu0 0.0
      %866 = vmatpush1.msra.mxu0 %v810
      %867 = vmatprep.subr.mxu0 0.0
      %868 = vmatpush2.msra.mxu0 0.0
      %869 = vmatprep.subr.mxu0 0.0
      %870 = vmatpush2.msra.mxu0 0.0
      %871 = vmatprep.subr.mxu0 0.0
      %872 = vmatpush2.msra.mxu0 0.0
      %873 = vmatprep.subr.mxu0 0.0
      %874 = vmatpush2.msra.mxu0 0.0
      %875 = vmatprep.subr.mxu0 0.0
      %876 = vmatpush2.msra.mxu0 0.0
      %877 = vmatprep.subr.mxu0 0.0
      %878 = vmatpush2.msra.mxu0 0.0
      %879 = vmatprep.subr.mxu0 0.0
      %880 = vmatpush2.msra.mxu0 0.0
      %881 = vmatprep.subr.mxu0 0.0
      %882 = vmatpush2.msra.mxu0 0.0
      %883 = vmatprep.subr.mxu0 0.0
      %884 = vmatpush2.msra.mxu0 0.0
      %885 = vmatprep.subr.mxu0 0.0
      %886 = vmatpush2.msra.mxu0 0.0
      %887 = vmatprep.subr.mxu0 0.0
      %888 = vmatpush2.msra.mxu0 %v833
      %889 = vmatprep.subr.mxu0 0.0
      %890 = vmatpush2.msra.mxu0 %v830
      %891 = vmatprep.subr.mxu0 0.0
      %892 = vmatpush2.msra.mxu0 %v829
      %893 = vmatprep.subr.mxu0 0.0
      %894 = vmatpush2.msra.mxu0 %v828
      %895 = vmatprep.subr.mxu0 0.0
      %896 = vmatpush2.msra.mxu0 %v827
      %897 = vmatprep.subr.mxu0 0.0
      %898 = vmatpush2.msra.mxu0 %v826
      %899 = vmatprep.mubr.f32.mxu0 %v487
      %900 = vmatmul.mubr.f32.gmra.mxu0 %v471
      %v901 = vpop.f32.mrf.mxu0
      %v902 = vadd.f32 0.0, %v901
      %v903 = vpop.f32.mrf.mxu0
      %904 = vmatprep.mubr.f32.mxu0 %v489
      %905 = vmatmul.mubr.f32.gmra.mxu0 %v476
      %v906 = vpop.f32.mrf.mxu0
      %v907 = vadd.f32 0.0, %v906
      %v908 = vpop.f32.mrf.mxu0
      %909 = vmatprep.mubr.f32.mxu0 %v491
      %910 = vmatmul.mubr.f32.gmra.mxu0 %v480
      %v911 = vpop.f32.mrf.mxu0
      %v912 = vadd.f32 0.0, %v911
      %v913 = vpop.f32.mrf.mxu0
      %914 = vmatprep.mubr.f32.mxu0 %v493
      %915 = vmatmul.mubr.f32.gmra.mxu0 %v479
      %v916 = vpop.f32.mrf.mxu0
      %v917 = vadd.f32 0.0, %v916
      %v918 = vpop.f32.mrf.mxu0
      %919 = vdwg.mxu0
      %v920 = vadd.f32 %v791, %v902
      %v921 = vadd.f32 %v796, %v907
      %v922 = vadd.f32 %v801, %v912
      %v923 = vadd.f32 %v806, %v917
      %v924 = vmax.f32 %v583, %v920
      %v925 = vmax.f32 %v584, %v921
      %v926 = vmax.f32 %v585, %v922
      %v927 = vmax.f32 %v586, %v923
      %928 = vmatprep.subr.mxu0 0.0
      %929 = vmatpush1.msra.mxu0 %v226
      %930 = vmatprep.subr.mxu0 0.0
      %931 = vmatpush1.msra.mxu0 %v225
      %932 = vmatprep.subr.mxu0 0.0
      %933 = vmatpush1.msra.mxu0 %v224
      %934 = vmatprep.subr.mxu0 0.0
      %935 = vmatpush1.msra.mxu0 %v223
      %936 = vmatprep.subr.mxu0 0.0
      %937 = vmatpush1.msra.mxu0 %v222
      %938 = vmatprep.subr.mxu0 0.0
      %939 = vmatpush1.msra.mxu0 %v221
      %940 = vmatprep.subr.mxu0 0.0
      %941 = vmatpush1.msra.mxu0 %v220
      %942 = vmatprep.subr.mxu0 0.0
      %943 = vmatpush1.msra.mxu0 %v219
      %944 = vmatprep.subr.mxu0 0.0
      %945 = vmatpush1.msra.mxu0 %v218
      %946 = vmatprep.subr.mxu0 0.0
      %947 = vmatpush1.msra.mxu0 %v217
      %948 = vmatprep.subr.mxu0 0.0
      %949 = vmatpush1.msra.mxu0 %v216
      %950 = vmatprep.subr.mxu0 0.0
      %951 = vmatpush1.msra.mxu0 %v215
      %952 = vmatprep.subr.mxu0 0.0
      %953 = vmatpush1.msra.mxu0 %v214
      %954 = vmatprep.subr.mxu0 0.0
      %955 = vmatpush1.msra.mxu0 %v213
      %956 = vmatprep.subr.mxu0 0.0
      %957 = vmatpush1.msra.mxu0 %v212
      %958 = vmatprep.subr.mxu0 0.0
      %959 = vmatpush1.msra.mxu0 %v211
      %960 = vmatprep.subr.mxu0 0.0
      %961 = vmatpush2.msra.mxu0 0.0
      %962 = vmatprep.subr.mxu0 0.0
      %963 = vmatpush2.msra.mxu0 0.0
      %964 = vmatprep.subr.mxu0 0.0
      %965 = vmatpush2.msra.mxu0 0.0
      %966 = vmatprep.subr.mxu0 0.0
      %967 = vmatpush2.msra.mxu0 0.0
      %968 = vmatprep.subr.mxu0 0.0
      %969 = vmatpush2.msra.mxu0 0.0
      %970 = vmatprep.subr.mxu0 0.0
      %971 = vmatpush2.msra.mxu0 0.0
      %972 = vmatprep.subr.mxu0 0.0
      %973 = vmatpush2.msra.mxu0 0.0
      %974 = vmatprep.subr.mxu0 0.0
      %975 = vmatpush2.msra.mxu0 0.0
      %976 = vmatprep.subr.mxu0 0.0
      %977 = vmatpush2.msra.mxu0 0.0
      %978 = vmatprep.subr.mxu0 0.0
      %979 = vmatpush2.msra.mxu0 0.0
      %980 = vmatprep.subr.mxu0 0.0
      %981 = vmatpush2.msra.mxu0 %v248
      %982 = vmatprep.subr.mxu0 0.0
      %983 = vmatpush2.msra.mxu0 %v231
      %984 = vmatprep.subr.mxu0 0.0
      %985 = vmatpush2.msra.mxu0 %v230
      %986 = vmatprep.subr.mxu0 0.0
      %987 = vmatpush2.msra.mxu0 %v229
      %988 = vmatprep.subr.mxu0 0.0
      %989 = vmatpush2.msra.mxu0 %v228
      %990 = vmatprep.subr.mxu0 0.0
      %991 = vmatpush2.msra.mxu0 %v227
      %992 = vmatprep.mubr.f32.mxu0 %v487
      %993 = vmatmul.mubr.f32.gmra.mxu0 %v471
      %v994 = vpop.f32.mrf.mxu0
      %v995 = vadd.f32 0.0, %v994
      %v996 = vpop.f32.mrf.mxu0
      %997 = vmatprep.mubr.f32.mxu0 %v489
      %998 = vmatmul.mubr.f32.gmra.mxu0 %v476
      %v999 = vpop.f32.mrf.mxu0
      %v1000 = vadd.f32 0.0, %v999
      %v1001 = vpop.f32.mrf.mxu0
      %1002 = vmatprep.mubr.f32.mxu0 %v491
      %1003 = vmatmul.mubr.f32.gmra.mxu0 %v480
      %v1004 = vpop.f32.mrf.mxu0
      %v1005 = vadd.f32 0.0, %v1004
      %v1006 = vpop.f32.mrf.mxu0
      %1007 = vmatprep.mubr.f32.mxu0 %v493
      %1008 = vmatmul.mubr.f32.gmra.mxu0 %v479
      %v1009 = vpop.f32.mrf.mxu0
      %v1010 = vadd.f32 0.0, %v1009
      %v1011 = vpop.f32.mrf.mxu0
      %1012 = vdwg.mxu0
      %1013 = vmatprep.subr.mxu0 0.0
      %1014 = vmatpush1.msra.mxu0 %v194
      %1015 = vmatprep.subr.mxu0 0.0
      %1016 = vmatpush1.msra.mxu0 %v193
      %1017 = vmatprep.subr.mxu0 0.0
      %1018 = vmatpush1.msra.mxu0 %v192
      %1019 = vmatprep.subr.mxu0 0.0
      %1020 = vmatpush1.msra.mxu0 %v191
      %1021 = vmatprep.subr.mxu0 0.0
      %1022 = vmatpush1.msra.mxu0 %v190
      %1023 = vmatprep.subr.mxu0 0.0
      %1024 = vmatpush1.msra.mxu0 %v189
      %1025 = vmatprep.subr.mxu0 0.0
      %1026 = vmatpush1.msra.mxu0 %v188
      %1027 = vmatprep.subr.mxu0 0.0
      %1028 = vmatpush1.msra.mxu0 %v187
      %1029 = vmatprep.subr.mxu0 0.0
      %1030 = vmatpush1.msra.mxu0 %v186
      %1031 = vmatprep.subr.mxu0 0.0
      %1032 = vmatpush1.msra.mxu0 %v185
      %1033 = vmatprep.subr.mxu0 0.0
      %1034 = vmatpush1.msra.mxu0 %v184
      %1035 = vmatprep.subr.mxu0 0.0
      %1036 = vmatpush1.msra.mxu0 %v183
      %1037 = vmatprep.subr.mxu0 0.0
      %1038 = vmatpush1.msra.mxu0 %v182
      %1039 = vmatprep.subr.mxu0 0.0
      %1040 = vmatpush1.msra.mxu0 %v181
      %1041 = vmatprep.subr.mxu0 0.0
      %1042 = vmatpush1.msra.mxu0 %v180
      %1043 = vmatprep.subr.mxu0 0.0
      %1044 = vmatpush1.msra.mxu0 %v179
      %1045 = vmatprep.subr.mxu0 0.0
      %1046 = vmatpush2.msra.mxu0 0.0
      %1047 = vmatprep.subr.mxu0 0.0
      %1048 = vmatpush2.msra.mxu0 0.0
      %1049 = vmatprep.subr.mxu0 0.0
      %1050 = vmatpush2.msra.mxu0 0.0
      %1051 = vmatprep.subr.mxu0 0.0
      %1052 = vmatpush2.msra.mxu0 0.0
      %1053 = vmatprep.subr.mxu0 0.0
      %1054 = vmatpush2.msra.mxu0 0.0
      %1055 = vmatprep.subr.mxu0 0.0
      %1056 = vmatpush2.msra.mxu0 0.0
      %1057 = vmatprep.subr.mxu0 0.0
      %1058 = vmatpush2.msra.mxu0 0.0
      %1059 = vmatprep.subr.mxu0 0.0
      %1060 = vmatpush2.msra.mxu0 0.0
      %1061 = vmatprep.subr.mxu0 0.0
      %1062 = vmatpush2.msra.mxu0 0.0
      %1063 = vmatprep.subr.mxu0 0.0
      %1064 = vmatpush2.msra.mxu0 0.0
      %1065 = vmatprep.subr.mxu0 0.0
      %1066 = vmatpush2.msra.mxu0 %v348
      %1067 = vmatprep.subr.mxu0 0.0
      %1068 = vmatpush2.msra.mxu0 %v199
      %1069 = vmatprep.subr.mxu0 0.0
      %1070 = vmatpush2.msra.mxu0 %v198
      %1071 = vmatprep.subr.mxu0 0.0
      %1072 = vmatpush2.msra.mxu0 %v197
      %1073 = vmatprep.subr.mxu0 0.0
      %1074 = vmatpush2.msra.mxu0 %v196
      %1075 = vmatprep.subr.mxu0 0.0
      %1076 = vmatpush2.msra.mxu0 %v195
      %1077 = vmatprep.mubr.f32.mxu0 %v235
      %1078 = vmatmul.mubr.f32.gmra.mxu0 %v202
      %v1079 = vpop.f32.mrf.mxu0
      %v1080 = vadd.f32 %v995, %v1079
      %v1081 = vpop.f32.mrf.mxu0
      %1082 = vmatprep.mubr.f32.mxu0 %v238
      %1083 = vmatmul.mubr.f32.gmra.mxu0 %v204
      %v1084 = vpop.f32.mrf.mxu0
      %v1085 = vadd.f32 %v1000, %v1084
      %v1086 = vpop.f32.mrf.mxu0
      %1087 = vmatprep.mubr.f32.mxu0 %v241
      %1088 = vmatmul.mubr.f32.gmra.mxu0 %v206
      %v1089 = vpop.f32.mrf.mxu0
      %v1090 = vadd.f32 %v1005, %v1089
      %v1091 = vpop.f32.mrf.mxu0
      %1092 = vmatprep.mubr.f32.mxu0 %v244
      %1093 = vmatmul.mubr.f32.gmra.mxu0 %v208
      %v1094 = vpop.f32.mrf.mxu0
      %v1095 = vadd.f32 %v1010, %v1094
      %v1096 = vpop.f32.mrf.mxu0
      %1097 = vdwg.mxu0
      %v1098 = vld [vmem:[%s201] sm:$0xfe]
      %v1099 = vld [vmem:[%s201 + $0x8] sm:$0xfe]
      %v1100 = vld [vmem:[%s201 + $0x30] sm:$0x1f]
      %v1101 = vld [vmem:[%s201 + $0x38] sm:$0x1f]
      %v1108 = vrot.slane %v1098, 1
      %v1109 = vrot.slane %v204, 1
      %v1110 = vsel %vm468, %v1108, %v1109
      %v1111 = vrot.slane %v1099, 1
      %v1112 = vrot.slane %v205, 1
      %v1113 = vsel %vm468, %v1111, %v1112
      %v1114 = vrot.slane %v206, 1
      %v1115 = vsel %vm468, %v1109, %v1114
      %v1116 = vrot.slane %v207, 1
      %v1117 = vsel %vm468, %v1112, %v1116
      %v1118 = vrot.slane %v1100, 1
      %v1119 = vsel %vm468, %v1114, %v1118
      %v1120 = vrot.slane %v1101, 1
      %v1121 = vsel %vm468, %v1116, %v1120
      %v1126 = vsel %vm233, %v1113, 0
      %v1128 = vsel %vm233, %v1117, 0
      %v1130 = vsel %vm233, %v1121, 0
      %v1132 = vsel %vm233, %v1120, 0
      %1134 = vmatprep.subr.mxu0 0.0
      %1135 = vmatpush1.msra.mxu0 %v455
      %1136 = vmatprep.subr.mxu0 0.0
      %1137 = vmatpush1.msra.mxu0 %v454
      %1138 = vmatprep.subr.mxu0 0.0
      %1139 = vmatpush1.msra.mxu0 %v453
      %1140 = vmatprep.subr.mxu0 0.0
      %1141 = vmatpush1.msra.mxu0 %v452
      %1142 = vmatprep.subr.mxu0 0.0
      %1143 = vmatpush1.msra.mxu0 %v451
      %1144 = vmatprep.subr.mxu0 0.0
      %1145 = vmatpush1.msra.mxu0 %v450
      %1146 = vmatprep.subr.mxu0 0.0
      %1147 = vmatpush1.msra.mxu0 %v449
      %1148 = vmatprep.subr.mxu0 0.0
      %1149 = vmatpush1.msra.mxu0 %v448
      %1150 = vmatprep.subr.mxu0 0.0
      %1151 = vmatpush1.msra.mxu0 %v447
      %1152 = vmatprep.subr.mxu0 0.0
      %1153 = vmatpush1.msra.mxu0 %v446
      %1154 = vmatprep.subr.mxu0 0.0
      %1155 = vmatpush1.msra.mxu0 %v445
      %1156 = vmatprep.subr.mxu0 0.0
      %1157 = vmatpush1.msra.mxu0 %v444
      %1158 = vmatprep.subr.mxu0 0.0
      %1159 = vmatpush1.msra.mxu0 %v443
      %1160 = vmatprep.subr.mxu0 0.0
      %1161 = vmatpush1.msra.mxu0 %v442
      %1162 = vmatprep.subr.mxu0 0.0
      %1163 = vmatpush1.msra.mxu0 %v441
      %1164 = vmatprep.subr.mxu0 0.0
      %1165 = vmatpush1.msra.mxu0 %v440
      %1166 = vmatprep.subr.mxu0 0.0
      %1167 = vmatpush2.msra.mxu0 0.0
      %1168 = vmatprep.subr.mxu0 0.0
      %1169 = vmatpush2.msra.mxu0 0.0
      %1170 = vmatprep.subr.mxu0 0.0
      %1171 = vmatpush2.msra.mxu0 0.0
      %1172 = vmatprep.subr.mxu0 0.0
      %1173 = vmatpush2.msra.mxu0 0.0
      %1174 = vmatprep.subr.mxu0 0.0
      %1175 = vmatpush2.msra.mxu0 0.0
      %1176 = vmatprep.subr.mxu0 0.0
      %1177 = vmatpush2.msra.mxu0 0.0
      %1178 = vmatprep.subr.mxu0 0.0
      %1179 = vmatpush2.msra.mxu0 0.0
      %1180 = vmatprep.subr.mxu0 0.0
      %1181 = vmatpush2.msra.mxu0 0.0
      %1182 = vmatprep.subr.mxu0 0.0
      %1183 = vmatpush2.msra.mxu0 0.0
      %1184 = vmatprep.subr.mxu0 0.0
      %1185 = vmatpush2.msra.mxu0 0.0
      %1186 = vmatprep.subr.mxu0 0.0
      %1187 = vmatpush2.msra.mxu0 %v496
      %1188 = vmatprep.subr.mxu0 0.0
      %1189 = vmatpush2.msra.mxu0 %v460
      %1190 = vmatprep.subr.mxu0 0.0
      %1191 = vmatpush2.msra.mxu0 %v459
      %1192 = vmatprep.subr.mxu0 0.0
      %1193 = vmatpush2.msra.mxu0 %v458
      %1194 = vmatprep.subr.mxu0 0.0
      %1195 = vmatpush2.msra.mxu0 %v457
      %1196 = vmatprep.subr.mxu0 0.0
      %1197 = vmatpush2.msra.mxu0 %v456
      %1198 = vmatprep.mubr.f32.mxu0 %v1126
      %1199 = vmatmul.mubr.f32.gmra.mxu0 %v1110
      %v1200 = vpop.f32.mrf.mxu0
      %v1201 = vadd.f32 0.0, %v1200
      %v1202 = vpop.f32.mrf.mxu0
      %1203 = vmatprep.mubr.f32.mxu0 %v1128
      %1204 = vmatmul.mubr.f32.gmra.mxu0 %v1115
      %v1205 = vpop.f32.mrf.mxu0
      %v1206 = vadd.f32 0.0, %v1205
      %v1207 = vpop.f32.mrf.mxu0
      %1208 = vmatprep.mubr.f32.mxu0 %v1130
      %1209 = vmatmul.mubr.f32.gmra.mxu0 %v1119
      %v1210 = vpop.f32.mrf.mxu0
      %v1211 = vadd.f32 0.0, %v1210
      %v1212 = vpop.f32.mrf.mxu0
      %1213 = vmatprep.mubr.f32.mxu0 %v1132
      %1214 = vmatmul.mubr.f32.gmra.mxu0 %v1118
      %v1215 = vpop.f32.mrf.mxu0
      %v1216 = vadd.f32 0.0, %v1215
      %v1217 = vpop.f32.mrf.mxu0
      %1218 = vdwg.mxu0
      %v1219 = vadd.f32 %v1080, %v1201
      %v1220 = vadd.f32 %v1085, %v1206
      %v1221 = vadd.f32 %v1090, %v1211
      %v1222 = vadd.f32 %v1095, %v1216
      %v1223 = vmax.f32 %v924, %v1219
      %v1224 = vmax.f32 %v925, %v1220
      %v1225 = vmax.f32 %v926, %v1221
      %v1226 = vmax.f32 %v927, %v1222
      %1227 = vmatprep.subr.mxu0 0.0
      %1228 = vmatpush1.msra.mxu0 %v626
      %1229 = vmatprep.subr.mxu0 0.0
      %1230 = vmatpush1.msra.mxu0 %v625
      %1231 = vmatprep.subr.mxu0 0.0
      %1232 = vmatpush1.msra.mxu0 %v624
      %1233 = vmatprep.subr.mxu0 0.0
      %1234 = vmatpush1.msra.mxu0 %v623
      %1235 = vmatprep.subr.mxu0 0.0
      %1236 = vmatpush1.msra.mxu0 %v622
      %1237 = vmatprep.subr.mxu0 0.0
      %1238 = vmatpush1.msra.mxu0 %v621
      %1239 = vmatprep.subr.mxu0 0.0
      %1240 = vmatpush1.msra.mxu0 %v620
      %1241 = vmatprep.subr.mxu0 0.0
      %1242 = vmatpush1.msra.mxu0 %v619
      %1243 = vmatprep.subr.mxu0 0.0
      %1244 = vmatpush1.msra.mxu0 %v618
      %1245 = vmatprep.subr.mxu0 0.0
      %1246 = vmatpush1.msra.mxu0 %v617
      %1247 = vmatprep.subr.mxu0 0.0
      %1248 = vmatpush1.msra.mxu0 %v616
      %1249 = vmatprep.subr.mxu0 0.0
      %1250 = vmatpush1.msra.mxu0 %v615
      %1251 = vmatprep.subr.mxu0 0.0
      %1252 = vmatpush1.msra.mxu0 %v614
      %1253 = vmatprep.subr.mxu0 0.0
      %1254 = vmatpush1.msra.mxu0 %v613
      %1255 = vmatprep.subr.mxu0 0.0
      %1256 = vmatpush1.msra.mxu0 %v612
      %1257 = vmatprep.subr.mxu0 0.0
      %1258 = vmatpush1.msra.mxu0 %v611
      %1259 = vmatprep.subr.mxu0 0.0
      %1260 = vmatpush2.msra.mxu0 0.0
      %1261 = vmatprep.subr.mxu0 0.0
      %1262 = vmatpush2.msra.mxu0 0.0
      %1263 = vmatprep.subr.mxu0 0.0
      %1264 = vmatpush2.msra.mxu0 0.0
      %1265 = vmatprep.subr.mxu0 0.0
      %1266 = vmatpush2.msra.mxu0 0.0
      %1267 = vmatprep.subr.mxu0 0.0
      %1268 = vmatpush2.msra.mxu0 0.0
      %1269 = vmatprep.subr.mxu0 0.0
      %1270 = vmatpush2.msra.mxu0 0.0
      %1271 = vmatprep.subr.mxu0 0.0
      %1272 = vmatpush2.msra.mxu0 0.0
      %1273 = vmatprep.subr.mxu0 0.0
      %1274 = vmatpush2.msra.mxu0 0.0
      %1275 = vmatprep.subr.mxu0 0.0
      %1276 = vmatpush2.msra.mxu0 0.0
      %1277 = vmatprep.subr.mxu0 0.0
      %1278 = vmatpush2.msra.mxu0 0.0
      %1279 = vmatprep.subr.mxu0 0.0
      %1280 = vmatpush2.msra.mxu0 %v634
      %1281 = vmatprep.subr.mxu0 0.0
      %1282 = vmatpush2.msra.mxu0 %v631
      %1283 = vmatprep.subr.mxu0 0.0
      %1284 = vmatpush2.msra.mxu0 %v630
      %1285 = vmatprep.subr.mxu0 0.0
      %1286 = vmatpush2.msra.mxu0 %v629
      %1287 = vmatprep.subr.mxu0 0.0
      %1288 = vmatpush2.msra.mxu0 %v628
      %1289 = vmatprep.subr.mxu0 0.0
      %1290 = vmatpush2.msra.mxu0 %v627
      %1291 = vmatprep.mubr.f32.mxu0 %v487
      %1292 = vmatmul.mubr.f32.gmra.mxu0 %v471
      %v1293 = vpop.f32.mrf.mxu0
      %v1294 = vadd.f32 0.0, %v1293
      %v1295 = vpop.f32.mrf.mxu0
      %1296 = vmatprep.mubr.f32.mxu0 %v489
      %1297 = vmatmul.mubr.f32.gmra.mxu0 %v476
      %v1298 = vpop.f32.mrf.mxu0
      %v1299 = vadd.f32 0.0, %v1298
      %v1300 = vpop.f32.mrf.mxu0
      %1301 = vmatprep.mubr.f32.mxu0 %v491
      %1302 = vmatmul.mubr.f32.gmra.mxu0 %v480
      %v1303 = vpop.f32.mrf.mxu0
      %v1304 = vadd.f32 0.0, %v1303
      %v1305 = vpop.f32.mrf.mxu0
      %1306 = vmatprep.mubr.f32.mxu0 %v493
      %1307 = vmatmul.mubr.f32.gmra.mxu0 %v479
      %v1308 = vpop.f32.mrf.mxu0
      %v1309 = vadd.f32 0.0, %v1308
      %v1310 = vpop.f32.mrf.mxu0
      %1311 = vdwg.mxu0
      %1312 = vmatprep.subr.mxu0 0.0
      %1313 = vmatpush1.msra.mxu0 %v603
      %1314 = vmatprep.subr.mxu0 0.0
      %1315 = vmatpush1.msra.mxu0 %v602
      %1316 = vmatprep.subr.mxu0 0.0
      %1317 = vmatpush1.msra.mxu0 %v601
      %1318 = vmatprep.subr.mxu0 0.0
      %1319 = vmatpush1.msra.mxu0 %v600
      %1320 = vmatprep.subr.mxu0 0.0
      %1321 = vmatpush1.msra.mxu0 %v599
      %1322 = vmatprep.subr.mxu0 0.0
      %1323 = vmatpush1.msra.mxu0 %v598
      %1324 = vmatprep.subr.mxu0 0.0
      %1325 = vmatpush1.msra.mxu0 %v597
      %1326 = vmatprep.subr.mxu0 0.0
      %1327 = vmatpush1.msra.mxu0 %v596
      %1328 = vmatprep.subr.mxu0 0.0
      %1329 = vmatpush1.msra.mxu0 %v595
      %1330 = vmatprep.subr.mxu0 0.0
      %1331 = vmatpush1.msra.mxu0 %v594
      %1332 = vmatprep.subr.mxu0 0.0
      %1333 = vmatpush1.msra.mxu0 %v593
      %1334 = vmatprep.subr.mxu0 0.0
      %1335 = vmatpush1.msra.mxu0 %v592
      %1336 = vmatprep.subr.mxu0 0.0
      %1337 = vmatpush1.msra.mxu0 %v591
      %1338 = vmatprep.subr.mxu0 0.0
      %1339 = vmatpush1.msra.mxu0 %v590
      %1340 = vmatprep.subr.mxu0 0.0
      %1341 = vmatpush1.msra.mxu0 %v589
      %1342 = vmatprep.subr.mxu0 0.0
      %1343 = vmatpush1.msra.mxu0 %v588
      %1344 = vmatprep.subr.mxu0 0.0
      %1345 = vmatpush2.msra.mxu0 0.0
      %1346 = vmatprep.subr.mxu0 0.0
      %1347 = vmatpush2.msra.mxu0 0.0
      %1348 = vmatprep.subr.mxu0 0.0
      %1349 = vmatpush2.msra.mxu0 0.0
      %1350 = vmatprep.subr.mxu0 0.0
      %1351 = vmatpush2.msra.mxu0 0.0
      %1352 = vmatprep.subr.mxu0 0.0
      %1353 = vmatpush2.msra.mxu0 0.0
      %1354 = vmatprep.subr.mxu0 0.0
      %1355 = vmatpush2.msra.mxu0 0.0
      %1356 = vmatprep.subr.mxu0 0.0
      %1357 = vmatpush2.msra.mxu0 0.0
      %1358 = vmatprep.subr.mxu0 0.0
      %1359 = vmatpush2.msra.mxu0 0.0
      %1360 = vmatprep.subr.mxu0 0.0
      %1361 = vmatpush2.msra.mxu0 0.0
      %1362 = vmatprep.subr.mxu0 0.0
      %1363 = vmatpush2.msra.mxu0 0.0
      %1364 = vmatprep.subr.mxu0 0.0
      %1365 = vmatpush2.msra.mxu0 %v722
      %1366 = vmatprep.subr.mxu0 0.0
      %1367 = vmatpush2.msra.mxu0 %v608
      %1368 = vmatprep.subr.mxu0 0.0
      %1369 = vmatpush2.msra.mxu0 %v607
      %1370 = vmatprep.subr.mxu0 0.0
      %1371 = vmatpush2.msra.mxu0 %v606
      %1372 = vmatprep.subr.mxu0 0.0
      %1373 = vmatpush2.msra.mxu0 %v605
      %1374 = vmatprep.subr.mxu0 0.0
      %1375 = vmatpush2.msra.mxu0 %v604
      %1376 = vmatprep.mubr.f32.mxu0 %v235
      %1377 = vmatmul.mubr.f32.gmra.mxu0 %v202
      %v1378 = vpop.f32.mrf.mxu0
      %v1379 = vadd.f32 %v1294, %v1378
      %v1380 = vpop.f32.mrf.mxu0
      %1381 = vmatprep.mubr.f32.mxu0 %v238
      %1382 = vmatmul.mubr.f32.gmra.mxu0 %v204
      %v1383 = vpop.f32.mrf.mxu0
      %v1384 = vadd.f32 %v1299, %v1383
      %v1385 = vpop.f32.mrf.mxu0
      %1386 = vmatprep.mubr.f32.mxu0 %v241
      %1387 = vmatmul.mubr.f32.gmra.mxu0 %v206
      %v1388 = vpop.f32.mrf.mxu0
      %v1389 = vadd.f32 %v1304, %v1388
      %v1390 = vpop.f32.mrf.mxu0
      %1391 = vmatprep.mubr.f32.mxu0 %v244
      %1392 = vmatmul.mubr.f32.gmra.mxu0 %v208
      %v1393 = vpop.f32.mrf.mxu0
      %v1394 = vadd.f32 %v1309, %v1393
      %v1395 = vpop.f32.mrf.mxu0
      %1396 = vdwg.mxu0
      %1397 = vmatprep.subr.mxu0 0.0
      %1398 = vmatpush1.msra.mxu0 %v825
      %1399 = vmatprep.subr.mxu0 0.0
      %1400 = vmatpush1.msra.mxu0 %v824
      %1401 = vmatprep.subr.mxu0 0.0
      %1402 = vmatpush1.msra.mxu0 %v823
      %1403 = vmatprep.subr.mxu0 0.0
      %1404 = vmatpush1.msra.mxu0 %v822
      %1405 = vmatprep.subr.mxu0 0.0
      %1406 = vmatpush1.msra.mxu0 %v821
      %1407 = vmatprep.subr.mxu0 0.0
      %1408 = vmatpush1.msra.mxu0 %v820
      %1409 = vmatprep.subr.mxu0 0.0
      %1410 = vmatpush1.msra.mxu0 %v819
      %1411 = vmatprep.subr.mxu0 0.0
      %1412 = vmatpush1.msra.mxu0 %v818
      %1413 = vmatprep.subr.mxu0 0.0
      %1414 = vmatpush1.msra.mxu0 %v817
      %1415 = vmatprep.subr.mxu0 0.0
      %1416 = vmatpush1.msra.mxu0 %v816
      %1417 = vmatprep.subr.mxu0 0.0
      %1418 = vmatpush1.msra.mxu0 %v815
      %1419 = vmatprep.subr.mxu0 0.0
      %1420 = vmatpush1.msra.mxu0 %v814
      %1421 = vmatprep.subr.mxu0 0.0
      %1422 = vmatpush1.msra.mxu0 %v813
      %1423 = vmatprep.subr.mxu0 0.0
      %1424 = vmatpush1.msra.mxu0 %v812
      %1425 = vmatprep.subr.mxu0 0.0
      %1426 = vmatpush1.msra.mxu0 %v811
      %1427 = vmatprep.subr.mxu0 0.0
      %1428 = vmatpush1.msra.mxu0 %v810
      %1429 = vmatprep.subr.mxu0 0.0
      %1430 = vmatpush2.msra.mxu0 0.0
      %1431 = vmatprep.subr.mxu0 0.0
      %1432 = vmatpush2.msra.mxu0 0.0
      %1433 = vmatprep.subr.mxu0 0.0
      %1434 = vmatpush2.msra.mxu0 0.0
      %1435 = vmatprep.subr.mxu0 0.0
      %1436 = vmatpush2.msra.mxu0 0.0
      %1437 = vmatprep.subr.mxu0 0.0
      %1438 = vmatpush2.msra.mxu0 0.0
      %1439 = vmatprep.subr.mxu0 0.0
      %1440 = vmatpush2.msra.mxu0 0.0
      %1441 = vmatprep.subr.mxu0 0.0
      %1442 = vmatpush2.msra.mxu0 0.0
      %1443 = vmatprep.subr.mxu0 0.0
      %1444 = vmatpush2.msra.mxu0 0.0
      %1445 = vmatprep.subr.mxu0 0.0
      %1446 = vmatpush2.msra.mxu0 0.0
      %1447 = vmatprep.subr.mxu0 0.0
      %1448 = vmatpush2.msra.mxu0 0.0
      %1449 = vmatprep.subr.mxu0 0.0
      %1450 = vmatpush2.msra.mxu0 %v833
      %1451 = vmatprep.subr.mxu0 0.0
      %1452 = vmatpush2.msra.mxu0 %v830
      %1453 = vmatprep.subr.mxu0 0.0
      %1454 = vmatpush2.msra.mxu0 %v829
      %1455 = vmatprep.subr.mxu0 0.0
      %1456 = vmatpush2.msra.mxu0 %v828
      %1457 = vmatprep.subr.mxu0 0.0
      %1458 = vmatpush2.msra.mxu0 %v827
      %1459 = vmatprep.subr.mxu0 0.0
      %1460 = vmatpush2.msra.mxu0 %v826
      %1461 = vmatprep.mubr.f32.mxu0 %v1126
      %1462 = vmatmul.mubr.f32.gmra.mxu0 %v1110
      %v1463 = vpop.f32.mrf.mxu0
      %v1464 = vadd.f32 0.0, %v1463
      %v1465 = vpop.f32.mrf.mxu0
      %1466 = vmatprep.mubr.f32.mxu0 %v1128
      %1467 = vmatmul.mubr.f32.gmra.mxu0 %v1115
      %v1468 = vpop.f32.mrf.mxu0
      %v1469 = vadd.f32 0.0, %v1468
      %v1470 = vpop.f32.mrf.mxu0
      %1471 = vmatprep.mubr.f32.mxu0 %v1130
      %1472 = vmatmul.mubr.f32.gmra.mxu0 %v1119
      %v1473 = vpop.f32.mrf.mxu0
      %v1474 = vadd.f32 0.0, %v1473
      %v1475 = vpop.f32.mrf.mxu0
      %1476 = vmatprep.mubr.f32.mxu0 %v1132
      %1477 = vmatmul.mubr.f32.gmra.mxu0 %v1118
      %v1478 = vpop.f32.mrf.mxu0
      %v1479 = vadd.f32 0.0, %v1478
      %v1480 = vpop.f32.mrf.mxu0
      %1481 = vdwg.mxu0
      %v1482 = vadd.f32 %v1379, %v1464
      %v1483 = vadd.f32 %v1384, %v1469
      %v1484 = vadd.f32 %v1389, %v1474
      %v1485 = vadd.f32 %v1394, %v1479
      %v1486 = vmax.f32 %v1223, %v1482
      %v1487 = vmax.f32 %v1224, %v1483
      %v1488 = vmax.f32 %v1225, %v1484
      %v1489 = vmax.f32 %v1226, %v1485
      %v1490 = vld [vmem:[%s2] sm:$0x1]
      %v1492 = vlaneseq
      %v1493 = vshrl.u32 %v1492, 7
      %v1494 = vsub.s32 0, %v1493
      %v1495 = vrot.slane %v1490, %v1494
      %v1497 = vadd.f32 %v1486, %v1495
      %v1498 = vadd.f32 %v1487, %v1495
      %v1499 = vadd.f32 %v1488, %v1495
      %v1500 = vadd.f32 %v1489, %v1495
      %v1501 = vmax.f32 %v1497, 0.0
      %v1502 = vmax.f32 %v1498, 0.0
      %v1503 = vmax.f32 %v1499, 0.0
      %v1504 = vmax.f32 %v1500, 0.0
      %vm1505 = vcmask 916480
      %1506 = vst.msk [vmem:[%s170] sm:$0xff] %vm1505, %v1501
      %1507 = vst.msk [vmem:[%s170 + $0x8] sm:$0xff] %vm1505, %v1502
      %1508 = vst.msk [vmem:[%s170 + $0x10] sm:$0xff] %vm1505, %v1503
      %vm1509 = vcmask 912384
      %1510 = vst.msk [vmem:[%s170 + $0x18] sm:$0xf] %vm1509, %v1504
      %p1511 = scmp.lt.s32.totalorder %s14, 1
      %s1512 = scalar_select %p1511, %s14, 1
      %s1513 = smul.addr %s1512, 4
      %s1514 = smul.addr %s1513, 8
      %s1515 = scalar_lea.vmem %s3, %s1514
      // Predicated region
      $region33: #{cnn_part3_forward.3} parent=31 // pred_check
        %p1516 = pneg %p100
      $region34: #{cnn_part3_forward.3} parent=31 // pred_check_branch
        %1518 = sbr.rel (%p1516) target = $region36
      $region35: #{cnn_part3_forward.3} parent=31 // pred_region
        _
      $region36: #{cnn_part3_forward.3} parent=31 // pred_fallthru
        _
    $region32: #{cnn_part3_forward.3} parent=5 // pred_fallthru
      _
    %p1519 = scmp.le.s32.totalorder 2, %s9
    // Predicated region
    $region37: #{cnn_part3_forward.3} parent=5 // pred_check
      %p1520 = pneg %p1519
    $region38: #{cnn_part3_forward.3} parent=5 // pred_check_branch
      %1522 = sbr.rel (%p1520) target = $region40
    $region39: #{cnn_part3_forward.3} parent=5 // pred_region
      %s1523 = ssub.s32 %s9, 2
      // Predicated region
      $region41: #{cnn_part3_forward.3} parent=39 // pred_check
        %p1524 = pneg %p106
      $region42: #{cnn_part3_forward.3} parent=39 // pred_check_branch
        %1526 = sbr.rel (%p1524) target = $region44
      $region43: #{cnn_part3_forward.3} parent=39 // pred_region
        %p1527 = scmp.lt.s32.totalorder %s15, 1
        %s1528 = scalar_select %p1527, %s15, 1
        %s1529 = smul.addr %s1528, 4
        %s1530 = smul.addr %s1529, 8
        %s1531 = scalar_lea.vmem %s3, %s1530
      $region44: #{cnn_part3_forward.3} parent=39 // pred_fallthru
        _
    $region40: #{cnn_part3_forward.3} parent=5 // pred_fallthru
      _
  $region6: #{cnn_part3_forward.3} parent=0 // loop_footer
    %s13 = sadd.s32 1, %s9
  $region7: #{cnn_part3_forward.3} parent=0 // loop_footer_branch
    %8 = sbr.rel target = $region3
  $region8: #{cnn_part3_forward.3} parent=0 // loop_exit
    _

// kernel: cnn_part3_forward.4
$region0: #{cnn_part3_forward.4}
  #allocation0 [shape = 'u32[]', space=smem, size = 0x4, offset = 0x4, fixed_abs, tag = 'smem constant byte address 0x4 - core index']
  #allocation1 [shape = 'u32[144,128]{1,0:T(1,128)}', space=vmem, size = 0x12000, scoped, tag = 'internal scratch']
  %s0 = inlined_call_operand.vmem [shape: f32[2,2,14,112], index: 0, kind: input, shape index: {}]
  %s1 = inlined_call_operand.vmem [shape: f32[2,5,112,96], index: 1, kind: input, shape index: {}]
  %s2 = inlined_call_operand.vmem [shape: f32[1,96], index: 2, kind: input, shape index: {}]
  %s3 = inlined_call_operand.vmem [shape: f32[2,12,96], index: 3, kind: output, shape index: {}]
  %s4 = sld [smem:[#allocation0]]
  $region45: #{cnn_part3_forward.4} parent=0
    _
  %s6 = ssub.s32 1, %s4
  %s7 = scalar_select 0, %s6, %s4
  loop: start=0, step=1, limit=4
  $region2: #{cnn_part3_forward.4} parent=0 // loop_pre_header
    _
  $region3: #{cnn_part3_forward.4} parent=0 // loop_header
    %s9 = sphi 0, %s13
    %p10 = scmp.ge.s32.totalorder %s9, 4
    %s19 = sphi 0, %s21
    %s22 = sphi 0, %s19
    %s23 = sphi 0, %s22
    %s39 = sphi 0, %s23
    %s43 = sphi 0, %s43
    %s45 = sphi 0, %s43
    %s46 = sphi 0, %s45
    %s60 = sphi 0, %s46
    %s64 = sphi 0, %s64
    %s66 = sphi 0, %s64
    %s67 = sphi 0, %s66
    %s81 = sphi 0, %s67
    %s87 = sphi 0, %s89
    %s90 = sphi 0, %s87
    %s91 = sphi 0, %s90
    %s107 = sphi 0, %s91
  $region4: #{cnn_part3_forward.4} parent=0 // loop_header_branch
    %12 = sbr.rel (%p10) target = $region8
  $region5: #{cnn_part3_forward.4} parent=0 // loop_body
    %s14 = ssub.s32 %s9, 1
    %s15 = ssub.s32 %s9, 2
    %s16 = sadd.s32 %s9, 1
    %s17 = ssub.s32 %s9, %s16
    %p18 = scmp.eq.s32.totalorder %s17, 0
    %s20 = sadd.s32 %s19, 1
    %s21 = scalar_select %p18, %s19, %s20
    %p24 = pneg %p18
    %p25 = scmp.eq.s32.totalorder %s9, 1
    %p26 = por %p24, %p25
    %p27 = scmp.ne.s32.totalorder %s19, %s22
    %p28 = scmp.eq.s32.totalorder %s9, 0
    %p29 = por %p27, %p28
    %p30 = scmp.ne.s32.totalorder %s19, %s22
    %p31 = scmp.eq.s32.totalorder %s14, 1
    %p32 = por %p30, %p31
    %p33 = scmp.ne.s32.totalorder %s22, %s23
    %p34 = scmp.eq.s32.totalorder %s14, 0
    %p35 = por %p33, %p34
    %p36 = scmp.ne.s32.totalorder %s22, %s23
    %p37 = scmp.eq.s32.totalorder %s15, 1
    %p38 = por %p36, %p37
    %p40 = scmp.ne.s32.totalorder %s23, %s39
    %p41 = scmp.eq.s32.totalorder %s15, 0
    %p42 = por %p40, %p41
    %s44 = sadd.s32 %s43, 1
    %p47 = scmp.eq.s32.totalorder %s9, 1
    %p48 = scmp.ne.s32.totalorder %s43, %s45
    %p49 = scmp.eq.s32.totalorder %s9, 0
    %p50 = por %p48, %p49
    %p51 = scmp.ne.s32.totalorder %s43, %s45
    %p52 = scmp.eq.s32.totalorder %s14, 1
    %p53 = por %p51, %p52
    %p54 = scmp.ne.s32.totalorder %s45, %s46
    %p55 = scmp.eq.s32.totalorder %s14, 0
    %p56 = por %p54, %p55
    %p57 = scmp.ne.s32.totalorder %s45, %s46
    %p58 = scmp.eq.s32.totalorder %s15, 1
    %p59 = por %p57, %p58
    %p61 = scmp.ne.s32.totalorder %s46, %s60
    %p62 = scmp.eq.s32.totalorder %s15, 0
    %p63 = por %p61, %p62
    %s65 = sadd.s32 %s64, 1
    %p68 = scmp.eq.s32.totalorder %s9, 1
    %p69 = scmp.ne.s32.totalorder %s64, %s66
    %p70 = scmp.eq.s32.totalorder %s9, 0
    %p71 = por %p69, %p70
    %p72 = scmp.ne.s32.totalorder %s64, %s66
    %p73 = scmp.eq.s32.totalorder %s14, 1
    %p74 = por %p72, %p73
    %p75 = scmp.ne.s32.totalorder %s66, %s67
    %p76 = scmp.eq.s32.totalorder %s14, 0
    %p77 = por %p75, %p76
    %p78 = scmp.ne.s32.totalorder %s66, %s67
    %p79 = scmp.eq.s32.totalorder %s15, 1
    %p80 = por %p78, %p79
    %p82 = scmp.ne.s32.totalorder %s67, %s81
    %p83 = scmp.eq.s32.totalorder %s15, 0
    %p84 = por %p82, %p83
    %s85 = ssub.s32 %s9, %s16
    %p86 = scmp.eq.s32.totalorder %s85, 0
    %s88 = sadd.s32 %s87, 1
    %s89 = scalar_select %p86, %s87, %s88
    %p92 = pneg %p86
    %p93 = scmp.eq.s32.totalorder %s9, 1
    %p94 = por %p92, %p93
    %p95 = scmp.ne.s32.totalorder %s87, %s90
    %p96 = scmp.eq.s32.totalorder %s9, 0
    %p97 = por %p95, %p96
    %p98 = scmp.ne.s32.totalorder %s87, %s90
    %p99 = scmp.eq.s32.totalorder %s14, 1
    %p100 = por %p98, %p99
    %p101 = scmp.ne.s32.totalorder %s90, %s91
    %p102 = scmp.eq.s32.totalorder %s14, 0
    %p103 = por %p101, %p102
    %p104 = scmp.ne.s32.totalorder %s90, %s91
    %p105 = scmp.eq.s32.totalorder %s15, 1
    %p106 = por %p104, %p105
    %p108 = scmp.ne.s32.totalorder %s91, %s107
    %p109 = scmp.eq.s32.totalorder %s15, 0
    %p110 = por %p108, %p109
    %p111 = scmp.le.s32.totalorder 1, %s9
    %p112 = scmp.lt.s32.totalorder %s9, 3
    %p113 = pnand %p111, %p112
    %p114 = pneg %p113
    // Predicated region
    $region9: #{cnn_part3_forward.4} parent=5 // pred_check
      _
    $region10: #{cnn_part3_forward.4} parent=5 // pred_check_branch
      %116 = sbr.rel (%p113) target = $region12
    $region11: #{cnn_part3_forward.4} parent=5 // pred_region
      %s117 = ssub.s32 %s9, 1
      // Predicated region
      $region13: #{cnn_part3_forward.4} parent=11 // pred_check
        %p118 = pneg %p56
      $region14: #{cnn_part3_forward.4} parent=11 // pred_check_branch
        %120 = sbr.rel (%p118) target = $region16
      $region15: #{cnn_part3_forward.4} parent=11 // pred_region
        _
      $region16: #{cnn_part3_forward.4} parent=11 // pred_fallthru
        _
      // Predicated region
      $region17: #{cnn_part3_forward.4} parent=11 // pred_check
        %p121 = pneg %p77
      $region18: #{cnn_part3_forward.4} parent=11 // pred_check_branch
        %123 = sbr.rel (%p121) target = $region20
      $region19: #{cnn_part3_forward.4} parent=11 // pred_region
        _
      $region20: #{cnn_part3_forward.4} parent=11 // pred_fallthru
        _
    $region12: #{cnn_part3_forward.4} parent=5 // pred_fallthru
      _
    %p124 = scmp.lt.s32.totalorder %s9, 2
    // Predicated region
    $region21: #{cnn_part3_forward.4} parent=5 // pred_check
      %p125 = pneg %p124
    $region22: #{cnn_part3_forward.4} parent=5 // pred_check_branch
      %127 = sbr.rel (%p125) target = $region24
    $region23: #{cnn_part3_forward.4} parent=5 // pred_region
      // Predicated region
      $region25: #{cnn_part3_forward.4} parent=23 // pred_check
        %p128 = pneg %p29
      $region26: #{cnn_part3_forward.4} parent=23 // pred_check_branch
        %130 = sbr.rel (%p128) target = $region28
      $region27: #{cnn_part3_forward.4} parent=23 // pred_region
        %p131 = scmp.lt.s32.totalorder %s9, 1
        %s132 = scalar_select %p131, %s9, 1
        %s133 = smul.addr %s132, 4
        %s134 = smul.addr %s133, 8
        %s135 = scalar_lea.vmem %s0, %s134
      $region28: #{cnn_part3_forward.4} parent=23 // pred_fallthru
        _
    $region24: #{cnn_part3_forward.4} parent=5 // pred_fallthru
      _
    %p136 = scmp.le.s32.totalorder 1, %s9
    %p137 = scmp.lt.s32.totalorder %s9, 3
    %p138 = pnand %p136, %p137
    %p139 = pneg %p138
    // Predicated region
    $region29: #{cnn_part3_forward.4} parent=5 // pred_check
      _
    $region30: #{cnn_part3_forward.4} parent=5 // pred_check_branch
      %141 = sbr.rel (%p138) target = $region32
    $region31: #{cnn_part3_forward.4} parent=5 // pred_region
      %s142 = ssub.s32 %s9, 1
      %p143 = scmp.lt.s32.totalorder %s14, 1
      %s144 = scalar_select %p143, %s14, 1
      %s145 = smul.addr %s144, 4
      %s146 = smul.addr %s145, 8
      %s147 = scalar_lea.vmem %s0, %s146
      %p148 = pneg %p35
      %p149 = pneg %p32
      %p150 = pneg %p56
      %p151 = pneg %p53
      %p152 = pneg %p77
      %p153 = pneg %p74
      %p154 = pneg %p103
      %p155 = pneg %p100
      %p156 = scmp.lt.s32.totalorder %s14, 1
      %s157 = scalar_select %p156, %s14, 1
      %s158 = smul.addr %s157, 2
      %s159 = smul.addr %s158, 8
      %s160 = scalar_lea.vmem %s3, %s159
      %p161 = scmp.lt.s32.totalorder %s14, 1
      %s162 = scalar_select %p161, %s14, 1
      %s163 = smul.addr %s162, 4
      %s164 = smul.addr %s163, 8
      %s165 = scalar_lea.vmem %s0, %s164
      %p166 = scmp.lt.s32.totalorder %s14, 1
      %s167 = scalar_select %p166, %s14, 1
      %s168 = smul.addr %s167, 2
      %s169 = smul.addr %s168, 8
      %s170 = scalar_lea.vmem %s3, %s169
      %v171 = vld [vmem:[%s165] sm:$0xff]
      %v172 = vld [vmem:[%s165 + $0x8] sm:$0xf]
      %v173 = vld [vmem:[%s1] sm:$0xff]
      %v174 = vld [vmem:[%s1 + $0x8] sm:$0xff]
      %v175 = vld [vmem:[%s1 + $0x10] sm:$0xff]
      %v176 = vld [vmem:[%s1 + $0x18] sm:$0xff]
      %v177 = vld [vmem:[%s1 + $0x20] sm:$0xff]
      %v178 = vld [vmem:[%s1 + $0x28] sm:$0xff]
      %v179 = vld [vmem:[%s1 + $0x30] sm:$0xff]
      %v180 = vld [vmem:[%s1 + $0x38] sm:$0xff]
      %v181 = vld [vmem:[%s1 + $0x40] sm:$0xff]
      %v182 = vld [vmem:[%s1 + $0x48] sm:$0xff]
      %v183 = vld [vmem:[%s1 + $0x50] sm:$0xff]
      %v184 = vld [vmem:[%s1 + $0x58] sm:$0xff]
      %v185 = vld [vmem:[%s1 + $0x60] sm:$0xff]
      %v186 = vld [vmem:[%s1 + $0x68] sm:$0xff]
      %s187 = scalar_lea.vmem %s165, 16
      %v188 = vld [vmem:[%s187] sm:$0xff]
      %v189 = vld [vmem:[%s187 + $0x8] sm:$0xf]
      %s190 = scalar_lea.vmem %s1, 112
      %v191 = vld [vmem:[%s190] sm:$0xff]
      %v192 = vld [vmem:[%s190 + $0x8] sm:$0xff]
      %v193 = vld [vmem:[%s190 + $0x10] sm:$0xff]
      %v194 = vld [vmem:[%s190 + $0x18] sm:$0xff]
      %v195 = vld [vmem:[%s190 + $0x20] sm:$0xff]
      %v196 = vld [vmem:[%s190 + $0x28] sm:$0xff]
      %v197 = vld [vmem:[%s190 + $0x30] sm:$0xff]
      %v198 = vld [vmem:[%s190 + $0x38] sm:$0xff]
      %v199 = vld [vmem:[%s190 + $0x40] sm:$0xff]
      %v200 = vld [vmem:[%s190 + $0x48] sm:$0xff]
      %v201 = vld [vmem:[%s190 + $0x50] sm:$0xff]
      %v202 = vld [vmem:[%s190 + $0x58] sm:$0xff]
      %v203 = vld [vmem:[%s190 + $0x60] sm:$0xff]
      %v204 = vld [vmem:[%s190 + $0x68] sm:$0xff]
      %vm205 = vcmask 916480
      %v207 = vsel %vm205, %v188, 0
      %v210 = vsel %vm205, %v189, 0
      %212 = vmatprep.subr.mxu0 0.0
      %213 = vmatpush1.msra.mxu0 0.0
      %214 = vmatprep.subr.mxu0 0.0
      %215 = vmatpush1.msra.mxu0 0.0
      %216 = vmatprep.subr.mxu0 0.0
      %217 = vmatpush1.msra.mxu0 %v204
      %218 = vmatprep.subr.mxu0 0.0
      %219 = vmatpush1.msra.mxu0 %v203
      %220 = vmatprep.subr.mxu0 0.0
      %221 = vmatpush1.msra.mxu0 %v202
      %222 = vmatprep.subr.mxu0 0.0
      %223 = vmatpush1.msra.mxu0 %v201
      %224 = vmatprep.subr.mxu0 0.0
      %225 = vmatpush1.msra.mxu0 %v200
      %226 = vmatprep.subr.mxu0 0.0
      %227 = vmatpush1.msra.mxu0 %v199
      %228 = vmatprep.subr.mxu0 0.0
      %229 = vmatpush1.msra.mxu0 %v198
      %230 = vmatprep.subr.mxu0 0.0
      %231 = vmatpush1.msra.mxu0 %v197
      %232 = vmatprep.subr.mxu0 0.0
      %233 = vmatpush1.msra.mxu0 %v196
      %234 = vmatprep.subr.mxu0 0.0
      %235 = vmatpush1.msra.mxu0 %v195
      %236 = vmatprep.subr.mxu0 0.0
      %237 = vmatpush1.msra.mxu0 %v194
      %238 = vmatprep.subr.mxu0 0.0
      %239 = vmatpush1.msra.mxu0 %v193
      %240 = vmatprep.subr.mxu0 0.0
      %241 = vmatpush1.msra.mxu0 %v192
      %242 = vmatprep.subr.mxu0 0.0
      %243 = vmatpush1.msra.mxu0 %v191
      %244 = vmatprep.subr.mxu0 0.0
      %245 = vmatpush2.msra.mxu0 0.0
      %246 = vmatprep.subr.mxu0 0.0
      %247 = vmatpush2.msra.mxu0 0.0
      %248 = vmatprep.subr.mxu0 0.0
      %249 = vmatpush2.msra.mxu0 0.0
      %250 = vmatprep.subr.mxu0 0.0
      %251 = vmatpush2.msra.mxu0 0.0
      %252 = vmatprep.subr.mxu0 0.0
      %253 = vmatpush2.msra.mxu0 0.0
      %254 = vmatprep.subr.mxu0 0.0
      %255 = vmatpush2.msra.mxu0 0.0
      %256 = vmatprep.subr.mxu0 0.0
      %257 = vmatpush2.msra.mxu0 0.0
      %258 = vmatprep.subr.mxu0 0.0
      %259 = vmatpush2.msra.mxu0 0.0
      %260 = vmatprep.subr.mxu0 0.0
      %261 = vmatpush2.msra.mxu0 0.0
      %262 = vmatprep.subr.mxu0 0.0
      %263 = vmatpush2.msra.mxu0 0.0
      %264 = vmatprep.subr.mxu0 0.0
      %265 = vmatpush2.msra.mxu0 0.0
      %266 = vmatprep.subr.mxu0 0.0
      %267 = vmatpush2.msra.mxu0 0.0
      %268 = vmatprep.subr.mxu0 0.0
      %269 = vmatpush2.msra.mxu0 0.0
      %270 = vmatprep.subr.mxu0 0.0
      %271 = vmatpush2.msra.mxu0 0.0
      %272 = vmatprep.subr.mxu0 0.0
      %273 = vmatpush2.msra.mxu0 0.0
      %274 = vmatprep.subr.mxu0 0.0
      %275 = vmatpush2.msra.mxu0 0.0
      %276 = vmatprep.mubr.f32.mxu0 0.0
      %277 = vmatmul.mubr.f32.gmra.mxu0 %v207
      %v278 = vpop.f32.mrf.mxu0
      %v279 = vadd.f32 0.0, %v278
      %v280 = vpop.f32.mrf.mxu0
      %281 = vmatprep.mubr.f32.mxu0 0.0
      %282 = vmatmul.mubr.f32.gmra.mxu0 %v210
      %v283 = vpop.f32.mrf.mxu0
      %v284 = vadd.f32 0.0, %v283
      %v285 = vpop.f32.mrf.mxu0
      %286 = vdwg.mxu0
      %v288 = vsel %vm205, %v171, 0
      %v291 = vsel %vm205, %v172, 0
      %293 = vmatprep.subr.mxu0 0.0
      %294 = vmatpush1.msra.mxu0 0.0
      %295 = vmatprep.subr.mxu0 0.0
      %296 = vmatpush1.msra.mxu0 0.0
      %297 = vmatprep.subr.mxu0 0.0
      %298 = vmatpush1.msra.mxu0 %v186
      %299 = vmatprep.subr.mxu0 0.0
      %300 = vmatpush1.msra.mxu0 %v185
      %301 = vmatprep.subr.mxu0 0.0
      %302 = vmatpush1.msra.mxu0 %v184
      %303 = vmatprep.subr.mxu0 0.0
      %304 = vmatpush1.msra.mxu0 %v183
      %305 = vmatprep.subr.mxu0 0.0
      %306 = vmatpush1.msra.mxu0 %v182
      %307 = vmatprep.subr.mxu0 0.0
      %308 = vmatpush1.msra.mxu0 %v181
      %309 = vmatprep.subr.mxu0 0.0
      %310 = vmatpush1.msra.mxu0 %v180
      %311 = vmatprep.subr.mxu0 0.0
      %312 = vmatpush1.msra.mxu0 %v179
      %313 = vmatprep.subr.mxu0 0.0
      %314 = vmatpush1.msra.mxu0 %v178
      %315 = vmatprep.subr.mxu0 0.0
      %316 = vmatpush1.msra.mxu0 %v177
      %317 = vmatprep.subr.mxu0 0.0
      %318 = vmatpush1.msra.mxu0 %v176
      %319 = vmatprep.subr.mxu0 0.0
      %320 = vmatpush1.msra.mxu0 %v175
      %321 = vmatprep.subr.mxu0 0.0
      %322 = vmatpush1.msra.mxu0 %v174
      %323 = vmatprep.subr.mxu0 0.0
      %324 = vmatpush1.msra.mxu0 %v173
      %325 = vmatprep.subr.mxu0 0.0
      %326 = vmatpush2.msra.mxu0 0.0
      %327 = vmatprep.subr.mxu0 0.0
      %328 = vmatpush2.msra.mxu0 0.0
      %329 = vmatprep.subr.mxu0 0.0
      %330 = vmatpush2.msra.mxu0 0.0
      %331 = vmatprep.subr.mxu0 0.0
      %332 = vmatpush2.msra.mxu0 0.0
      %333 = vmatprep.subr.mxu0 0.0
      %334 = vmatpush2.msra.mxu0 0.0
      %335 = vmatprep.subr.mxu0 0.0
      %336 = vmatpush2.msra.mxu0 0.0
      %337 = vmatprep.subr.mxu0 0.0
      %338 = vmatpush2.msra.mxu0 0.0
      %339 = vmatprep.subr.mxu0 0.0
      %340 = vmatpush2.msra.mxu0 0.0
      %341 = vmatprep.subr.mxu0 0.0
      %342 = vmatpush2.msra.mxu0 0.0
      %343 = vmatprep.subr.mxu0 0.0
      %344 = vmatpush2.msra.mxu0 0.0
      %345 = vmatprep.subr.mxu0 0.0
      %346 = vmatpush2.msra.mxu0 0.0
      %347 = vmatprep.subr.mxu0 0.0
      %348 = vmatpush2.msra.mxu0 0.0
      %349 = vmatprep.subr.mxu0 0.0
      %350 = vmatpush2.msra.mxu0 0.0
      %351 = vmatprep.subr.mxu0 0.0
      %352 = vmatpush2.msra.mxu0 0.0
      %353 = vmatprep.subr.mxu0 0.0
      %354 = vmatpush2.msra.mxu0 0.0
      %355 = vmatprep.subr.mxu0 0.0
      %356 = vmatpush2.msra.mxu0 0.0
      %357 = vmatprep.mubr.f32.mxu0 0.0
      %358 = vmatmul.mubr.f32.gmra.mxu0 %v288
      %v359 = vpop.f32.mrf.mxu0
      %v360 = vadd.f32 %v279, %v359
      %v361 = vpop.f32.mrf.mxu0
      %362 = vmatprep.mubr.f32.mxu0 0.0
      %363 = vmatmul.mubr.f32.gmra.mxu0 %v291
      %v364 = vpop.f32.mrf.mxu0
      %v365 = vadd.f32 %v284, %v364
      %v366 = vpop.f32.mrf.mxu0
      %367 = vdwg.mxu0
      %v368 = vld [vmem:[%s165 + $0x1] sm:$0xff]
      %v369 = vld [vmem:[%s165 + $0x9] sm:$0xf]
      %s370 = scalar_lea.vmem %s1, 224
      %v371 = vld [vmem:[%s370] sm:$0xff]
      %v372 = vld [vmem:[%s370 + $0x8] sm:$0xff]
      %v373 = vld [vmem:[%s370 + $0x10] sm:$0xff]
      %v374 = vld [vmem:[%s370 + $0x18] sm:$0xff]
      %v375 = vld [vmem:[%s370 + $0x20] sm:$0xff]
      %v376 = vld [vmem:[%s370 + $0x28] sm:$0xff]
      %v377 = vld [vmem:[%s370 + $0x30] sm:$0xff]
      %v378 = vld [vmem:[%s370 + $0x38] sm:$0xff]
      %v379 = vld [vmem:[%s370 + $0x40] sm:$0xff]
      %v380 = vld [vmem:[%s370 + $0x48] sm:$0xff]
      %v381 = vld [vmem:[%s370 + $0x50] sm:$0xff]
      %v382 = vld [vmem:[%s370 + $0x58] sm:$0xff]
      %v383 = vld [vmem:[%s370 + $0x60] sm:$0xff]
      %v384 = vld [vmem:[%s370 + $0x68] sm:$0xff]
      %v386 = vsel %vm205, %v368, 0
      %v389 = vsel %vm205, %v369, 0
      %391 = vmatprep.subr.mxu0 0.0
      %392 = vmatpush1.msra.mxu0 0.0
      %393 = vmatprep.subr.mxu0 0.0
      %394 = vmatpush1.msra.mxu0 0.0
      %395 = vmatprep.subr.mxu0 0.0
      %396 = vmatpush1.msra.mxu0 %v384
      %397 = vmatprep.subr.mxu0 0.0
      %398 = vmatpush1.msra.mxu0 %v383
      %399 = vmatprep.subr.mxu0 0.0
      %400 = vmatpush1.msra.mxu0 %v382
      %401 = vmatprep.subr.mxu0 0.0
      %402 = vmatpush1.msra.mxu0 %v381
      %403 = vmatprep.subr.mxu0 0.0
      %404 = vmatpush1.msra.mxu0 %v380
      %405 = vmatprep.subr.mxu0 0.0
      %406 = vmatpush1.msra.mxu0 %v379
      %407 = vmatprep.subr.mxu0 0.0
      %408 = vmatpush1.msra.mxu0 %v378
      %409 = vmatprep.subr.mxu0 0.0
      %410 = vmatpush1.msra.mxu0 %v377
      %411 = vmatprep.subr.mxu0 0.0
      %412 = vmatpush1.msra.mxu0 %v376
      %413 = vmatprep.subr.mxu0 0.0
      %414 = vmatpush1.msra.mxu0 %v375
      %415 = vmatprep.subr.mxu0 0.0
      %416 = vmatpush1.msra.mxu0 %v374
      %417 = vmatprep.subr.mxu0 0.0
      %418 = vmatpush1.msra.mxu0 %v373
      %419 = vmatprep.subr.mxu0 0.0
      %420 = vmatpush1.msra.mxu0 %v372
      %421 = vmatprep.subr.mxu0 0.0
      %422 = vmatpush1.msra.mxu0 %v371
      %423 = vmatprep.subr.mxu0 0.0
      %424 = vmatpush2.msra.mxu0 0.0
      %425 = vmatprep.subr.mxu0 0.0
      %426 = vmatpush2.msra.mxu0 0.0
      %427 = vmatprep.subr.mxu0 0.0
      %428 = vmatpush2.msra.mxu0 0.0
      %429 = vmatprep.subr.mxu0 0.0
      %430 = vmatpush2.msra.mxu0 0.0
      %431 = vmatprep.subr.mxu0 0.0
      %432 = vmatpush2.msra.mxu0 0.0
      %433 = vmatprep.subr.mxu0 0.0
      %434 = vmatpush2.msra.mxu0 0.0
      %435 = vmatprep.subr.mxu0 0.0
      %436 = vmatpush2.msra.mxu0 0.0
      %437 = vmatprep.subr.mxu0 0.0
      %438 = vmatpush2.msra.mxu0 0.0
      %439 = vmatprep.subr.mxu0 0.0
      %440 = vmatpush2.msra.mxu0 0.0
      %441 = vmatprep.subr.mxu0 0.0
      %442 = vmatpush2.msra.mxu0 0.0
      %443 = vmatprep.subr.mxu0 0.0
      %444 = vmatpush2.msra.mxu0 0.0
      %445 = vmatprep.subr.mxu0 0.0
      %446 = vmatpush2.msra.mxu0 0.0
      %447 = vmatprep.subr.mxu0 0.0
      %448 = vmatpush2.msra.mxu0 0.0
      %449 = vmatprep.subr.mxu0 0.0
      %450 = vmatpush2.msra.mxu0 0.0
      %451 = vmatprep.subr.mxu0 0.0
      %452 = vmatpush2.msra.mxu0 0.0
      %453 = vmatprep.subr.mxu0 0.0
      %454 = vmatpush2.msra.mxu0 0.0
      %455 = vmatprep.mubr.f32.mxu0 0.0
      %456 = vmatmul.mubr.f32.gmra.mxu0 %v386
      %v457 = vpop.f32.mrf.mxu0
      %v458 = vadd.f32 0.0, %v457
      %v459 = vpop.f32.mrf.mxu0
      %460 = vmatprep.mubr.f32.mxu0 0.0
      %461 = vmatmul.mubr.f32.gmra.mxu0 %v389
      %v462 = vpop.f32.mrf.mxu0
      %v463 = vadd.f32 0.0, %v462
      %v464 = vpop.f32.mrf.mxu0
      %465 = vdwg.mxu0
      %v466 = vadd.f32 %v360, %v458
      %v467 = vadd.f32 %v365, %v463
      %v468 = vld [vmem:[%s187 + $0x1] sm:$0xff]
      %v469 = vld [vmem:[%s187 + $0x9] sm:$0xf]
      %s470 = scalar_lea.vmem %s1, 336
      %v471 = vld [vmem:[%s470] sm:$0xff]
      %v472 = vld [vmem:[%s470 + $0x8] sm:$0xff]
      %v473 = vld [vmem:[%s470 + $0x10] sm:$0xff]
      %v474 = vld [vmem:[%s470 + $0x18] sm:$0xff]
      %v475 = vld [vmem:[%s470 + $0x20] sm:$0xff]
      %v476 = vld [vmem:[%s470 + $0x28] sm:$0xff]
      %v477 = vld [vmem:[%s470 + $0x30] sm:$0xff]
      %v478 = vld [vmem:[%s470 + $0x38] sm:$0xff]
      %v479 = vld [vmem:[%s470 + $0x40] sm:$0xff]
      %v480 = vld [vmem:[%s470 + $0x48] sm:$0xff]
      %v481 = vld [vmem:[%s470 + $0x50] sm:$0xff]
      %v482 = vld [vmem:[%s470 + $0x58] sm:$0xff]
      %v483 = vld [vmem:[%s470 + $0x60] sm:$0xff]
      %v484 = vld [vmem:[%s470 + $0x68] sm:$0xff]
      %v486 = vsel %vm205, %v468, 0
      %v489 = vsel %vm205, %v469, 0
      %491 = vmatprep.subr.mxu0 0.0
      %492 = vmatpush1.msra.mxu0 0.0
      %493 = vmatprep.subr.mxu0 0.0
      %494 = vmatpush1.msra.mxu0 0.0
      %495 = vmatprep.subr.mxu0 0.0
      %496 = vmatpush1.msra.mxu0 %v484
      %497 = vmatprep.subr.mxu0 0.0
      %498 = vmatpush1.msra.mxu0 %v483
      %499 = vmatprep.subr.mxu0 0.0
      %500 = vmatpush1.msra.mxu0 %v482
      %501 = vmatprep.subr.mxu0 0.0
      %502 = vmatpush1.msra.mxu0 %v481
      %503 = vmatprep.subr.mxu0 0.0
      %504 = vmatpush1.msra.mxu0 %v480
      %505 = vmatprep.subr.mxu0 0.0
      %506 = vmatpush1.msra.mxu0 %v479
      %507 = vmatprep.subr.mxu0 0.0
      %508 = vmatpush1.msra.mxu0 %v478
      %509 = vmatprep.subr.mxu0 0.0
      %510 = vmatpush1.msra.mxu0 %v477
      %511 = vmatprep.subr.mxu0 0.0
      %512 = vmatpush1.msra.mxu0 %v476
      %513 = vmatprep.subr.mxu0 0.0
      %514 = vmatpush1.msra.mxu0 %v475
      %515 = vmatprep.subr.mxu0 0.0
      %516 = vmatpush1.msra.mxu0 %v474
      %517 = vmatprep.subr.mxu0 0.0
      %518 = vmatpush1.msra.mxu0 %v473
      %519 = vmatprep.subr.mxu0 0.0
      %520 = vmatpush1.msra.mxu0 %v472
      %521 = vmatprep.subr.mxu0 0.0
      %522 = vmatpush1.msra.mxu0 %v471
      %523 = vmatprep.subr.mxu0 0.0
      %524 = vmatpush2.msra.mxu0 0.0
      %525 = vmatprep.subr.mxu0 0.0
      %526 = vmatpush2.msra.mxu0 0.0
      %527 = vmatprep.subr.mxu0 0.0
      %528 = vmatpush2.msra.mxu0 0.0
      %529 = vmatprep.subr.mxu0 0.0
      %530 = vmatpush2.msra.mxu0 0.0
      %531 = vmatprep.subr.mxu0 0.0
      %532 = vmatpush2.msra.mxu0 0.0
      %533 = vmatprep.subr.mxu0 0.0
      %534 = vmatpush2.msra.mxu0 0.0
      %535 = vmatprep.subr.mxu0 0.0
      %536 = vmatpush2.msra.mxu0 0.0
      %537 = vmatprep.subr.mxu0 0.0
      %538 = vmatpush2.msra.mxu0 0.0
      %539 = vmatprep.subr.mxu0 0.0
      %540 = vmatpush2.msra.mxu0 0.0
      %541 = vmatprep.subr.mxu0 0.0
      %542 = vmatpush2.msra.mxu0 0.0
      %543 = vmatprep.subr.mxu0 0.0
      %544 = vmatpush2.msra.mxu0 0.0
      %545 = vmatprep.subr.mxu0 0.0
      %546 = vmatpush2.msra.mxu0 0.0
      %547 = vmatprep.subr.mxu0 0.0
      %548 = vmatpush2.msra.mxu0 0.0
      %549 = vmatprep.subr.mxu0 0.0
      %550 = vmatpush2.msra.mxu0 0.0
      %551 = vmatprep.subr.mxu0 0.0
      %552 = vmatpush2.msra.mxu0 0.0
      %553 = vmatprep.subr.mxu0 0.0
      %554 = vmatpush2.msra.mxu0 0.0
      %555 = vmatprep.mubr.f32.mxu0 0.0
      %556 = vmatmul.mubr.f32.gmra.mxu0 %v486
      %v557 = vpop.f32.mrf.mxu0
      %v558 = vadd.f32 0.0, %v557
      %v559 = vpop.f32.mrf.mxu0
      %560 = vmatprep.mubr.f32.mxu0 0.0
      %561 = vmatmul.mubr.f32.gmra.mxu0 %v489
      %v562 = vpop.f32.mrf.mxu0
      %v563 = vadd.f32 0.0, %v562
      %v564 = vpop.f32.mrf.mxu0
      %565 = vdwg.mxu0
      %v566 = vadd.f32 %v466, %v558
      %v567 = vadd.f32 %v467, %v563
      %v568 = vld [vmem:[%s165 + $0x2] sm:$0xff]
      %v569 = vld [vmem:[%s165 + $0xa] sm:$0xf]
      %s570 = scalar_lea.vmem %s1, 448
      %v571 = vld [vmem:[%s570] sm:$0xff]
      %v572 = vld [vmem:[%s570 + $0x8] sm:$0xff]
      %v573 = vld [vmem:[%s570 + $0x10] sm:$0xff]
      %v574 = vld [vmem:[%s570 + $0x18] sm:$0xff]
      %v575 = vld [vmem:[%s570 + $0x20] sm:$0xff]
      %v576 = vld [vmem:[%s570 + $0x28] sm:$0xff]
      %v577 = vld [vmem:[%s570 + $0x30] sm:$0xff]
      %v578 = vld [vmem:[%s570 + $0x38] sm:$0xff]
      %v579 = vld [vmem:[%s570 + $0x40] sm:$0xff]
      %v580 = vld [vmem:[%s570 + $0x48] sm:$0xff]
      %v581 = vld [vmem:[%s570 + $0x50] sm:$0xff]
      %v582 = vld [vmem:[%s570 + $0x58] sm:$0xff]
      %v583 = vld [vmem:[%s570 + $0x60] sm:$0xff]
      %v584 = vld [vmem:[%s570 + $0x68] sm:$0xff]
      %v586 = vsel %vm205, %v568, 0
      %v589 = vsel %vm205, %v569, 0
      %591 = vmatprep.subr.mxu0 0.0
      %592 = vmatpush1.msra.mxu0 0.0
      %593 = vmatprep.subr.mxu0 0.0
      %594 = vmatpush1.msra.mxu0 0.0
      %595 = vmatprep.subr.mxu0 0.0
      %596 = vmatpush1.msra.mxu0 %v584
      %597 = vmatprep.subr.mxu0 0.0
      %598 = vmatpush1.msra.mxu0 %v583
      %599 = vmatprep.subr.mxu0 0.0
      %600 = vmatpush1.msra.mxu0 %v582
      %601 = vmatprep.subr.mxu0 0.0
      %602 = vmatpush1.msra.mxu0 %v581
      %603 = vmatprep.subr.mxu0 0.0
      %604 = vmatpush1.msra.mxu0 %v580
      %605 = vmatprep.subr.mxu0 0.0
      %606 = vmatpush1.msra.mxu0 %v579
      %607 = vmatprep.subr.mxu0 0.0
      %608 = vmatpush1.msra.mxu0 %v578
      %609 = vmatprep.subr.mxu0 0.0
      %610 = vmatpush1.msra.mxu0 %v577
      %611 = vmatprep.subr.mxu0 0.0
      %612 = vmatpush1.msra.mxu0 %v576
      %613 = vmatprep.subr.mxu0 0.0
      %614 = vmatpush1.msra.mxu0 %v575
      %615 = vmatprep.subr.mxu0 0.0
      %616 = vmatpush1.msra.mxu0 %v574
      %617 = vmatprep.subr.mxu0 0.0
      %618 = vmatpush1.msra.mxu0 %v573
      %619 = vmatprep.subr.mxu0 0.0
      %620 = vmatpush1.msra.mxu0 %v572
      %621 = vmatprep.subr.mxu0 0.0
      %622 = vmatpush1.msra.mxu0 %v571
      %623 = vmatprep.subr.mxu0 0.0
      %624 = vmatpush2.msra.mxu0 0.0
      %625 = vmatprep.subr.mxu0 0.0
      %626 = vmatpush2.msra.mxu0 0.0
      %627 = vmatprep.subr.mxu0 0.0
      %628 = vmatpush2.msra.mxu0 0.0
      %629 = vmatprep.subr.mxu0 0.0
      %630 = vmatpush2.msra.mxu0 0.0
      %631 = vmatprep.subr.mxu0 0.0
      %632 = vmatpush2.msra.mxu0 0.0
      %633 = vmatprep.subr.mxu0 0.0
      %634 = vmatpush2.msra.mxu0 0.0
      %635 = vmatprep.subr.mxu0 0.0
      %636 = vmatpush2.msra.mxu0 0.0
      %637 = vmatprep.subr.mxu0 0.0
      %638 = vmatpush2.msra.mxu0 0.0
      %639 = vmatprep.subr.mxu0 0.0
      %640 = vmatpush2.msra.mxu0 0.0
      %641 = vmatprep.subr.mxu0 0.0
      %642 = vmatpush2.msra.mxu0 0.0
      %643 = vmatprep.subr.mxu0 0.0
      %644 = vmatpush2.msra.mxu0 0.0
      %645 = vmatprep.subr.mxu0 0.0
      %646 = vmatpush2.msra.mxu0 0.0
      %647 = vmatprep.subr.mxu0 0.0
      %648 = vmatpush2.msra.mxu0 0.0
      %649 = vmatprep.subr.mxu0 0.0
      %650 = vmatpush2.msra.mxu0 0.0
      %651 = vmatprep.subr.mxu0 0.0
      %652 = vmatpush2.msra.mxu0 0.0
      %653 = vmatprep.subr.mxu0 0.0
      %654 = vmatpush2.msra.mxu0 0.0
      %655 = vmatprep.mubr.f32.mxu0 0.0
      %656 = vmatmul.mubr.f32.gmra.mxu0 %v586
      %v657 = vpop.f32.mrf.mxu0
      %v658 = vadd.f32 0.0, %v657
      %v659 = vpop.f32.mrf.mxu0
      %660 = vmatprep.mubr.f32.mxu0 0.0
      %661 = vmatmul.mubr.f32.gmra.mxu0 %v589
      %v662 = vpop.f32.mrf.mxu0
      %v663 = vadd.f32 0.0, %v662
      %v664 = vpop.f32.mrf.mxu0
      %665 = vdwg.mxu0
      %v666 = vadd.f32 %v566, %v658
      %v667 = vadd.f32 %v567, %v663
      %s668 = scalar_lea.vmem %s1, 560
      %v669 = vld [vmem:[%s668] sm:$0xff]
      %v670 = vld [vmem:[%s668 + $0x8] sm:$0xff]
      %v671 = vld [vmem:[%s668 + $0x10] sm:$0xff]
      %v672 = vld [vmem:[%s668 + $0x18] sm:$0xff]
      %v673 = vld [vmem:[%s668 + $0x20] sm:$0xff]
      %v674 = vld [vmem:[%s668 + $0x28] sm:$0xff]
      %v675 = vld [vmem:[%s668 + $0x30] sm:$0xff]
      %v676 = vld [vmem:[%s668 + $0x38] sm:$0xff]
      %v677 = vld [vmem:[%s668 + $0x40] sm:$0xff]
      %v678 = vld [vmem:[%s668 + $0x48] sm:$0xff]
      %v679 = vld [vmem:[%s668 + $0x50] sm:$0xff]
      %v680 = vld [vmem:[%s668 + $0x58] sm:$0xff]
      %v681 = vld [vmem:[%s668 + $0x60] sm:$0xff]
      %v682 = vld [vmem:[%s668 + $0x68] sm:$0xff]
      %s683 = scalar_lea.vmem %s1, 672
      %v684 = vld [vmem:[%s683] sm:$0xff]
      %v685 = vld [vmem:[%s683 + $0x8] sm:$0xff]
      %v686 = vld [vmem:[%s683 + $0x10] sm:$0xff]
      %v687 = vld [vmem:[%s683 + $0x18] sm:$0xff]
      %v688 = vld [vmem:[%s683 + $0x20] sm:$0xff]
      %v689 = vld [vmem:[%s683 + $0x28] sm:$0xff]
      %v690 = vld [vmem:[%s683 + $0x30] sm:$0xff]
      %v691 = vld [vmem:[%s683 + $0x38] sm:$0xff]
      %v692 = vld [vmem:[%s683 + $0x40] sm:$0xff]
      %v693 = vld [vmem:[%s683 + $0x48] sm:$0xff]
      %v694 = vld [vmem:[%s683 + $0x50] sm:$0xff]
      %v695 = vld [vmem:[%s683 + $0x58] sm:$0xff]
      %v696 = vld [vmem:[%s683 + $0x60] sm:$0xff]
      %v697 = vld [vmem:[%s683 + $0x68] sm:$0xff]
      %698 = vmatprep.subr.mxu0 0.0
      %699 = vmatpush1.msra.mxu0 0.0
      %700 = vmatprep.subr.mxu0 0.0
      %701 = vmatpush1.msra.mxu0 0.0
      %702 = vmatprep.subr.mxu0 0.0
      %703 = vmatpush1.msra.mxu0 %v697
      %704 = vmatprep.subr.mxu0 0.0
      %705 = vmatpush1.msra.mxu0 %v696
      %706 = vmatprep.subr.mxu0 0.0
      %707 = vmatpush1.msra.mxu0 %v695
      %708 = vmatprep.subr.mxu0 0.0
      %709 = vmatpush1.msra.mxu0 %v694
      %710 = vmatprep.subr.mxu0 0.0
      %711 = vmatpush1.msra.mxu0 %v693
      %712 = vmatprep.subr.mxu0 0.0
      %713 = vmatpush1.msra.mxu0 %v692
      %714 = vmatprep.subr.mxu0 0.0
      %715 = vmatpush1.msra.mxu0 %v691
      %716 = vmatprep.subr.mxu0 0.0
      %717 = vmatpush1.msra.mxu0 %v690
      %718 = vmatprep.subr.mxu0 0.0
      %719 = vmatpush1.msra.mxu0 %v689
      %720 = vmatprep.subr.mxu0 0.0
      %721 = vmatpush1.msra.mxu0 %v688
      %722 = vmatprep.subr.mxu0 0.0
      %723 = vmatpush1.msra.mxu0 %v687
      %724 = vmatprep.subr.mxu0 0.0
      %725 = vmatpush1.msra.mxu0 %v686
      %726 = vmatprep.subr.mxu0 0.0
      %727 = vmatpush1.msra.mxu0 %v685
      %728 = vmatprep.subr.mxu0 0.0
      %729 = vmatpush1.msra.mxu0 %v684
      %730 = vmatprep.subr.mxu0 0.0
      %731 = vmatpush2.msra.mxu0 0.0
      %732 = vmatprep.subr.mxu0 0.0
      %733 = vmatpush2.msra.mxu0 0.0
      %734 = vmatprep.subr.mxu0 0.0
      %735 = vmatpush2.msra.mxu0 0.0
      %736 = vmatprep.subr.mxu0 0.0
      %737 = vmatpush2.msra.mxu0 0.0
      %738 = vmatprep.subr.mxu0 0.0
      %739 = vmatpush2.msra.mxu0 0.0
      %740 = vmatprep.subr.mxu0 0.0
      %741 = vmatpush2.msra.mxu0 0.0
      %742 = vmatprep.subr.mxu0 0.0
      %743 = vmatpush2.msra.mxu0 0.0
      %744 = vmatprep.subr.mxu0 0.0
      %745 = vmatpush2.msra.mxu0 0.0
      %746 = vmatprep.subr.mxu0 0.0
      %747 = vmatpush2.msra.mxu0 0.0
      %748 = vmatprep.subr.mxu0 0.0
      %749 = vmatpush2.msra.mxu0 0.0
      %750 = vmatprep.subr.mxu0 0.0
      %751 = vmatpush2.msra.mxu0 0.0
      %752 = vmatprep.subr.mxu0 0.0
      %753 = vmatpush2.msra.mxu0 0.0
      %754 = vmatprep.subr.mxu0 0.0
      %755 = vmatpush2.msra.mxu0 0.0
      %756 = vmatprep.subr.mxu0 0.0
      %757 = vmatpush2.msra.mxu0 0.0
      %758 = vmatprep.subr.mxu0 0.0
      %759 = vmatpush2.msra.mxu0 0.0
      %760 = vmatprep.subr.mxu0 0.0
      %761 = vmatpush2.msra.mxu0 0.0
      %762 = vmatprep.mubr.f32.mxu0 0.0
      %763 = vmatmul.mubr.f32.gmra.mxu0 %v207
      %v764 = vpop.f32.mrf.mxu0
      %v765 = vadd.f32 0.0, %v764
      %v766 = vpop.f32.mrf.mxu0
      %767 = vmatprep.mubr.f32.mxu0 0.0
      %768 = vmatmul.mubr.f32.gmra.mxu0 %v210
      %v769 = vpop.f32.mrf.mxu0
      %v770 = vadd.f32 0.0, %v769
      %v771 = vpop.f32.mrf.mxu0
      %772 = vdwg.mxu0
      %773 = vmatprep.subr.mxu0 0.0
      %774 = vmatpush1.msra.mxu0 0.0
      %775 = vmatprep.subr.mxu0 0.0
      %776 = vmatpush1.msra.mxu0 0.0
      %777 = vmatprep.subr.mxu0 0.0
      %778 = vmatpush1.msra.mxu0 %v682
      %779 = vmatprep.subr.mxu0 0.0
      %780 = vmatpush1.msra.mxu0 %v681
      %781 = vmatprep.subr.mxu0 0.0
      %782 = vmatpush1.msra.mxu0 %v680
      %783 = vmatprep.subr.mxu0 0.0
      %784 = vmatpush1.msra.mxu0 %v679
      %785 = vmatprep.subr.mxu0 0.0
      %786 = vmatpush1.msra.mxu0 %v678
      %787 = vmatprep.subr.mxu0 0.0
      %788 = vmatpush1.msra.mxu0 %v677
      %789 = vmatprep.subr.mxu0 0.0
      %790 = vmatpush1.msra.mxu0 %v676
      %791 = vmatprep.subr.mxu0 0.0
      %792 = vmatpush1.msra.mxu0 %v675
      %793 = vmatprep.subr.mxu0 0.0
      %794 = vmatpush1.msra.mxu0 %v674
      %795 = vmatprep.subr.mxu0 0.0
      %796 = vmatpush1.msra.mxu0 %v673
      %797 = vmatprep.subr.mxu0 0.0
      %798 = vmatpush1.msra.mxu0 %v672
      %799 = vmatprep.subr.mxu0 0.0
      %800 = vmatpush1.msra.mxu0 %v671
      %801 = vmatprep.subr.mxu0 0.0
      %802 = vmatpush1.msra.mxu0 %v670
      %803 = vmatprep.subr.mxu0 0.0
      %804 = vmatpush1.msra.mxu0 %v669
      %805 = vmatprep.subr.mxu0 0.0
      %806 = vmatpush2.msra.mxu0 0.0
      %807 = vmatprep.subr.mxu0 0.0
      %808 = vmatpush2.msra.mxu0 0.0
      %809 = vmatprep.subr.mxu0 0.0
      %810 = vmatpush2.msra.mxu0 0.0
      %811 = vmatprep.subr.mxu0 0.0
      %812 = vmatpush2.msra.mxu0 0.0
      %813 = vmatprep.subr.mxu0 0.0
      %814 = vmatpush2.msra.mxu0 0.0
      %815 = vmatprep.subr.mxu0 0.0
      %816 = vmatpush2.msra.mxu0 0.0
      %817 = vmatprep.subr.mxu0 0.0
      %818 = vmatpush2.msra.mxu0 0.0
      %819 = vmatprep.subr.mxu0 0.0
      %820 = vmatpush2.msra.mxu0 0.0
      %821 = vmatprep.subr.mxu0 0.0
      %822 = vmatpush2.msra.mxu0 0.0
      %823 = vmatprep.subr.mxu0 0.0
      %824 = vmatpush2.msra.mxu0 0.0
      %825 = vmatprep.subr.mxu0 0.0
      %826 = vmatpush2.msra.mxu0 0.0
      %827 = vmatprep.subr.mxu0 0.0
      %828 = vmatpush2.msra.mxu0 0.0
      %829 = vmatprep.subr.mxu0 0.0
      %830 = vmatpush2.msra.mxu0 0.0
      %831 = vmatprep.subr.mxu0 0.0
      %832 = vmatpush2.msra.mxu0 0.0
      %833 = vmatprep.subr.mxu0 0.0
      %834 = vmatpush2.msra.mxu0 0.0
      %835 = vmatprep.subr.mxu0 0.0
      %836 = vmatpush2.msra.mxu0 0.0
      %837 = vmatprep.mubr.f32.mxu0 0.0
      %838 = vmatmul.mubr.f32.gmra.mxu0 %v288
      %v839 = vpop.f32.mrf.mxu0
      %v840 = vadd.f32 %v765, %v839
      %v841 = vpop.f32.mrf.mxu0
      %842 = vmatprep.mubr.f32.mxu0 0.0
      %843 = vmatmul.mubr.f32.gmra.mxu0 %v291
      %v844 = vpop.f32.mrf.mxu0
      %v845 = vadd.f32 %v770, %v844
      %v846 = vpop.f32.mrf.mxu0
      %847 = vdwg.mxu0
      %s848 = scalar_lea.vmem %s1, 784
      %v849 = vld [vmem:[%s848] sm:$0xff]
      %v850 = vld [vmem:[%s848 + $0x8] sm:$0xff]
      %v851 = vld [vmem:[%s848 + $0x10] sm:$0xff]
      %v852 = vld [vmem:[%s848 + $0x18] sm:$0xff]
      %v853 = vld [vmem:[%s848 + $0x20] sm:$0xff]
      %v854 = vld [vmem:[%s848 + $0x28] sm:$0xff]
      %v855 = vld [vmem:[%s848 + $0x30] sm:$0xff]
      %v856 = vld [vmem:[%s848 + $0x38] sm:$0xff]
      %v857 = vld [vmem:[%s848 + $0x40] sm:$0xff]
      %v858 = vld [vmem:[%s848 + $0x48] sm:$0xff]
      %v859 = vld [vmem:[%s848 + $0x50] sm:$0xff]
      %v860 = vld [vmem:[%s848 + $0x58] sm:$0xff]
      %v861 = vld [vmem:[%s848 + $0x60] sm:$0xff]
      %v862 = vld [vmem:[%s848 + $0x68] sm:$0xff]
      %863 = vmatprep.subr.mxu0 0.0
      %864 = vmatpush1.msra.mxu0 0.0
      %865 = vmatprep.subr.mxu0 0.0
      %866 = vmatpush1.msra.mxu0 0.0
      %867 = vmatprep.subr.mxu0 0.0
      %868 = vmatpush1.msra.mxu0 %v862
      %869 = vmatprep.subr.mxu0 0.0
      %870 = vmatpush1.msra.mxu0 %v861
      %871 = vmatprep.subr.mxu0 0.0
      %872 = vmatpush1.msra.mxu0 %v860
      %873 = vmatprep.subr.mxu0 0.0
      %874 = vmatpush1.msra.mxu0 %v859
      %875 = vmatprep.subr.mxu0 0.0
      %876 = vmatpush1.msra.mxu0 %v858
      %877 = vmatprep.subr.mxu0 0.0
      %878 = vmatpush1.msra.mxu0 %v857
      %879 = vmatprep.subr.mxu0 0.0
      %880 = vmatpush1.msra.mxu0 %v856
      %881 = vmatprep.subr.mxu0 0.0
      %882 = vmatpush1.msra.mxu0 %v855
      %883 = vmatprep.subr.mxu0 0.0
      %884 = vmatpush1.msra.mxu0 %v854
      %885 = vmatprep.subr.mxu0 0.0
      %886 = vmatpush1.msra.mxu0 %v853
      %887 = vmatprep.subr.mxu0 0.0
      %888 = vmatpush1.msra.mxu0 %v852
      %889 = vmatprep.subr.mxu0 0.0
      %890 = vmatpush1.msra.mxu0 %v851
      %891 = vmatprep.subr.mxu0 0.0
      %892 = vmatpush1.msra.mxu0 %v850
      %893 = vmatprep.subr.mxu0 0.0
      %894 = vmatpush1.msra.mxu0 %v849
      %895 = vmatprep.subr.mxu0 0.0
      %896 = vmatpush2.msra.mxu0 0.0
      %897 = vmatprep.subr.mxu0 0.0
      %898 = vmatpush2.msra.mxu0 0.0
      %899 = vmatprep.subr.mxu0 0.0
      %900 = vmatpush2.msra.mxu0 0.0
      %901 = vmatprep.subr.mxu0 0.0
      %902 = vmatpush2.msra.mxu0 0.0
      %903 = vmatprep.subr.mxu0 0.0
      %904 = vmatpush2.msra.mxu0 0.0
      %905 = vmatprep.subr.mxu0 0.0
      %906 = vmatpush2.msra.mxu0 0.0
      %907 = vmatprep.subr.mxu0 0.0
      %908 = vmatpush2.msra.mxu0 0.0
      %909 = vmatprep.subr.mxu0 0.0
      %910 = vmatpush2.msra.mxu0 0.0
      %911 = vmatprep.subr.mxu0 0.0
      %912 = vmatpush2.msra.mxu0 0.0
      %913 = vmatprep.subr.mxu0 0.0
      %914 = vmatpush2.msra.mxu0 0.0
      %915 = vmatprep.subr.mxu0 0.0
      %916 = vmatpush2.msra.mxu0 0.0
      %917 = vmatprep.subr.mxu0 0.0
      %918 = vmatpush2.msra.mxu0 0.0
      %919 = vmatprep.subr.mxu0 0.0
      %920 = vmatpush2.msra.mxu0 0.0
      %921 = vmatprep.subr.mxu0 0.0
      %922 = vmatpush2.msra.mxu0 0.0
      %923 = vmatprep.subr.mxu0 0.0
      %924 = vmatpush2.msra.mxu0 0.0
      %925 = vmatprep.subr.mxu0 0.0
      %926 = vmatpush2.msra.mxu0 0.0
      %927 = vmatprep.mubr.f32.mxu0 0.0
      %928 = vmatmul.mubr.f32.gmra.mxu0 %v386
      %v929 = vpop.f32.mrf.mxu0
      %v930 = vadd.f32 0.0, %v929
      %v931 = vpop.f32.mrf.mxu0
      %932 = vmatprep.mubr.f32.mxu0 0.0
      %933 = vmatmul.mubr.f32.gmra.mxu0 %v389
      %v934 = vpop.f32.mrf.mxu0
      %v935 = vadd.f32 0.0, %v934
      %v936 = vpop.f32.mrf.mxu0
      %937 = vdwg.mxu0
      %v938 = vadd.f32 %v840, %v930
      %v939 = vadd.f32 %v845, %v935
      %s940 = scalar_lea.vmem %s1, 896
      %v941 = vld [vmem:[%s940] sm:$0xff]
      %v942 = vld [vmem:[%s940 + $0x8] sm:$0xff]
      %v943 = vld [vmem:[%s940 + $0x10] sm:$0xff]
      %v944 = vld [vmem:[%s940 + $0x18] sm:$0xff]
      %v945 = vld [vmem:[%s940 + $0x20] sm:$0xff]
      %v946 = vld [vmem:[%s940 + $0x28] sm:$0xff]
      %v947 = vld [vmem:[%s940 + $0x30] sm:$0xff]
      %v948 = vld [vmem:[%s940 + $0x38] sm:$0xff]
      %v949 = vld [vmem:[%s940 + $0x40] sm:$0xff]
      %v950 = vld [vmem:[%s940 + $0x48] sm:$0xff]
      %v951 = vld [vmem:[%s940 + $0x50] sm:$0xff]
      %v952 = vld [vmem:[%s940 + $0x58] sm:$0xff]
      %v953 = vld [vmem:[%s940 + $0x60] sm:$0xff]
      %v954 = vld [vmem:[%s940 + $0x68] sm:$0xff]
      %955 = vmatprep.subr.mxu0 0.0
      %956 = vmatpush1.msra.mxu0 0.0
      %957 = vmatprep.subr.mxu0 0.0
      %958 = vmatpush1.msra.mxu0 0.0
      %959 = vmatprep.subr.mxu0 0.0
      %960 = vmatpush1.msra.mxu0 %v954
      %961 = vmatprep.subr.mxu0 0.0
      %962 = vmatpush1.msra.mxu0 %v953
      %963 = vmatprep.subr.mxu0 0.0
      %964 = vmatpush1.msra.mxu0 %v952
      %965 = vmatprep.subr.mxu0 0.0
      %966 = vmatpush1.msra.mxu0 %v951
      %967 = vmatprep.subr.mxu0 0.0
      %968 = vmatpush1.msra.mxu0 %v950
      %969 = vmatprep.subr.mxu0 0.0
      %970 = vmatpush1.msra.mxu0 %v949
      %971 = vmatprep.subr.mxu0 0.0
      %972 = vmatpush1.msra.mxu0 %v948
      %973 = vmatprep.subr.mxu0 0.0
      %974 = vmatpush1.msra.mxu0 %v947
      %975 = vmatprep.subr.mxu0 0.0
      %976 = vmatpush1.msra.mxu0 %v946
      %977 = vmatprep.subr.mxu0 0.0
      %978 = vmatpush1.msra.mxu0 %v945
      %979 = vmatprep.subr.mxu0 0.0
      %980 = vmatpush1.msra.mxu0 %v944
      %981 = vmatprep.subr.mxu0 0.0
      %982 = vmatpush1.msra.mxu0 %v943
      %983 = vmatprep.subr.mxu0 0.0
      %984 = vmatpush1.msra.mxu0 %v942
      %985 = vmatprep.subr.mxu0 0.0
      %986 = vmatpush1.msra.mxu0 %v941
      %987 = vmatprep.subr.mxu0 0.0
      %988 = vmatpush2.msra.mxu0 0.0
      %989 = vmatprep.subr.mxu0 0.0
      %990 = vmatpush2.msra.mxu0 0.0
      %991 = vmatprep.subr.mxu0 0.0
      %992 = vmatpush2.msra.mxu0 0.0
      %993 = vmatprep.subr.mxu0 0.0
      %994 = vmatpush2.msra.mxu0 0.0
      %995 = vmatprep.subr.mxu0 0.0
      %996 = vmatpush2.msra.mxu0 0.0
      %997 = vmatprep.subr.mxu0 0.0
      %998 = vmatpush2.msra.mxu0 0.0
      %999 = vmatprep.subr.mxu0 0.0
      %1000 = vmatpush2.msra.mxu0 0.0
      %1001 = vmatprep.subr.mxu0 0.0
      %1002 = vmatpush2.msra.mxu0 0.0
      %1003 = vmatprep.subr.mxu0 0.0
      %1004 = vmatpush2.msra.mxu0 0.0
      %1005 = vmatprep.subr.mxu0 0.0
      %1006 = vmatpush2.msra.mxu0 0.0
      %1007 = vmatprep.subr.mxu0 0.0
      %1008 = vmatpush2.msra.mxu0 0.0
      %1009 = vmatprep.subr.mxu0 0.0
      %1010 = vmatpush2.msra.mxu0 0.0
      %1011 = vmatprep.subr.mxu0 0.0
      %1012 = vmatpush2.msra.mxu0 0.0
      %1013 = vmatprep.subr.mxu0 0.0
      %1014 = vmatpush2.msra.mxu0 0.0
      %1015 = vmatprep.subr.mxu0 0.0
      %1016 = vmatpush2.msra.mxu0 0.0
      %1017 = vmatprep.subr.mxu0 0.0
      %1018 = vmatpush2.msra.mxu0 0.0
      %1019 = vmatprep.mubr.f32.mxu0 0.0
      %1020 = vmatmul.mubr.f32.gmra.mxu0 %v486
      %v1021 = vpop.f32.mrf.mxu0
      %v1022 = vadd.f32 0.0, %v1021
      %v1023 = vpop.f32.mrf.mxu0
      %1024 = vmatprep.mubr.f32.mxu0 0.0
      %1025 = vmatmul.mubr.f32.gmra.mxu0 %v489
      %v1026 = vpop.f32.mrf.mxu0
      %v1027 = vadd.f32 0.0, %v1026
      %v1028 = vpop.f32.mrf.mxu0
      %1029 = vdwg.mxu0
      %v1030 = vadd.f32 %v938, %v1022
      %v1031 = vadd.f32 %v939, %v1027
      %s1032 = scalar_lea.vmem %s1, 1008
      %v1033 = vld [vmem:[%s1032] sm:$0xff]
      %v1034 = vld [vmem:[%s1032 + $0x8] sm:$0xff]
      %v1035 = vld [vmem:[%s1032 + $0x10] sm:$0xff]
      %v1036 = vld [vmem:[%s1032 + $0x18] sm:$0xff]
      %v1037 = vld [vmem:[%s1032 + $0x20] sm:$0xff]
      %v1038 = vld [vmem:[%s1032 + $0x28] sm:$0xff]
      %v1039 = vld [vmem:[%s1032 + $0x30] sm:$0xff]
      %v1040 = vld [vmem:[%s1032 + $0x38] sm:$0xff]
      %v1041 = vld [vmem:[%s1032 + $0x40] sm:$0xff]
      %v1042 = vld [vmem:[%s1032 + $0x48] sm:$0xff]
      %v1043 = vld [vmem:[%s1032 + $0x50] sm:$0xff]
      %v1044 = vld [vmem:[%s1032 + $0x58] sm:$0xff]
      %v1045 = vld [vmem:[%s1032 + $0x60] sm:$0xff]
      %v1046 = vld [vmem:[%s1032 + $0x68] sm:$0xff]
      %1047 = vmatprep.subr.mxu0 0.0
      %1048 = vmatpush1.msra.mxu0 0.0
      %1049 = vmatprep.subr.mxu0 0.0
      %1050 = vmatpush1.msra.mxu0 0.0
      %1051 = vmatprep.subr.mxu0 0.0
      %1052 = vmatpush1.msra.mxu0 %v1046
      %1053 = vmatprep.subr.mxu0 0.0
      %1054 = vmatpush1.msra.mxu0 %v1045
      %1055 = vmatprep.subr.mxu0 0.0
      %1056 = vmatpush1.msra.mxu0 %v1044
      %1057 = vmatprep.subr.mxu0 0.0
      %1058 = vmatpush1.msra.mxu0 %v1043
      %1059 = vmatprep.subr.mxu0 0.0
      %1060 = vmatpush1.msra.mxu0 %v1042
      %1061 = vmatprep.subr.mxu0 0.0
      %1062 = vmatpush1.msra.mxu0 %v1041
      %1063 = vmatprep.subr.mxu0 0.0
      %1064 = vmatpush1.msra.mxu0 %v1040
      %1065 = vmatprep.subr.mxu0 0.0
      %1066 = vmatpush1.msra.mxu0 %v1039
      %1067 = vmatprep.subr.mxu0 0.0
      %1068 = vmatpush1.msra.mxu0 %v1038
      %1069 = vmatprep.subr.mxu0 0.0
      %1070 = vmatpush1.msra.mxu0 %v1037
      %1071 = vmatprep.subr.mxu0 0.0
      %1072 = vmatpush1.msra.mxu0 %v1036
      %1073 = vmatprep.subr.mxu0 0.0
      %1074 = vmatpush1.msra.mxu0 %v1035
      %1075 = vmatprep.subr.mxu0 0.0
      %1076 = vmatpush1.msra.mxu0 %v1034
      %1077 = vmatprep.subr.mxu0 0.0
      %1078 = vmatpush1.msra.mxu0 %v1033
      %1079 = vmatprep.subr.mxu0 0.0
      %1080 = vmatpush2.msra.mxu0 0.0
      %1081 = vmatprep.subr.mxu0 0.0
      %1082 = vmatpush2.msra.mxu0 0.0
      %1083 = vmatprep.subr.mxu0 0.0
      %1084 = vmatpush2.msra.mxu0 0.0
      %1085 = vmatprep.subr.mxu0 0.0
      %1086 = vmatpush2.msra.mxu0 0.0
      %1087 = vmatprep.subr.mxu0 0.0
      %1088 = vmatpush2.msra.mxu0 0.0
      %1089 = vmatprep.subr.mxu0 0.0
      %1090 = vmatpush2.msra.mxu0 0.0
      %1091 = vmatprep.subr.mxu0 0.0
      %1092 = vmatpush2.msra.mxu0 0.0
      %1093 = vmatprep.subr.mxu0 0.0
      %1094 = vmatpush2.msra.mxu0 0.0
      %1095 = vmatprep.subr.mxu0 0.0
      %1096 = vmatpush2.msra.mxu0 0.0
      %1097 = vmatprep.subr.mxu0 0.0
      %1098 = vmatpush2.msra.mxu0 0.0
      %1099 = vmatprep.subr.mxu0 0.0
      %1100 = vmatpush2.msra.mxu0 0.0
      %1101 = vmatprep.subr.mxu0 0.0
      %1102 = vmatpush2.msra.mxu0 0.0
      %1103 = vmatprep.subr.mxu0 0.0
      %1104 = vmatpush2.msra.mxu0 0.0
      %1105 = vmatprep.subr.mxu0 0.0
      %1106 = vmatpush2.msra.mxu0 0.0
      %1107 = vmatprep.subr.mxu0 0.0
      %1108 = vmatpush2.msra.mxu0 0.0
      %1109 = vmatprep.subr.mxu0 0.0
      %1110 = vmatpush2.msra.mxu0 0.0
      %1111 = vmatprep.mubr.f32.mxu0 0.0
      %1112 = vmatmul.mubr.f32.gmra.mxu0 %v586
      %v1113 = vpop.f32.mrf.mxu0
      %v1114 = vadd.f32 0.0, %v1113
      %v1115 = vpop.f32.mrf.mxu0
      %1116 = vmatprep.mubr.f32.mxu0 0.0
      %1117 = vmatmul.mubr.f32.gmra.mxu0 %v589
      %v1118 = vpop.f32.mrf.mxu0
      %v1119 = vadd.f32 0.0, %v1118
      %v1120 = vpop.f32.mrf.mxu0
      %1121 = vdwg.mxu0
      %v1122 = vadd.f32 %v1030, %v1114
      %v1123 = vadd.f32 %v1031, %v1119
      %v1124 = vmax.f32 %v666, %v1122
      %v1125 = vmax.f32 %v667, %v1123
      %1126 = vmatprep.subr.mxu0 0.0
      %1127 = vmatpush1.msra.mxu0 0.0
      %1128 = vmatprep.subr.mxu0 0.0
      %1129 = vmatpush1.msra.mxu0 0.0
      %1130 = vmatprep.subr.mxu0 0.0
      %1131 = vmatpush1.msra.mxu0 %v204
      %1132 = vmatprep.subr.mxu0 0.0
      %1133 = vmatpush1.msra.mxu0 %v203
      %1134 = vmatprep.subr.mxu0 0.0
      %1135 = vmatpush1.msra.mxu0 %v202
      %1136 = vmatprep.subr.mxu0 0.0
      %1137 = vmatpush1.msra.mxu0 %v201
      %1138 = vmatprep.subr.mxu0 0.0
      %1139 = vmatpush1.msra.mxu0 %v200
      %1140 = vmatprep.subr.mxu0 0.0
      %1141 = vmatpush1.msra.mxu0 %v199
      %1142 = vmatprep.subr.mxu0 0.0
      %1143 = vmatpush1.msra.mxu0 %v198
      %1144 = vmatprep.subr.mxu0 0.0
      %1145 = vmatpush1.msra.mxu0 %v197
      %1146 = vmatprep.subr.mxu0 0.0
      %1147 = vmatpush1.msra.mxu0 %v196
      %1148 = vmatprep.subr.mxu0 0.0
      %1149 = vmatpush1.msra.mxu0 %v195
      %1150 = vmatprep.subr.mxu0 0.0
      %1151 = vmatpush1.msra.mxu0 %v194
      %1152 = vmatprep.subr.mxu0 0.0
      %1153 = vmatpush1.msra.mxu0 %v193
      %1154 = vmatprep.subr.mxu0 0.0
      %1155 = vmatpush1.msra.mxu0 %v192
      %1156 = vmatprep.subr.mxu0 0.0
      %1157 = vmatpush1.msra.mxu0 %v191
      %1158 = vmatprep.subr.mxu0 0.0
      %1159 = vmatpush2.msra.mxu0 0.0
      %1160 = vmatprep.subr.mxu0 0.0
      %1161 = vmatpush2.msra.mxu0 0.0
      %1162 = vmatprep.subr.mxu0 0.0
      %1163 = vmatpush2.msra.mxu0 0.0
      %1164 = vmatprep.subr.mxu0 0.0
      %1165 = vmatpush2.msra.mxu0 0.0
      %1166 = vmatprep.subr.mxu0 0.0
      %1167 = vmatpush2.msra.mxu0 0.0
      %1168 = vmatprep.subr.mxu0 0.0
      %1169 = vmatpush2.msra.mxu0 0.0
      %1170 = vmatprep.subr.mxu0 0.0
      %1171 = vmatpush2.msra.mxu0 0.0
      %1172 = vmatprep.subr.mxu0 0.0
      %1173 = vmatpush2.msra.mxu0 0.0
      %1174 = vmatprep.subr.mxu0 0.0
      %1175 = vmatpush2.msra.mxu0 0.0
      %1176 = vmatprep.subr.mxu0 0.0
      %1177 = vmatpush2.msra.mxu0 0.0
      %1178 = vmatprep.subr.mxu0 0.0
      %1179 = vmatpush2.msra.mxu0 0.0
      %1180 = vmatprep.subr.mxu0 0.0
      %1181 = vmatpush2.msra.mxu0 0.0
      %1182 = vmatprep.subr.mxu0 0.0
      %1183 = vmatpush2.msra.mxu0 0.0
      %1184 = vmatprep.subr.mxu0 0.0
      %1185 = vmatpush2.msra.mxu0 0.0
      %1186 = vmatprep.subr.mxu0 0.0
      %1187 = vmatpush2.msra.mxu0 0.0
      %1188 = vmatprep.subr.mxu0 0.0
      %1189 = vmatpush2.msra.mxu0 0.0
      %1190 = vmatprep.mubr.f32.mxu0 0.0
      %1191 = vmatmul.mubr.f32.gmra.mxu0 %v386
      %v1192 = vpop.f32.mrf.mxu0
      %v1193 = vadd.f32 0.0, %v1192
      %v1194 = vpop.f32.mrf.mxu0
      %1195 = vmatprep.mubr.f32.mxu0 0.0
      %1196 = vmatmul.mubr.f32.gmra.mxu0 %v389
      %v1197 = vpop.f32.mrf.mxu0
      %v1198 = vadd.f32 0.0, %v1197
      %v1199 = vpop.f32.mrf.mxu0
      %1200 = vdwg.mxu0
      %1201 = vmatprep.subr.mxu0 0.0
      %1202 = vmatpush1.msra.mxu0 0.0
      %1203 = vmatprep.subr.mxu0 0.0
      %1204 = vmatpush1.msra.mxu0 0.0
      %1205 = vmatprep.subr.mxu0 0.0
      %1206 = vmatpush1.msra.mxu0 %v186
      %1207 = vmatprep.subr.mxu0 0.0
      %1208 = vmatpush1.msra.mxu0 %v185
      %1209 = vmatprep.subr.mxu0 0.0
      %1210 = vmatpush1.msra.mxu0 %v184
      %1211 = vmatprep.subr.mxu0 0.0
      %1212 = vmatpush1.msra.mxu0 %v183
      %1213 = vmatprep.subr.mxu0 0.0
      %1214 = vmatpush1.msra.mxu0 %v182
      %1215 = vmatprep.subr.mxu0 0.0
      %1216 = vmatpush1.msra.mxu0 %v181
      %1217 = vmatprep.subr.mxu0 0.0
      %1218 = vmatpush1.msra.mxu0 %v180
      %1219 = vmatprep.subr.mxu0 0.0
      %1220 = vmatpush1.msra.mxu0 %v179
      %1221 = vmatprep.subr.mxu0 0.0
      %1222 = vmatpush1.msra.mxu0 %v178
      %1223 = vmatprep.subr.mxu0 0.0
      %1224 = vmatpush1.msra.mxu0 %v177
      %1225 = vmatprep.subr.mxu0 0.0
      %1226 = vmatpush1.msra.mxu0 %v176
      %1227 = vmatprep.subr.mxu0 0.0
      %1228 = vmatpush1.msra.mxu0 %v175
      %1229 = vmatprep.subr.mxu0 0.0
      %1230 = vmatpush1.msra.mxu0 %v174
      %1231 = vmatprep.subr.mxu0 0.0
      %1232 = vmatpush1.msra.mxu0 %v173
      %1233 = vmatprep.subr.mxu0 0.0
      %1234 = vmatpush2.msra.mxu0 0.0
      %1235 = vmatprep.subr.mxu0 0.0
      %1236 = vmatpush2.msra.mxu0 0.0
      %1237 = vmatprep.subr.mxu0 0.0
      %1238 = vmatpush2.msra.mxu0 0.0
      %1239 = vmatprep.subr.mxu0 0.0
      %1240 = vmatpush2.msra.mxu0 0.0
      %1241 = vmatprep.subr.mxu0 0.0
      %1242 = vmatpush2.msra.mxu0 0.0
      %1243 = vmatprep.subr.mxu0 0.0
      %1244 = vmatpush2.msra.mxu0 0.0
      %1245 = vmatprep.subr.mxu0 0.0
      %1246 = vmatpush2.msra.mxu0 0.0
      %1247 = vmatprep.subr.mxu0 0.0
      %1248 = vmatpush2.msra.mxu0 0.0
      %1249 = vmatprep.subr.mxu0 0.0
      %1250 = vmatpush2.msra.mxu0 0.0
      %1251 = vmatprep.subr.mxu0 0.0
      %1252 = vmatpush2.msra.mxu0 0.0
      %1253 = vmatprep.subr.mxu0 0.0
      %1254 = vmatpush2.msra.mxu0 0.0
      %1255 = vmatprep.subr.mxu0 0.0
      %1256 = vmatpush2.msra.mxu0 0.0
      %1257 = vmatprep.subr.mxu0 0.0
      %1258 = vmatpush2.msra.mxu0 0.0
      %1259 = vmatprep.subr.mxu0 0.0
      %1260 = vmatpush2.msra.mxu0 0.0
      %1261 = vmatprep.subr.mxu0 0.0
      %1262 = vmatpush2.msra.mxu0 0.0
      %1263 = vmatprep.subr.mxu0 0.0
      %1264 = vmatpush2.msra.mxu0 0.0
      %1265 = vmatprep.mubr.f32.mxu0 0.0
      %1266 = vmatmul.mubr.f32.gmra.mxu0 %v207
      %v1267 = vpop.f32.mrf.mxu0
      %v1268 = vadd.f32 %v1193, %v1267
      %v1269 = vpop.f32.mrf.mxu0
      %1270 = vmatprep.mubr.f32.mxu0 0.0
      %1271 = vmatmul.mubr.f32.gmra.mxu0 %v210
      %v1272 = vpop.f32.mrf.mxu0
      %v1273 = vadd.f32 %v1198, %v1272
      %v1274 = vpop.f32.mrf.mxu0
      %1275 = vdwg.mxu0
      %1276 = vmatprep.subr.mxu0 0.0
      %1277 = vmatpush1.msra.mxu0 0.0
      %1278 = vmatprep.subr.mxu0 0.0
      %1279 = vmatpush1.msra.mxu0 0.0
      %1280 = vmatprep.subr.mxu0 0.0
      %1281 = vmatpush1.msra.mxu0 %v384
      %1282 = vmatprep.subr.mxu0 0.0
      %1283 = vmatpush1.msra.mxu0 %v383
      %1284 = vmatprep.subr.mxu0 0.0
      %1285 = vmatpush1.msra.mxu0 %v382
      %1286 = vmatprep.subr.mxu0 0.0
      %1287 = vmatpush1.msra.mxu0 %v381
      %1288 = vmatprep.subr.mxu0 0.0
      %1289 = vmatpush1.msra.mxu0 %v380
      %1290 = vmatprep.subr.mxu0 0.0
      %1291 = vmatpush1.msra.mxu0 %v379
      %1292 = vmatprep.subr.mxu0 0.0
      %1293 = vmatpush1.msra.mxu0 %v378
      %1294 = vmatprep.subr.mxu0 0.0
      %1295 = vmatpush1.msra.mxu0 %v377
      %1296 = vmatprep.subr.mxu0 0.0
      %1297 = vmatpush1.msra.mxu0 %v376
      %1298 = vmatprep.subr.mxu0 0.0
      %1299 = vmatpush1.msra.mxu0 %v375
      %1300 = vmatprep.subr.mxu0 0.0
      %1301 = vmatpush1.msra.mxu0 %v374
      %1302 = vmatprep.subr.mxu0 0.0
      %1303 = vmatpush1.msra.mxu0 %v373
      %1304 = vmatprep.subr.mxu0 0.0
      %1305 = vmatpush1.msra.mxu0 %v372
      %1306 = vmatprep.subr.mxu0 0.0
      %1307 = vmatpush1.msra.mxu0 %v371
      %1308 = vmatprep.subr.mxu0 0.0
      %1309 = vmatpush2.msra.mxu0 0.0
      %1310 = vmatprep.subr.mxu0 0.0
      %1311 = vmatpush2.msra.mxu0 0.0
      %1312 = vmatprep.subr.mxu0 0.0
      %1313 = vmatpush2.msra.mxu0 0.0
      %1314 = vmatprep.subr.mxu0 0.0
      %1315 = vmatpush2.msra.mxu0 0.0
      %1316 = vmatprep.subr.mxu0 0.0
      %1317 = vmatpush2.msra.mxu0 0.0
      %1318 = vmatprep.subr.mxu0 0.0
      %1319 = vmatpush2.msra.mxu0 0.0
      %1320 = vmatprep.subr.mxu0 0.0
      %1321 = vmatpush2.msra.mxu0 0.0
      %1322 = vmatprep.subr.mxu0 0.0
      %1323 = vmatpush2.msra.mxu0 0.0
      %1324 = vmatprep.subr.mxu0 0.0
      %1325 = vmatpush2.msra.mxu0 0.0
      %1326 = vmatprep.subr.mxu0 0.0
      %1327 = vmatpush2.msra.mxu0 0.0
      %1328 = vmatprep.subr.mxu0 0.0
      %1329 = vmatpush2.msra.mxu0 0.0
      %1330 = vmatprep.subr.mxu0 0.0
      %1331 = vmatpush2.msra.mxu0 0.0
      %1332 = vmatprep.subr.mxu0 0.0
      %1333 = vmatpush2.msra.mxu0 0.0
      %1334 = vmatprep.subr.mxu0 0.0
      %1335 = vmatpush2.msra.mxu0 0.0
      %1336 = vmatprep.subr.mxu0 0.0
      %1337 = vmatpush2.msra.mxu0 0.0
      %1338 = vmatprep.subr.mxu0 0.0
      %1339 = vmatpush2.msra.mxu0 0.0
      %1340 = vmatprep.mubr.f32.mxu0 0.0
      %1341 = vmatmul.mubr.f32.gmra.mxu0 %v486
      %v1342 = vpop.f32.mrf.mxu0
      %v1343 = vadd.f32 0.0, %v1342
      %v1344 = vpop.f32.mrf.mxu0
      %1345 = vmatprep.mubr.f32.mxu0 0.0
      %1346 = vmatmul.mubr.f32.gmra.mxu0 %v489
      %v1347 = vpop.f32.mrf.mxu0
      %v1348 = vadd.f32 0.0, %v1347
      %v1349 = vpop.f32.mrf.mxu0
      %1350 = vdwg.mxu0
      %v1351 = vadd.f32 %v1268, %v1343
      %v1352 = vadd.f32 %v1273, %v1348
      %1353 = vmatprep.subr.mxu0 0.0
      %1354 = vmatpush1.msra.mxu0 0.0
      %1355 = vmatprep.subr.mxu0 0.0
      %1356 = vmatpush1.msra.mxu0 0.0
      %1357 = vmatprep.subr.mxu0 0.0
      %1358 = vmatpush1.msra.mxu0 %v484
      %1359 = vmatprep.subr.mxu0 0.0
      %1360 = vmatpush1.msra.mxu0 %v483
      %1361 = vmatprep.subr.mxu0 0.0
      %1362 = vmatpush1.msra.mxu0 %v482
      %1363 = vmatprep.subr.mxu0 0.0
      %1364 = vmatpush1.msra.mxu0 %v481
      %1365 = vmatprep.subr.mxu0 0.0
      %1366 = vmatpush1.msra.mxu0 %v480
      %1367 = vmatprep.subr.mxu0 0.0
      %1368 = vmatpush1.msra.mxu0 %v479
      %1369 = vmatprep.subr.mxu0 0.0
      %1370 = vmatpush1.msra.mxu0 %v478
      %1371 = vmatprep.subr.mxu0 0.0
      %1372 = vmatpush1.msra.mxu0 %v477
      %1373 = vmatprep.subr.mxu0 0.0
      %1374 = vmatpush1.msra.mxu0 %v476
      %1375 = vmatprep.subr.mxu0 0.0
      %1376 = vmatpush1.msra.mxu0 %v475
      %1377 = vmatprep.subr.mxu0 0.0
      %1378 = vmatpush1.msra.mxu0 %v474
      %1379 = vmatprep.subr.mxu0 0.0
      %1380 = vmatpush1.msra.mxu0 %v473
      %1381 = vmatprep.subr.mxu0 0.0
      %1382 = vmatpush1.msra.mxu0 %v472
      %1383 = vmatprep.subr.mxu0 0.0
      %1384 = vmatpush1.msra.mxu0 %v471
      %1385 = vmatprep.subr.mxu0 0.0
      %1386 = vmatpush2.msra.mxu0 0.0
      %1387 = vmatprep.subr.mxu0 0.0
      %1388 = vmatpush2.msra.mxu0 0.0
      %1389 = vmatprep.subr.mxu0 0.0
      %1390 = vmatpush2.msra.mxu0 0.0
      %1391 = vmatprep.subr.mxu0 0.0
      %1392 = vmatpush2.msra.mxu0 0.0
      %1393 = vmatprep.subr.mxu0 0.0
      %1394 = vmatpush2.msra.mxu0 0.0
      %1395 = vmatprep.subr.mxu0 0.0
      %1396 = vmatpush2.msra.mxu0 0.0
      %1397 = vmatprep.subr.mxu0 0.0
      %1398 = vmatpush2.msra.mxu0 0.0
      %1399 = vmatprep.subr.mxu0 0.0
      %1400 = vmatpush2.msra.mxu0 0.0
      %1401 = vmatprep.subr.mxu0 0.0
      %1402 = vmatpush2.msra.mxu0 0.0
      %1403 = vmatprep.subr.mxu0 0.0
      %1404 = vmatpush2.msra.mxu0 0.0
      %1405 = vmatprep.subr.mxu0 0.0
      %1406 = vmatpush2.msra.mxu0 0.0
      %1407 = vmatprep.subr.mxu0 0.0
      %1408 = vmatpush2.msra.mxu0 0.0
      %1409 = vmatprep.subr.mxu0 0.0
      %1410 = vmatpush2.msra.mxu0 0.0
      %1411 = vmatprep.subr.mxu0 0.0
      %1412 = vmatpush2.msra.mxu0 0.0
      %1413 = vmatprep.subr.mxu0 0.0
      %1414 = vmatpush2.msra.mxu0 0.0
      %1415 = vmatprep.subr.mxu0 0.0
      %1416 = vmatpush2.msra.mxu0 0.0
      %1417 = vmatprep.mubr.f32.mxu0 0.0
      %1418 = vmatmul.mubr.f32.gmra.mxu0 %v586
      %v1419 = vpop.f32.mrf.mxu0
      %v1420 = vadd.f32 0.0, %v1419
      %v1421 = vpop.f32.mrf.mxu0
      %1422 = vmatprep.mubr.f32.mxu0 0.0
      %1423 = vmatmul.mubr.f32.gmra.mxu0 %v589
      %v1424 = vpop.f32.mrf.mxu0
      %v1425 = vadd.f32 0.0, %v1424
      %v1426 = vpop.f32.mrf.mxu0
      %1427 = vdwg.mxu0
      %v1428 = vadd.f32 %v1351, %v1420
      %v1429 = vadd.f32 %v1352, %v1425
      %v1430 = vld [vmem:[%s187 + $0x2] sm:$0xff]
      %v1431 = vld [vmem:[%s187 + $0xa] sm:$0xf]
      %v1433 = vsel %vm205, %v1430, 0
      %v1436 = vsel %vm205, %v1431, 0
      %1438 = vmatprep.subr.mxu0 0.0
      %1439 = vmatpush1.msra.mxu0 0.0
      %1440 = vmatprep.subr.mxu0 0.0
      %1441 = vmatpush1.msra.mxu0 0.0
      %1442 = vmatprep.subr.mxu0 0.0
      %1443 = vmatpush1.msra.mxu0 %v584
      %1444 = vmatprep.subr.mxu0 0.0
      %1445 = vmatpush1.msra.mxu0 %v583
      %1446 = vmatprep.subr.mxu0 0.0
      %1447 = vmatpush1.msra.mxu0 %v582
      %1448 = vmatprep.subr.mxu0 0.0
      %1449 = vmatpush1.msra.mxu0 %v581
      %1450 = vmatprep.subr.mxu0 0.0
      %1451 = vmatpush1.msra.mxu0 %v580
      %1452 = vmatprep.subr.mxu0 0.0
      %1453 = vmatpush1.msra.mxu0 %v579
      %1454 = vmatprep.subr.mxu0 0.0
      %1455 = vmatpush1.msra.mxu0 %v578
      %1456 = vmatprep.subr.mxu0 0.0
      %1457 = vmatpush1.msra.mxu0 %v577
      %1458 = vmatprep.subr.mxu0 0.0
      %1459 = vmatpush1.msra.mxu0 %v576
      %1460 = vmatprep.subr.mxu0 0.0
      %1461 = vmatpush1.msra.mxu0 %v575
      %1462 = vmatprep.subr.mxu0 0.0
      %1463 = vmatpush1.msra.mxu0 %v574
      %1464 = vmatprep.subr.mxu0 0.0
      %1465 = vmatpush1.msra.mxu0 %v573
      %1466 = vmatprep.subr.mxu0 0.0
      %1467 = vmatpush1.msra.mxu0 %v572
      %1468 = vmatprep.subr.mxu0 0.0
      %1469 = vmatpush1.msra.mxu0 %v571
      %1470 = vmatprep.subr.mxu0 0.0
      %1471 = vmatpush2.msra.mxu0 0.0
      %1472 = vmatprep.subr.mxu0 0.0
      %1473 = vmatpush2.msra.mxu0 0.0
      %1474 = vmatprep.subr.mxu0 0.0
      %1475 = vmatpush2.msra.mxu0 0.0
      %1476 = vmatprep.subr.mxu0 0.0
      %1477 = vmatpush2.msra.mxu0 0.0
      %1478 = vmatprep.subr.mxu0 0.0
      %1479 = vmatpush2.msra.mxu0 0.0
      %1480 = vmatprep.subr.mxu0 0.0
      %1481 = vmatpush2.msra.mxu0 0.0
      %1482 = vmatprep.subr.mxu0 0.0
      %1483 = vmatpush2.msra.mxu0 0.0
      %1484 = vmatprep.subr.mxu0 0.0
      %1485 = vmatpush2.msra.mxu0 0.0
      %1486 = vmatprep.subr.mxu0 0.0
      %1487 = vmatpush2.msra.mxu0 0.0
      %1488 = vmatprep.subr.mxu0 0.0
      %1489 = vmatpush2.msra.mxu0 0.0
      %1490 = vmatprep.subr.mxu0 0.0
      %1491 = vmatpush2.msra.mxu0 0.0
      %1492 = vmatprep.subr.mxu0 0.0
      %1493 = vmatpush2.msra.mxu0 0.0
      %1494 = vmatprep.subr.mxu0 0.0
      %1495 = vmatpush2.msra.mxu0 0.0
      %1496 = vmatprep.subr.mxu0 0.0
      %1497 = vmatpush2.msra.mxu0 0.0
      %1498 = vmatprep.subr.mxu0 0.0
      %1499 = vmatpush2.msra.mxu0 0.0
      %1500 = vmatprep.subr.mxu0 0.0
      %1501 = vmatpush2.msra.mxu0 0.0
      %1502 = vmatprep.mubr.f32.mxu0 0.0
      %1503 = vmatmul.mubr.f32.gmra.mxu0 %v1433
      %v1504 = vpop.f32.mrf.mxu0
      %v1505 = vadd.f32 0.0, %v1504
      %v1506 = vpop.f32.mrf.mxu0
      %1507 = vmatprep.mubr.f32.mxu0 0.0
      %1508 = vmatmul.mubr.f32.gmra.mxu0 %v1436
      %v1509 = vpop.f32.mrf.mxu0
      %v1510 = vadd.f32 0.0, %v1509
      %v1511 = vpop.f32.mrf.mxu0
      %1512 = vdwg.mxu0
      %v1513 = vadd.f32 %v1428, %v1505
      %v1514 = vadd.f32 %v1429, %v1510
      %v1515 = vmax.f32 %v1124, %v1513
      %v1516 = vmax.f32 %v1125, %v1514
      %1517 = vmatprep.subr.mxu0 0.0
      %1518 = vmatpush1.msra.mxu0 0.0
      %1519 = vmatprep.subr.mxu0 0.0
      %1520 = vmatpush1.msra.mxu0 0.0
      %1521 = vmatprep.subr.mxu0 0.0
      %1522 = vmatpush1.msra.mxu0 %v697
      %1523 = vmatprep.subr.mxu0 0.0
      %1524 = vmatpush1.msra.mxu0 %v696
      %1525 = vmatprep.subr.mxu0 0.0
      %1526 = vmatpush1.msra.mxu0 %v695
      %1527 = vmatprep.subr.mxu0 0.0
      %1528 = vmatpush1.msra.mxu0 %v694
      %1529 = vmatprep.subr.mxu0 0.0
      %1530 = vmatpush1.msra.mxu0 %v693
      %1531 = vmatprep.subr.mxu0 0.0
      %1532 = vmatpush1.msra.mxu0 %v692
      %1533 = vmatprep.subr.mxu0 0.0
      %1534 = vmatpush1.msra.mxu0 %v691
      %1535 = vmatprep.subr.mxu0 0.0
      %1536 = vmatpush1.msra.mxu0 %v690
      %1537 = vmatprep.subr.mxu0 0.0
      %1538 = vmatpush1.msra.mxu0 %v689
      %1539 = vmatprep.subr.mxu0 0.0
      %1540 = vmatpush1.msra.mxu0 %v688
      %1541 = vmatprep.subr.mxu0 0.0
      %1542 = vmatpush1.msra.mxu0 %v687
      %1543 = vmatprep.subr.mxu0 0.0
      %1544 = vmatpush1.msra.mxu0 %v686
      %1545 = vmatprep.subr.mxu0 0.0
      %1546 = vmatpush1.msra.mxu0 %v685
      %1547 = vmatprep.subr.mxu0 0.0
      %1548 = vmatpush1.msra.mxu0 %v684
      %1549 = vmatprep.subr.mxu0 0.0
      %1550 = vmatpush2.msra.mxu0 0.0
      %1551 = vmatprep.subr.mxu0 0.0
      %1552 = vmatpush2.msra.mxu0 0.0
      %1553 = vmatprep.subr.mxu0 0.0
      %1554 = vmatpush2.msra.mxu0 0.0
      %1555 = vmatprep.subr.mxu0 0.0
      %1556 = vmatpush2.msra.mxu0 0.0
      %1557 = vmatprep.subr.mxu0 0.0
      %1558 = vmatpush2.msra.mxu0 0.0
      %1559 = vmatprep.subr.mxu0 0.0
      %1560 = vmatpush2.msra.mxu0 0.0
      %1561 = vmatprep.subr.mxu0 0.0
      %1562 = vmatpush2.msra.mxu0 0.0
      %1563 = vmatprep.subr.mxu0 0.0
      %1564 = vmatpush2.msra.mxu0 0.0
      %1565 = vmatprep.subr.mxu0 0.0
      %1566 = vmatpush2.msra.mxu0 0.0
      %1567 = vmatprep.subr.mxu0 0.0
      %1568 = vmatpush2.msra.mxu0 0.0
      %1569 = vmatprep.subr.mxu0 0.0
      %1570 = vmatpush2.msra.mxu0 0.0
      %1571 = vmatprep.subr.mxu0 0.0
      %1572 = vmatpush2.msra.mxu0 0.0
      %1573 = vmatprep.subr.mxu0 0.0
      %1574 = vmatpush2.msra.mxu0 0.0
      %1575 = vmatprep.subr.mxu0 0.0
      %1576 = vmatpush2.msra.mxu0 0.0
      %1577 = vmatprep.subr.mxu0 0.0
      %1578 = vmatpush2.msra.mxu0 0.0
      %1579 = vmatprep.subr.mxu0 0.0
      %1580 = vmatpush2.msra.mxu0 0.0
      %1581 = vmatprep.mubr.f32.mxu0 0.0
      %1582 = vmatmul.mubr.f32.gmra.mxu0 %v386
      %v1583 = vpop.f32.mrf.mxu0
      %v1584 = vadd.f32 0.0, %v1583
      %v1585 = vpop.f32.mrf.mxu0
      %1586 = vmatprep.mubr.f32.mxu0 0.0
      %1587 = vmatmul.mubr.f32.gmra.mxu0 %v389
      %v1588 = vpop.f32.mrf.mxu0
      %v1589 = vadd.f32 0.0, %v1588
      %v1590 = vpop.f32.mrf.mxu0
      %1591 = vdwg.mxu0
      %1592 = vmatprep.subr.mxu0 0.0
      %1593 = vmatpush1.msra.mxu0 0.0
      %1594 = vmatprep.subr.mxu0 0.0
      %1595 = vmatpush1.msra.mxu0 0.0
      %1596 = vmatprep.subr.mxu0 0.0
      %1597 = vmatpush1.msra.mxu0 %v682
      %1598 = vmatprep.subr.mxu0 0.0
      %1599 = vmatpush1.msra.mxu0 %v681
      %1600 = vmatprep.subr.mxu0 0.0
      %1601 = vmatpush1.msra.mxu0 %v680
      %1602 = vmatprep.subr.mxu0 0.0
      %1603 = vmatpush1.msra.mxu0 %v679
      %1604 = vmatprep.subr.mxu0 0.0
      %1605 = vmatpush1.msra.mxu0 %v678
      %1606 = vmatprep.subr.mxu0 0.0
      %1607 = vmatpush1.msra.mxu0 %v677
      %1608 = vmatprep.subr.mxu0 0.0
      %1609 = vmatpush1.msra.mxu0 %v676
      %1610 = vmatprep.subr.mxu0 0.0
      %1611 = vmatpush1.msra.mxu0 %v675
      %1612 = vmatprep.subr.mxu0 0.0
      %1613 = vmatpush1.msra.mxu0 %v674
      %1614 = vmatprep.subr.mxu0 0.0
      %1615 = vmatpush1.msra.mxu0 %v673
      %1616 = vmatprep.subr.mxu0 0.0
      %1617 = vmatpush1.msra.mxu0 %v672
      %1618 = vmatprep.subr.mxu0 0.0
      %1619 = vmatpush1.msra.mxu0 %v671
      %1620 = vmatprep.subr.mxu0 0.0
      %1621 = vmatpush1.msra.mxu0 %v670
      %1622 = vmatprep.subr.mxu0 0.0
      %1623 = vmatpush1.msra.mxu0 %v669
      %1624 = vmatprep.subr.mxu0 0.0
      %1625 = vmatpush2.msra.mxu0 0.0
      %1626 = vmatprep.subr.mxu0 0.0
      %1627 = vmatpush2.msra.mxu0 0.0
      %1628 = vmatprep.subr.mxu0 0.0
      %1629 = vmatpush2.msra.mxu0 0.0
      %1630 = vmatprep.subr.mxu0 0.0
      %1631 = vmatpush2.msra.mxu0 0.0
      %1632 = vmatprep.subr.mxu0 0.0
      %1633 = vmatpush2.msra.mxu0 0.0
      %1634 = vmatprep.subr.mxu0 0.0
      %1635 = vmatpush2.msra.mxu0 0.0
      %1636 = vmatprep.subr.mxu0 0.0
      %1637 = vmatpush2.msra.mxu0 0.0
      %1638 = vmatprep.subr.mxu0 0.0
      %1639 = vmatpush2.msra.mxu0 0.0
      %1640 = vmatprep.subr.mxu0 0.0
      %1641 = vmatpush2.msra.mxu0 0.0
      %1642 = vmatprep.subr.mxu0 0.0
      %1643 = vmatpush2.msra.mxu0 0.0
      %1644 = vmatprep.subr.mxu0 0.0
      %1645 = vmatpush2.msra.mxu0 0.0
      %1646 = vmatprep.subr.mxu0 0.0
      %1647 = vmatpush2.msra.mxu0 0.0
      %1648 = vmatprep.subr.mxu0 0.0
      %1649 = vmatpush2.msra.mxu0 0.0
      %1650 = vmatprep.subr.mxu0 0.0
      %1651 = vmatpush2.msra.mxu0 0.0
      %1652 = vmatprep.subr.mxu0 0.0
      %1653 = vmatpush2.msra.mxu0 0.0
      %1654 = vmatprep.subr.mxu0 0.0
      %1655 = vmatpush2.msra.mxu0 0.0
      %1656 = vmatprep.mubr.f32.mxu0 0.0
      %1657 = vmatmul.mubr.f32.gmra.mxu0 %v207
      %v1658 = vpop.f32.mrf.mxu0
      %v1659 = vadd.f32 %v1584, %v1658
      %v1660 = vpop.f32.mrf.mxu0
      %1661 = vmatprep.mubr.f32.mxu0 0.0
      %1662 = vmatmul.mubr.f32.gmra.mxu0 %v210
      %v1663 = vpop.f32.mrf.mxu0
      %v1664 = vadd.f32 %v1589, %v1663
      %v1665 = vpop.f32.mrf.mxu0
      %1666 = vdwg.mxu0
      %1667 = vmatprep.subr.mxu0 0.0
      %1668 = vmatpush1.msra.mxu0 0.0
      %1669 = vmatprep.subr.mxu0 0.0
      %1670 = vmatpush1.msra.mxu0 0.0
      %1671 = vmatprep.subr.mxu0 0.0
      %1672 = vmatpush1.msra.mxu0 %v862
      %1673 = vmatprep.subr.mxu0 0.0
      %1674 = vmatpush1.msra.mxu0 %v861
      %1675 = vmatprep.subr.mxu0 0.0
      %1676 = vmatpush1.msra.mxu0 %v860
      %1677 = vmatprep.subr.mxu0 0.0
      %1678 = vmatpush1.msra.mxu0 %v859
      %1679 = vmatprep.subr.mxu0 0.0
      %1680 = vmatpush1.msra.mxu0 %v858
      %1681 = vmatprep.subr.mxu0 0.0
      %1682 = vmatpush1.msra.mxu0 %v857
      %1683 = vmatprep.subr.mxu0 0.0
      %1684 = vmatpush1.msra.mxu0 %v856
      %1685 = vmatprep.subr.mxu0 0.0
      %1686 = vmatpush1.msra.mxu0 %v855
      %1687 = vmatprep.subr.mxu0 0.0
      %1688 = vmatpush1.msra.mxu0 %v854
      %1689 = vmatprep.subr.mxu0 0.0
      %1690 = vmatpush1.msra.mxu0 %v853
      %1691 = vmatprep.subr.mxu0 0.0
      %1692 = vmatpush1.msra.mxu0 %v852
      %1693 = vmatprep.subr.mxu0 0.0
      %1694 = vmatpush1.msra.mxu0 %v851
      %1695 = vmatprep.subr.mxu0 0.0
      %1696 = vmatpush1.msra.mxu0 %v850
      %1697 = vmatprep.subr.mxu0 0.0
      %1698 = vmatpush1.msra.mxu0 %v849
      %1699 = vmatprep.subr.mxu0 0.0
      %1700 = vmatpush2.msra.mxu0 0.0
      %1701 = vmatprep.subr.mxu0 0.0
      %1702 = vmatpush2.msra.mxu0 0.0
      %1703 = vmatprep.subr.mxu0 0.0
      %1704 = vmatpush2.msra.mxu0 0.0
      %1705 = vmatprep.subr.mxu0 0.0
      %1706 = vmatpush2.msra.mxu0 0.0
      %1707 = vmatprep.subr.mxu0 0.0
      %1708 = vmatpush2.msra.mxu0 0.0
      %1709 = vmatprep.subr.mxu0 0.0
      %1710 = vmatpush2.msra.mxu0 0.0
      %1711 = vmatprep.subr.mxu0 0.0
      %1712 = vmatpush2.msra.mxu0 0.0
      %1713 = vmatprep.subr.mxu0 0.0
      %1714 = vmatpush2.msra.mxu0 0.0
      %1715 = vmatprep.subr.mxu0 0.0
      %1716 = vmatpush2.msra.mxu0 0.0
      %1717 = vmatprep.subr.mxu0 0.0
      %1718 = vmatpush2.msra.mxu0 0.0
      %1719 = vmatprep.subr.mxu0 0.0
      %1720 = vmatpush2.msra.mxu0 0.0
      %1721 = vmatprep.subr.mxu0 0.0
      %1722 = vmatpush2.msra.mxu0 0.0
      %1723 = vmatprep.subr.mxu0 0.0
      %1724 = vmatpush2.msra.mxu0 0.0
      %1725 = vmatprep.subr.mxu0 0.0
      %1726 = vmatpush2.msra.mxu0 0.0
      %1727 = vmatprep.subr.mxu0 0.0
      %1728 = vmatpush2.msra.mxu0 0.0
      %1729 = vmatprep.subr.mxu0 0.0
      %1730 = vmatpush2.msra.mxu0 0.0
      %1731 = vmatprep.mubr.f32.mxu0 0.0
      %1732 = vmatmul.mubr.f32.gmra.mxu0 %v486
      %v1733 = vpop.f32.mrf.mxu0
      %v1734 = vadd.f32 0.0, %v1733
      %v1735 = vpop.f32.mrf.mxu0
      %1736 = vmatprep.mubr.f32.mxu0 0.0
      %1737 = vmatmul.mubr.f32.gmra.mxu0 %v489
      %v1738 = vpop.f32.mrf.mxu0
      %v1739 = vadd.f32 0.0, %v1738
      %v1740 = vpop.f32.mrf.mxu0
      %1741 = vdwg.mxu0
      %v1742 = vadd.f32 %v1659, %v1734
      %v1743 = vadd.f32 %v1664, %v1739
      %1744 = vmatprep.subr.mxu0 0.0
      %1745 = vmatpush1.msra.mxu0 0.0
      %1746 = vmatprep.subr.mxu0 0.0
      %1747 = vmatpush1.msra.mxu0 0.0
      %1748 = vmatprep.subr.mxu0 0.0
      %1749 = vmatpush1.msra.mxu0 %v954
      %1750 = vmatprep.subr.mxu0 0.0
      %1751 = vmatpush1.msra.mxu0 %v953
      %1752 = vmatprep.subr.mxu0 0.0
      %1753 = vmatpush1.msra.mxu0 %v952
      %1754 = vmatprep.subr.mxu0 0.0
      %1755 = vmatpush1.msra.mxu0 %v951
      %1756 = vmatprep.subr.mxu0 0.0
      %1757 = vmatpush1.msra.mxu0 %v950
      %1758 = vmatprep.subr.mxu0 0.0
      %1759 = vmatpush1.msra.mxu0 %v949
      %1760 = vmatprep.subr.mxu0 0.0
      %1761 = vmatpush1.msra.mxu0 %v948
      %1762 = vmatprep.subr.mxu0 0.0
      %1763 = vmatpush1.msra.mxu0 %v947
      %1764 = vmatprep.subr.mxu0 0.0
      %1765 = vmatpush1.msra.mxu0 %v946
      %1766 = vmatprep.subr.mxu0 0.0
      %1767 = vmatpush1.msra.mxu0 %v945
      %1768 = vmatprep.subr.mxu0 0.0
      %1769 = vmatpush1.msra.mxu0 %v944
      %1770 = vmatprep.subr.mxu0 0.0
      %1771 = vmatpush1.msra.mxu0 %v943
      %1772 = vmatprep.subr.mxu0 0.0
      %1773 = vmatpush1.msra.mxu0 %v942
      %1774 = vmatprep.subr.mxu0 0.0
      %1775 = vmatpush1.msra.mxu0 %v941
      %1776 = vmatprep.subr.mxu0 0.0
      %1777 = vmatpush2.msra.mxu0 0.0
      %1778 = vmatprep.subr.mxu0 0.0
      %1779 = vmatpush2.msra.mxu0 0.0
      %1780 = vmatprep.subr.mxu0 0.0
      %1781 = vmatpush2.msra.mxu0 0.0
      %1782 = vmatprep.subr.mxu0 0.0
      %1783 = vmatpush2.msra.mxu0 0.0
      %1784 = vmatprep.subr.mxu0 0.0
      %1785 = vmatpush2.msra.mxu0 0.0
      %1786 = vmatprep.subr.mxu0 0.0
      %1787 = vmatpush2.msra.mxu0 0.0
      %1788 = vmatprep.subr.mxu0 0.0
      %1789 = vmatpush2.msra.mxu0 0.0
      %1790 = vmatprep.subr.mxu0 0.0
      %1791 = vmatpush2.msra.mxu0 0.0
      %1792 = vmatprep.subr.mxu0 0.0
      %1793 = vmatpush2.msra.mxu0 0.0
      %1794 = vmatprep.subr.mxu0 0.0
      %1795 = vmatpush2.msra.mxu0 0.0
      %1796 = vmatprep.subr.mxu0 0.0
      %1797 = vmatpush2.msra.mxu0 0.0
      %1798 = vmatprep.subr.mxu0 0.0
      %1799 = vmatpush2.msra.mxu0 0.0
      %1800 = vmatprep.subr.mxu0 0.0
      %1801 = vmatpush2.msra.mxu0 0.0
      %1802 = vmatprep.subr.mxu0 0.0
      %1803 = vmatpush2.msra.mxu0 0.0
      %1804 = vmatprep.subr.mxu0 0.0
      %1805 = vmatpush2.msra.mxu0 0.0
      %1806 = vmatprep.subr.mxu0 0.0
      %1807 = vmatpush2.msra.mxu0 0.0
      %1808 = vmatprep.mubr.f32.mxu0 0.0
      %1809 = vmatmul.mubr.f32.gmra.mxu0 %v586
      %v1810 = vpop.f32.mrf.mxu0
      %v1811 = vadd.f32 0.0, %v1810
      %v1812 = vpop.f32.mrf.mxu0
      %1813 = vmatprep.mubr.f32.mxu0 0.0
      %1814 = vmatmul.mubr.f32.gmra.mxu0 %v589
      %v1815 = vpop.f32.mrf.mxu0
      %v1816 = vadd.f32 0.0, %v1815
      %v1817 = vpop.f32.mrf.mxu0
      %1818 = vdwg.mxu0
      %v1819 = vadd.f32 %v1742, %v1811
      %v1820 = vadd.f32 %v1743, %v1816
      %1821 = vmatprep.subr.mxu0 0.0
      %1822 = vmatpush1.msra.mxu0 0.0
      %1823 = vmatprep.subr.mxu0 0.0
      %1824 = vmatpush1.msra.mxu0 0.0
      %1825 = vmatprep.subr.mxu0 0.0
      %1826 = vmatpush1.msra.mxu0 %v1046
      %1827 = vmatprep.subr.mxu0 0.0
      %1828 = vmatpush1.msra.mxu0 %v1045
      %1829 = vmatprep.subr.mxu0 0.0
      %1830 = vmatpush1.msra.mxu0 %v1044
      %1831 = vmatprep.subr.mxu0 0.0
      %1832 = vmatpush1.msra.mxu0 %v1043
      %1833 = vmatprep.subr.mxu0 0.0
      %1834 = vmatpush1.msra.mxu0 %v1042
      %1835 = vmatprep.subr.mxu0 0.0
      %1836 = vmatpush1.msra.mxu0 %v1041
      %1837 = vmatprep.subr.mxu0 0.0
      %1838 = vmatpush1.msra.mxu0 %v1040
      %1839 = vmatprep.subr.mxu0 0.0
      %1840 = vmatpush1.msra.mxu0 %v1039
      %1841 = vmatprep.subr.mxu0 0.0
      %1842 = vmatpush1.msra.mxu0 %v1038
      %1843 = vmatprep.subr.mxu0 0.0
      %1844 = vmatpush1.msra.mxu0 %v1037
      %1845 = vmatprep.subr.mxu0 0.0
      %1846 = vmatpush1.msra.mxu0 %v1036
      %1847 = vmatprep.subr.mxu0 0.0
      %1848 = vmatpush1.msra.mxu0 %v1035
      %1849 = vmatprep.subr.mxu0 0.0
      %1850 = vmatpush1.msra.mxu0 %v1034
      %1851 = vmatprep.subr.mxu0 0.0
      %1852 = vmatpush1.msra.mxu0 %v1033
      %1853 = vmatprep.subr.mxu0 0.0
      %1854 = vmatpush2.msra.mxu0 0.0
      %1855 = vmatprep.subr.mxu0 0.0
      %1856 = vmatpush2.msra.mxu0 0.0
      %1857 = vmatprep.subr.mxu0 0.0
      %1858 = vmatpush2.msra.mxu0 0.0
      %1859 = vmatprep.subr.mxu0 0.0
      %1860 = vmatpush2.msra.mxu0 0.0
      %1861 = vmatprep.subr.mxu0 0.0
      %1862 = vmatpush2.msra.mxu0 0.0
      %1863 = vmatprep.subr.mxu0 0.0
      %1864 = vmatpush2.msra.mxu0 0.0
      %1865 = vmatprep.subr.mxu0 0.0
      %1866 = vmatpush2.msra.mxu0 0.0
      %1867 = vmatprep.subr.mxu0 0.0
      %1868 = vmatpush2.msra.mxu0 0.0
      %1869 = vmatprep.subr.mxu0 0.0
      %1870 = vmatpush2.msra.mxu0 0.0
      %1871 = vmatprep.subr.mxu0 0.0
      %1872 = vmatpush2.msra.mxu0 0.0
      %1873 = vmatprep.subr.mxu0 0.0
      %1874 = vmatpush2.msra.mxu0 0.0
      %1875 = vmatprep.subr.mxu0 0.0
      %1876 = vmatpush2.msra.mxu0 0.0
      %1877 = vmatprep.subr.mxu0 0.0
      %1878 = vmatpush2.msra.mxu0 0.0
      %1879 = vmatprep.subr.mxu0 0.0
      %1880 = vmatpush2.msra.mxu0 0.0
      %1881 = vmatprep.subr.mxu0 0.0
      %1882 = vmatpush2.msra.mxu0 0.0
      %1883 = vmatprep.subr.mxu0 0.0
      %1884 = vmatpush2.msra.mxu0 0.0
      %1885 = vmatprep.mubr.f32.mxu0 0.0
      %1886 = vmatmul.mubr.f32.gmra.mxu0 %v1433
      %v1887 = vpop.f32.mrf.mxu0
      %v1888 = vadd.f32 0.0, %v1887
      %v1889 = vpop.f32.mrf.mxu0
      %1890 = vmatprep.mubr.f32.mxu0 0.0
      %1891 = vmatmul.mubr.f32.gmra.mxu0 %v1436
      %v1892 = vpop.f32.mrf.mxu0
      %v1893 = vadd.f32 0.0, %v1892
      %v1894 = vpop.f32.mrf.mxu0
      %1895 = vdwg.mxu0
      %v1896 = vadd.f32 %v1819, %v1888
      %v1897 = vadd.f32 %v1820, %v1893
      %v1898 = vmax.f32 %v1515, %v1896
      %v1899 = vmax.f32 %v1516, %v1897
      %v1900 = vld [vmem:[%s2] sm:$0x1]
      %v1902 = vlaneseq
      %v1903 = vshrl.u32 %v1902, 7
      %v1904 = vsub.s32 0, %v1903
      %v1905 = vrot.slane %v1900, %v1904
      %v1907 = vadd.f32 %v1898, %v1905
      %v1908 = vadd.f32 %v1899, %v1905
      %v1909 = vmax.f32 %v1907, 0.0
      %v1910 = vmax.f32 %v1908, 0.0
      %vm1911 = vcmask 785408
      %1912 = vst.msk [vmem:[%s170] sm:$0xff] %vm1911, %v1909
      %vm1913 = vcmask 781312
      %1914 = vst.msk [vmem:[%s170 + $0x8] sm:$0xf] %vm1913, %v1910
      %p1915 = scmp.lt.s32.totalorder %s14, 1
      %s1916 = scalar_select %p1915, %s14, 1
      %s1917 = smul.addr %s1916, 2
      %s1918 = smul.addr %s1917, 8
      %s1919 = scalar_lea.vmem %s3, %s1918
      // Predicated region
      $region33: #{cnn_part3_forward.4} parent=31 // pred_check
        %p1920 = pneg %p100
      $region34: #{cnn_part3_forward.4} parent=31 // pred_check_branch
        %1922 = sbr.rel (%p1920) target = $region36
      $region35: #{cnn_part3_forward.4} parent=31 // pred_region
        _
      $region36: #{cnn_part3_forward.4} parent=31 // pred_fallthru
        _
    $region32: #{cnn_part3_forward.4} parent=5 // pred_fallthru
      _
    %p1923 = scmp.le.s32.totalorder 2, %s9
    // Predicated region
    $region37: #{cnn_part3_forward.4} parent=5 // pred_check
      %p1924 = pneg %p1923
    $region38: #{cnn_part3_forward.4} parent=5 // pred_check_branch
      %1926 = sbr.rel (%p1924) target = $region40
    $region39: #{cnn_part3_forward.4} parent=5 // pred_region
      %s1927 = ssub.s32 %s9, 2
      // Predicated region
      $region41: #{cnn_part3_forward.4} parent=39 // pred_check
        %p1928 = pneg %p106
      $region42: #{cnn_part3_forward.4} parent=39 // pred_check_branch
        %1930 = sbr.rel (%p1928) target = $region44
      $region43: #{cnn_part3_forward.4} parent=39 // pred_region
        %p1931 = scmp.lt.s32.totalorder %s15, 1
        %s1932 = scalar_select %p1931, %s15, 1
        %s1933 = smul.addr %s1932, 2
        %s1934 = smul.addr %s1933, 8
        %s1935 = scalar_lea.vmem %s3, %s1934
      $region44: #{cnn_part3_forward.4} parent=39 // pred_fallthru
        _
    $region40: #{cnn_part3_forward.4} parent=5 // pred_fallthru
      _
  $region6: #{cnn_part3_forward.4} parent=0 // loop_footer
    %s13 = sadd.s32 1, %s9
  $region7: #{cnn_part3_forward.4} parent=0 // loop_footer_branch
    %8 = sbr.rel target = $region3
  $region8: #{cnn_part3_forward.4} parent=0 // loop_exit
    _

// kernel: cnn_part3_forward.5
$region0: #{cnn_part3_forward.5}
  #allocation0 [shape = 'u32[]', space=smem, size = 0x4, offset = 0x4, fixed_abs, tag = 'smem constant byte address 0x4 - core index']
  #allocation1 [shape = 'u32[144,128]{1,0:T(1,128)}', space=vmem, size = 0x12000, scoped, tag = 'internal scratch']
  %s0 = inlined_call_operand.vmem [shape: f32[2,1152], index: 0, kind: input, shape index: {}]
  %s1 = inlined_call_operand.vmem [shape: f32[1152,100], index: 1, kind: input, shape index: {}]
  %s2 = inlined_call_operand.vmem [shape: f32[1,100], index: 2, kind: input, shape index: {}]
  %s3 = inlined_call_operand.vmem [shape: f32[100,10], index: 3, kind: input, shape index: {}]
  %s4 = inlined_call_operand.vmem [shape: f32[1,10], index: 4, kind: input, shape index: {}]
  %s5 = inlined_call_operand.hbm [shape: f32[2,10], index: 5, kind: output, shape index: {}]
  %s6 = sld [smem:[#allocation0]]
  $region30: #{cnn_part3_forward.5} parent=0
    _
  %s8 = ssub.s32 1, %s6
  %s9 = scalar_select 0, %s8, %s6
  $region1: #{cnn_part3_forward.5} parent=0
    #allocation2 [shape = 'u8[1024]{0}', space=vmem, size = 0x400, scoped, tag = 'output window, operand 0, single buffered']
    #allocation3 [shape = 's32[1]{0}', space=sflag, size = 0x4, scoped, tag = 'scoped memory for cnn_part3_forward.5']
    %10 = vsyncpa [#allocation3], 0
    // Predicated region
    $region2: #{cnn_part3_forward.5} parent=1 // pred_check
      _
    $region3: #{cnn_part3_forward.5} parent=1 // pred_check_branch
      %12 = sbr.rel (0) target = $region5
    $region4: #{cnn_part3_forward.5} parent=1 // pred_region
      _
    $region5: #{cnn_part3_forward.5} parent=1 // pred_fallthru
      _
    // Predicated region
    $region6: #{cnn_part3_forward.5} parent=1 // pred_check
      _
    $region7: #{cnn_part3_forward.5} parent=1 // pred_check_branch
      %14 = sbr.rel (0) target = $region9
    $region8: #{cnn_part3_forward.5} parent=1 // pred_region
      _
    $region9: #{cnn_part3_forward.5} parent=1 // pred_fallthru
      _
    // Predicated region
    $region10: #{cnn_part3_forward.5} parent=1 // pred_check
      _
    $region11: #{cnn_part3_forward.5} parent=1 // pred_check_branch
      %16 = sbr.rel (0) target = $region13
    $region12: #{cnn_part3_forward.5} parent=1 // pred_region
      _
    $region13: #{cnn_part3_forward.5} parent=1 // pred_fallthru
      _
    // Predicated region
    $region14: #{cnn_part3_forward.5} parent=1 // pred_check
      _
    $region15: #{cnn_part3_forward.5} parent=1 // pred_check_branch
      %18 = sbr.rel (0) target = $region17
    $region16: #{cnn_part3_forward.5} parent=1 // pred_region
      _
    $region17: #{cnn_part3_forward.5} parent=1 // pred_fallthru
      _
    // Predicated region
    $region18: #{cnn_part3_forward.5} parent=1 // pred_check
      _
    $region19: #{cnn_part3_forward.5} parent=1 // pred_check_branch
      %20 = sbr.rel (0) target = $region21
    $region20: #{cnn_part3_forward.5} parent=1 // pred_region
      _
    $region21: #{cnn_part3_forward.5} parent=1 // pred_fallthru
      _
    %v21 = vld [vmem:[%s0] sm:$0xff]
    %v22 = vld [vmem:[%s0 + $0x8] sm:$0xff]
    %v23 = vld [vmem:[%s0 + $0x10] sm:$0x3]
    %v24 = vld [vmem:[%s1] sm:$0xff]
    %v25 = vld [vmem:[%s1 + $0x8] sm:$0xff]
    %v26 = vld [vmem:[%s1 + $0x10] sm:$0xff]
    %v27 = vld [vmem:[%s1 + $0x18] sm:$0xff]
    %v28 = vld [vmem:[%s1 + $0x20] sm:$0xff]
    %v29 = vld [vmem:[%s1 + $0x28] sm:$0xff]
    %v30 = vld [vmem:[%s1 + $0x30] sm:$0xff]
    %v31 = vld [vmem:[%s1 + $0x38] sm:$0xff]
    %v32 = vld [vmem:[%s1 + $0x40] sm:$0xff]
    %v33 = vld [vmem:[%s1 + $0x48] sm:$0xff]
    %v34 = vld [vmem:[%s1 + $0x50] sm:$0xff]
    %v35 = vld [vmem:[%s1 + $0x58] sm:$0xff]
    %v36 = vld [vmem:[%s1 + $0x60] sm:$0xff]
    %v37 = vld [vmem:[%s1 + $0x68] sm:$0xff]
    %v38 = vld [vmem:[%s1 + $0x70] sm:$0xff]
    %v39 = vld [vmem:[%s1 + $0x78] sm:$0xff]
    %v40 = vld [vmem:[%s1 + $0x80] sm:$0xff]
    %v41 = vld [vmem:[%s1 + $0x88] sm:$0xff]
    %v42 = vld [vmem:[%s1 + $0x90] sm:$0xff]
    %v43 = vld [vmem:[%s1 + $0x98] sm:$0xff]
    %v44 = vld [vmem:[%s1 + $0xa0] sm:$0xff]
    %v45 = vld [vmem:[%s1 + $0xa8] sm:$0xff]
    %v46 = vld [vmem:[%s1 + $0xb0] sm:$0xff]
    %v47 = vld [vmem:[%s1 + $0xb8] sm:$0xff]
    %v48 = vld [vmem:[%s1 + $0xc0] sm:$0xff]
    %v49 = vld [vmem:[%s1 + $0xc8] sm:$0xff]
    %v50 = vld [vmem:[%s1 + $0xd0] sm:$0xff]
    %v51 = vld [vmem:[%s1 + $0xd8] sm:$0xff]
    %v52 = vld [vmem:[%s1 + $0xe0] sm:$0xff]
    %v53 = vld [vmem:[%s1 + $0xe8] sm:$0xff]
    %v54 = vld [vmem:[%s1 + $0xf0] sm:$0xff]
    %v55 = vld [vmem:[%s1 + $0xf8] sm:$0xff]
    %v56 = vld [vmem:[%s1 + $0x100] sm:$0xff]
    %v57 = vld [vmem:[%s1 + $0x108] sm:$0xff]
    %v58 = vld [vmem:[%s1 + $0x110] sm:$0xff]
    %v59 = vld [vmem:[%s1 + $0x118] sm:$0xff]
    %v60 = vld [vmem:[%s1 + $0x120] sm:$0xff]
    %v61 = vld [vmem:[%s1 + $0x128] sm:$0xff]
    %v62 = vld [vmem:[%s1 + $0x130] sm:$0xff]
    %v63 = vld [vmem:[%s1 + $0x138] sm:$0xff]
    %v64 = vld [vmem:[%s1 + $0x140] sm:$0xff]
    %v65 = vld [vmem:[%s1 + $0x148] sm:$0xff]
    %v66 = vld [vmem:[%s1 + $0x150] sm:$0xff]
    %v67 = vld [vmem:[%s1 + $0x158] sm:$0xff]
    %v68 = vld [vmem:[%s1 + $0x160] sm:$0xff]
    %v69 = vld [vmem:[%s1 + $0x168] sm:$0xff]
    %v70 = vld [vmem:[%s1 + $0x170] sm:$0xff]
    %v71 = vld [vmem:[%s1 + $0x178] sm:$0xff]
    %v72 = vld [vmem:[%s1 + $0x180] sm:$0xff]
    %v73 = vld [vmem:[%s1 + $0x188] sm:$0xff]
    %v74 = vld [vmem:[%s1 + $0x190] sm:$0xff]
    %v75 = vld [vmem:[%s1 + $0x198] sm:$0xff]
    %v76 = vld [vmem:[%s1 + $0x1a0] sm:$0xff]
    %v77 = vld [vmem:[%s1 + $0x1a8] sm:$0xff]
    %v78 = vld [vmem:[%s1 + $0x1b0] sm:$0xff]
    %v79 = vld [vmem:[%s1 + $0x1b8] sm:$0xff]
    %v80 = vld [vmem:[%s1 + $0x1c0] sm:$0xff]
    %v81 = vld [vmem:[%s1 + $0x1c8] sm:$0xff]
    %v82 = vld [vmem:[%s1 + $0x1d0] sm:$0xff]
    %v83 = vld [vmem:[%s1 + $0x1d8] sm:$0xff]
    %v84 = vld [vmem:[%s1 + $0x1e0] sm:$0xff]
    %v85 = vld [vmem:[%s1 + $0x1e8] sm:$0xff]
    %v86 = vld [vmem:[%s1 + $0x1f0] sm:$0xff]
    %v87 = vld [vmem:[%s1 + $0x1f8] sm:$0xff]
    %v88 = vld [vmem:[%s1 + $0x200] sm:$0xff]
    %v89 = vld [vmem:[%s1 + $0x208] sm:$0xff]
    %v90 = vld [vmem:[%s1 + $0x210] sm:$0xff]
    %v91 = vld [vmem:[%s1 + $0x218] sm:$0xff]
    %v92 = vld [vmem:[%s1 + $0x220] sm:$0xff]
    %v93 = vld [vmem:[%s1 + $0x228] sm:$0xff]
    %v94 = vld [vmem:[%s1 + $0x230] sm:$0xff]
    %v95 = vld [vmem:[%s1 + $0x238] sm:$0xff]
    %v96 = vld [vmem:[%s1 + $0x240] sm:$0xff]
    %v97 = vld [vmem:[%s1 + $0x248] sm:$0xff]
    %v98 = vld [vmem:[%s1 + $0x250] sm:$0xff]
    %v99 = vld [vmem:[%s1 + $0x258] sm:$0xff]
    %v100 = vld [vmem:[%s1 + $0x260] sm:$0xff]
    %v101 = vld [vmem:[%s1 + $0x268] sm:$0xff]
    %v102 = vld [vmem:[%s1 + $0x270] sm:$0xff]
    %v103 = vld [vmem:[%s1 + $0x278] sm:$0xff]
    %v104 = vld [vmem:[%s1 + $0x280] sm:$0xff]
    %v105 = vld [vmem:[%s1 + $0x288] sm:$0xff]
    %v106 = vld [vmem:[%s1 + $0x290] sm:$0xff]
    %v107 = vld [vmem:[%s1 + $0x298] sm:$0xff]
    %v108 = vld [vmem:[%s1 + $0x2a0] sm:$0xff]
    %v109 = vld [vmem:[%s1 + $0x2a8] sm:$0xff]
    %v110 = vld [vmem:[%s1 + $0x2b0] sm:$0xff]
    %v111 = vld [vmem:[%s1 + $0x2b8] sm:$0xff]
    %v112 = vld [vmem:[%s1 + $0x2c0] sm:$0xff]
    %v113 = vld [vmem:[%s1 + $0x2c8] sm:$0xff]
    %v114 = vld [vmem:[%s1 + $0x2d0] sm:$0xff]
    %v115 = vld [vmem:[%s1 + $0x2d8] sm:$0xff]
    %v116 = vld [vmem:[%s1 + $0x2e0] sm:$0xff]
    %v117 = vld [vmem:[%s1 + $0x2e8] sm:$0xff]
    %v118 = vld [vmem:[%s1 + $0x2f0] sm:$0xff]
    %v119 = vld [vmem:[%s1 + $0x2f8] sm:$0xff]
    %v120 = vld [vmem:[%s1 + $0x300] sm:$0xff]
    %v121 = vld [vmem:[%s1 + $0x308] sm:$0xff]
    %v122 = vld [vmem:[%s1 + $0x310] sm:$0xff]
    %v123 = vld [vmem:[%s1 + $0x318] sm:$0xff]
    %v124 = vld [vmem:[%s1 + $0x320] sm:$0xff]
    %v125 = vld [vmem:[%s1 + $0x328] sm:$0xff]
    %v126 = vld [vmem:[%s1 + $0x330] sm:$0xff]
    %v127 = vld [vmem:[%s1 + $0x338] sm:$0xff]
    %v128 = vld [vmem:[%s1 + $0x340] sm:$0xff]
    %v129 = vld [vmem:[%s1 + $0x348] sm:$0xff]
    %v130 = vld [vmem:[%s1 + $0x350] sm:$0xff]
    %v131 = vld [vmem:[%s1 + $0x358] sm:$0xff]
    %v132 = vld [vmem:[%s1 + $0x360] sm:$0xff]
    %v133 = vld [vmem:[%s1 + $0x368] sm:$0xff]
    %v134 = vld [vmem:[%s1 + $0x370] sm:$0xff]
    %v135 = vld [vmem:[%s1 + $0x378] sm:$0xff]
    %v136 = vld [vmem:[%s1 + $0x380] sm:$0xff]
    %v137 = vld [vmem:[%s1 + $0x388] sm:$0xff]
    %v138 = vld [vmem:[%s1 + $0x390] sm:$0xff]
    %v139 = vld [vmem:[%s1 + $0x398] sm:$0xff]
    %v140 = vld [vmem:[%s1 + $0x3a0] sm:$0xff]
    %v141 = vld [vmem:[%s1 + $0x3a8] sm:$0xff]
    %v142 = vld [vmem:[%s1 + $0x3b0] sm:$0xff]
    %v143 = vld [vmem:[%s1 + $0x3b8] sm:$0xff]
    %v144 = vld [vmem:[%s1 + $0x3c0] sm:$0xff]
    %v145 = vld [vmem:[%s1 + $0x3c8] sm:$0xff]
    %v146 = vld [vmem:[%s1 + $0x3d0] sm:$0xff]
    %v147 = vld [vmem:[%s1 + $0x3d8] sm:$0xff]
    %v148 = vld [vmem:[%s1 + $0x3e0] sm:$0xff]
    %v149 = vld [vmem:[%s1 + $0x3e8] sm:$0xff]
    %v150 = vld [vmem:[%s1 + $0x3f0] sm:$0xff]
    %v151 = vld [vmem:[%s1 + $0x3f8] sm:$0xff]
    %v152 = vld [vmem:[%s1 + $0x400] sm:$0xff]
    %v153 = vld [vmem:[%s1 + $0x408] sm:$0xff]
    %v154 = vld [vmem:[%s1 + $0x410] sm:$0xff]
    %v155 = vld [vmem:[%s1 + $0x418] sm:$0xff]
    %v156 = vld [vmem:[%s1 + $0x420] sm:$0xff]
    %v157 = vld [vmem:[%s1 + $0x428] sm:$0xff]
    %v158 = vld [vmem:[%s1 + $0x430] sm:$0xff]
    %v159 = vld [vmem:[%s1 + $0x438] sm:$0xff]
    %v160 = vld [vmem:[%s1 + $0x440] sm:$0xff]
    %v161 = vld [vmem:[%s1 + $0x448] sm:$0xff]
    %v162 = vld [vmem:[%s1 + $0x450] sm:$0xff]
    %v163 = vld [vmem:[%s1 + $0x458] sm:$0xff]
    %v164 = vld [vmem:[%s1 + $0x460] sm:$0xff]
    %v165 = vld [vmem:[%s1 + $0x468] sm:$0xff]
    %v166 = vld [vmem:[%s1 + $0x470] sm:$0xff]
    %v167 = vld [vmem:[%s1 + $0x478] sm:$0xff]
    %v168 = vld [vmem:[%s2] sm:$0x1]
    %v170 = vlaneseq
    %v171 = vshrl.u32 %v170, 7
    %v172 = vsub.s32 0, %v171
    %v173 = vrot.slane %v168, %v172
    %v178 = vcombine.high %v21, %v21
    %v180 = vunpack.c.l.s4 1983009808
    %v181 = vunpack.c.0.s8 %v180
    %v182 = vlaneseq
    %v183 = vshrl.u32 %v182, 7
    %v184 = vsub.s32 %v181, %v183
    %v185 = vrot.slane %v21, %v184
    %v187 = vunpack.c.l.s4 1983009808
    %v188 = vunpack.c.0.s8 %v187
    %v189 = vlaneseq
    %v190 = vshrl.u32 %v189, 7
    %v191 = vsub.s32 %v188, %v190
    %v192 = vrot.slane %v178, %v191
    %v193 = vcombine.high %v185, %v185
    %v194 = vcombine.high %v192, %v192
    %v195 = vcombine.high %v22, %v22
    %v197 = vunpack.c.l.s4 1983009808
    %v198 = vunpack.c.0.s8 %v197
    %v199 = vlaneseq
    %v200 = vshrl.u32 %v199, 7
    %v201 = vsub.s32 %v198, %v200
    %v202 = vrot.slane %v22, %v201
    %v204 = vunpack.c.l.s4 1983009808
    %v205 = vunpack.c.0.s8 %v204
    %v206 = vlaneseq
    %v207 = vshrl.u32 %v206, 7
    %v208 = vsub.s32 %v205, %v207
    %v209 = vrot.slane %v195, %v208
    %v210 = vcombine.high %v202, %v202
    %v211 = vcombine.high %v209, %v209
    %v213 = vunpack.c.l.s4 1983009808
    %v214 = vunpack.c.0.s8 %v213
    %v215 = vlaneseq
    %v216 = vshrl.u32 %v215, 7
    %v217 = vsub.s32 %v214, %v216
    %v218 = vrot.slane %v23, %v217
    %228 = vmatprep.subr.mxu0 0.0
    %229 = vmatpush1.msra.mxu0 %v39
    %230 = vmatprep.subr.mxu0 0.0
    %231 = vmatpush1.msra.mxu0 %v38
    %232 = vmatprep.subr.mxu0 0.0
    %233 = vmatpush1.msra.mxu0 %v37
    %234 = vmatprep.subr.mxu0 0.0
    %235 = vmatpush1.msra.mxu0 %v36
    %236 = vmatprep.subr.mxu0 0.0
    %237 = vmatpush1.msra.mxu0 %v35
    %238 = vmatprep.subr.mxu0 0.0
    %239 = vmatpush1.msra.mxu0 %v34
    %240 = vmatprep.subr.mxu0 0.0
    %241 = vmatpush1.msra.mxu0 %v33
    %242 = vmatprep.subr.mxu0 0.0
    %243 = vmatpush1.msra.mxu0 %v32
    %244 = vmatprep.subr.mxu0 0.0
    %245 = vmatpush1.msra.mxu0 %v31
    %246 = vmatprep.subr.mxu0 0.0
    %247 = vmatpush1.msra.mxu0 %v30
    %248 = vmatprep.subr.mxu0 0.0
    %249 = vmatpush1.msra.mxu0 %v29
    %250 = vmatprep.subr.mxu0 0.0
    %251 = vmatpush1.msra.mxu0 %v28
    %252 = vmatprep.subr.mxu0 0.0
    %253 = vmatpush1.msra.mxu0 %v27
    %254 = vmatprep.subr.mxu0 0.0
    %255 = vmatpush1.msra.mxu0 %v26
    %256 = vmatprep.subr.mxu0 0.0
    %257 = vmatpush1.msra.mxu0 %v25
    %258 = vmatprep.subr.mxu0 0.0
    %259 = vmatpush1.msra.mxu0 %v24
    %260 = vmatprep.subr.mxu0 0.0
    %261 = vmatpush2.msra.mxu0 %v55
    %262 = vmatprep.subr.mxu0 0.0
    %263 = vmatpush2.msra.mxu0 %v54
    %264 = vmatprep.subr.mxu0 0.0
    %265 = vmatpush2.msra.mxu0 %v53
    %266 = vmatprep.subr.mxu0 0.0
    %267 = vmatpush2.msra.mxu0 %v52
    %268 = vmatprep.subr.mxu0 0.0
    %269 = vmatpush2.msra.mxu0 %v51
    %270 = vmatprep.subr.mxu0 0.0
    %271 = vmatpush2.msra.mxu0 %v50
    %272 = vmatprep.subr.mxu0 0.0
    %273 = vmatpush2.msra.mxu0 %v49
    %274 = vmatprep.subr.mxu0 0.0
    %275 = vmatpush2.msra.mxu0 %v48
    %276 = vmatprep.subr.mxu0 0.0
    %277 = vmatpush2.msra.mxu0 %v47
    %278 = vmatprep.subr.mxu0 0.0
    %279 = vmatpush2.msra.mxu0 %v46
    %280 = vmatprep.subr.mxu0 0.0
    %281 = vmatpush2.msra.mxu0 %v45
    %282 = vmatprep.subr.mxu0 0.0
    %283 = vmatpush2.msra.mxu0 %v44
    %284 = vmatprep.subr.mxu0 0.0
    %285 = vmatpush2.msra.mxu0 %v43
    %286 = vmatprep.subr.mxu0 0.0
    %287 = vmatpush2.msra.mxu0 %v42
    %288 = vmatprep.subr.mxu0 0.0
    %289 = vmatpush2.msra.mxu0 %v41
    %290 = vmatprep.subr.mxu0 0.0
    %291 = vmatpush2.msra.mxu0 %v40
    %292 = vmatprep.mubr.f32.mxu0 %v193
    %293 = vmatmul.mubr.f32.gmra.mxu0 %v185
    %v294 = vpop.f32.mrf.mxu0
    %v295 = vadd.f32 %v173, %v294
    %v296 = vpop.f32.mrf.mxu0
    %297 = vdwg.mxu0
    %298 = vmatprep.subr.mxu0 0.0
    %299 = vmatpush1.msra.mxu0 %v71
    %300 = vmatprep.subr.mxu0 0.0
    %301 = vmatpush1.msra.mxu0 %v70
    %302 = vmatprep.subr.mxu0 0.0
    %303 = vmatpush1.msra.mxu0 %v69
    %304 = vmatprep.subr.mxu0 0.0
    %305 = vmatpush1.msra.mxu0 %v68
    %306 = vmatprep.subr.mxu0 0.0
    %307 = vmatpush1.msra.mxu0 %v67
    %308 = vmatprep.subr.mxu0 0.0
    %309 = vmatpush1.msra.mxu0 %v66
    %310 = vmatprep.subr.mxu0 0.0
    %311 = vmatpush1.msra.mxu0 %v65
    %312 = vmatprep.subr.mxu0 0.0
    %313 = vmatpush1.msra.mxu0 %v64
    %314 = vmatprep.subr.mxu0 0.0
    %315 = vmatpush1.msra.mxu0 %v63
    %316 = vmatprep.subr.mxu0 0.0
    %317 = vmatpush1.msra.mxu0 %v62
    %318 = vmatprep.subr.mxu0 0.0
    %319 = vmatpush1.msra.mxu0 %v61
    %320 = vmatprep.subr.mxu0 0.0
    %321 = vmatpush1.msra.mxu0 %v60
    %322 = vmatprep.subr.mxu0 0.0
    %323 = vmatpush1.msra.mxu0 %v59
    %324 = vmatprep.subr.mxu0 0.0
    %325 = vmatpush1.msra.mxu0 %v58
    %326 = vmatprep.subr.mxu0 0.0
    %327 = vmatpush1.msra.mxu0 %v57
    %328 = vmatprep.subr.mxu0 0.0
    %329 = vmatpush1.msra.mxu0 %v56
    %330 = vmatprep.subr.mxu0 0.0
    %331 = vmatpush2.msra.mxu0 %v87
    %332 = vmatprep.subr.mxu0 0.0
    %333 = vmatpush2.msra.mxu0 %v86
    %334 = vmatprep.subr.mxu0 0.0
    %335 = vmatpush2.msra.mxu0 %v85
    %336 = vmatprep.subr.mxu0 0.0
    %337 = vmatpush2.msra.mxu0 %v84
    %338 = vmatprep.subr.mxu0 0.0
    %339 = vmatpush2.msra.mxu0 %v83
    %340 = vmatprep.subr.mxu0 0.0
    %341 = vmatpush2.msra.mxu0 %v82
    %342 = vmatprep.subr.mxu0 0.0
    %343 = vmatpush2.msra.mxu0 %v81
    %344 = vmatprep.subr.mxu0 0.0
    %345 = vmatpush2.msra.mxu0 %v80
    %346 = vmatprep.subr.mxu0 0.0
    %347 = vmatpush2.msra.mxu0 %v79
    %348 = vmatprep.subr.mxu0 0.0
    %349 = vmatpush2.msra.mxu0 %v78
    %350 = vmatprep.subr.mxu0 0.0
    %351 = vmatpush2.msra.mxu0 %v77
    %352 = vmatprep.subr.mxu0 0.0
    %353 = vmatpush2.msra.mxu0 %v76
    %354 = vmatprep.subr.mxu0 0.0
    %355 = vmatpush2.msra.mxu0 %v75
    %356 = vmatprep.subr.mxu0 0.0
    %357 = vmatpush2.msra.mxu0 %v74
    %358 = vmatprep.subr.mxu0 0.0
    %359 = vmatpush2.msra.mxu0 %v73
    %360 = vmatprep.subr.mxu0 0.0
    %361 = vmatpush2.msra.mxu0 %v72
    %362 = vmatprep.mubr.f32.mxu0 %v194
    %363 = vmatmul.mubr.f32.gmra.mxu0 %v192
    %v364 = vpop.f32.mrf.mxu0
    %v365 = vadd.f32 %v295, %v364
    %v366 = vpop.f32.mrf.mxu0
    %367 = vdwg.mxu0
    %368 = vmatprep.subr.mxu0 0.0
    %369 = vmatpush1.msra.mxu0 %v103
    %370 = vmatprep.subr.mxu0 0.0
    %371 = vmatpush1.msra.mxu0 %v102
    %372 = vmatprep.subr.mxu0 0.0
    %373 = vmatpush1.msra.mxu0 %v101
    %374 = vmatprep.subr.mxu0 0.0
    %375 = vmatpush1.msra.mxu0 %v100
    %376 = vmatprep.subr.mxu0 0.0
    %377 = vmatpush1.msra.mxu0 %v99
    %378 = vmatprep.subr.mxu0 0.0
    %379 = vmatpush1.msra.mxu0 %v98
    %380 = vmatprep.subr.mxu0 0.0
    %381 = vmatpush1.msra.mxu0 %v97
    %382 = vmatprep.subr.mxu0 0.0
    %383 = vmatpush1.msra.mxu0 %v96
    %384 = vmatprep.subr.mxu0 0.0
    %385 = vmatpush1.msra.mxu0 %v95
    %386 = vmatprep.subr.mxu0 0.0
    %387 = vmatpush1.msra.mxu0 %v94
    %388 = vmatprep.subr.mxu0 0.0
    %389 = vmatpush1.msra.mxu0 %v93
    %390 = vmatprep.subr.mxu0 0.0
    %391 = vmatpush1.msra.mxu0 %v92
    %392 = vmatprep.subr.mxu0 0.0
    %393 = vmatpush1.msra.mxu0 %v91
    %394 = vmatprep.subr.mxu0 0.0
    %395 = vmatpush1.msra.mxu0 %v90
    %396 = vmatprep.subr.mxu0 0.0
    %397 = vmatpush1.msra.mxu0 %v89
    %398 = vmatprep.subr.mxu0 0.0
    %399 = vmatpush1.msra.mxu0 %v88
    %400 = vmatprep.subr.mxu0 0.0
    %401 = vmatpush2.msra.mxu0 %v119
    %402 = vmatprep.subr.mxu0 0.0
    %403 = vmatpush2.msra.mxu0 %v118
    %404 = vmatprep.subr.mxu0 0.0
    %405 = vmatpush2.msra.mxu0 %v117
    %406 = vmatprep.subr.mxu0 0.0
    %407 = vmatpush2.msra.mxu0 %v116
    %408 = vmatprep.subr.mxu0 0.0
    %409 = vmatpush2.msra.mxu0 %v115
    %410 = vmatprep.subr.mxu0 0.0
    %411 = vmatpush2.msra.mxu0 %v114
    %412 = vmatprep.subr.mxu0 0.0
    %413 = vmatpush2.msra.mxu0 %v113
    %414 = vmatprep.subr.mxu0 0.0
    %415 = vmatpush2.msra.mxu0 %v112
    %416 = vmatprep.subr.mxu0 0.0
    %417 = vmatpush2.msra.mxu0 %v111
    %418 = vmatprep.subr.mxu0 0.0
    %419 = vmatpush2.msra.mxu0 %v110
    %420 = vmatprep.subr.mxu0 0.0
    %421 = vmatpush2.msra.mxu0 %v109
    %422 = vmatprep.subr.mxu0 0.0
    %423 = vmatpush2.msra.mxu0 %v108
    %424 = vmatprep.subr.mxu0 0.0
    %425 = vmatpush2.msra.mxu0 %v107
    %426 = vmatprep.subr.mxu0 0.0
    %427 = vmatpush2.msra.mxu0 %v106
    %428 = vmatprep.subr.mxu0 0.0
    %429 = vmatpush2.msra.mxu0 %v105
    %430 = vmatprep.subr.mxu0 0.0
    %431 = vmatpush2.msra.mxu0 %v104
    %432 = vmatprep.mubr.f32.mxu0 %v210
    %433 = vmatmul.mubr.f32.gmra.mxu0 %v202
    %v434 = vpop.f32.mrf.mxu0
    %v435 = vadd.f32 %v365, %v434
    %v436 = vpop.f32.mrf.mxu0
    %437 = vdwg.mxu0
    %438 = vmatprep.subr.mxu0 0.0
    %439 = vmatpush1.msra.mxu0 %v135
    %440 = vmatprep.subr.mxu0 0.0
    %441 = vmatpush1.msra.mxu0 %v134
    %442 = vmatprep.subr.mxu0 0.0
    %443 = vmatpush1.msra.mxu0 %v133
    %444 = vmatprep.subr.mxu0 0.0
    %445 = vmatpush1.msra.mxu0 %v132
    %446 = vmatprep.subr.mxu0 0.0
    %447 = vmatpush1.msra.mxu0 %v131
    %448 = vmatprep.subr.mxu0 0.0
    %449 = vmatpush1.msra.mxu0 %v130
    %450 = vmatprep.subr.mxu0 0.0
    %451 = vmatpush1.msra.mxu0 %v129
    %452 = vmatprep.subr.mxu0 0.0
    %453 = vmatpush1.msra.mxu0 %v128
    %454 = vmatprep.subr.mxu0 0.0
    %455 = vmatpush1.msra.mxu0 %v127
    %456 = vmatprep.subr.mxu0 0.0
    %457 = vmatpush1.msra.mxu0 %v126
    %458 = vmatprep.subr.mxu0 0.0
    %459 = vmatpush1.msra.mxu0 %v125
    %460 = vmatprep.subr.mxu0 0.0
    %461 = vmatpush1.msra.mxu0 %v124
    %462 = vmatprep.subr.mxu0 0.0
    %463 = vmatpush1.msra.mxu0 %v123
    %464 = vmatprep.subr.mxu0 0.0
    %465 = vmatpush1.msra.mxu0 %v122
    %466 = vmatprep.subr.mxu0 0.0
    %467 = vmatpush1.msra.mxu0 %v121
    %468 = vmatprep.subr.mxu0 0.0
    %469 = vmatpush1.msra.mxu0 %v120
    %470 = vmatprep.subr.mxu0 0.0
    %471 = vmatpush2.msra.mxu0 %v151
    %472 = vmatprep.subr.mxu0 0.0
    %473 = vmatpush2.msra.mxu0 %v150
    %474 = vmatprep.subr.mxu0 0.0
    %475 = vmatpush2.msra.mxu0 %v149
    %476 = vmatprep.subr.mxu0 0.0
    %477 = vmatpush2.msra.mxu0 %v148
    %478 = vmatprep.subr.mxu0 0.0
    %479 = vmatpush2.msra.mxu0 %v147
    %480 = vmatprep.subr.mxu0 0.0
    %481 = vmatpush2.msra.mxu0 %v146
    %482 = vmatprep.subr.mxu0 0.0
    %483 = vmatpush2.msra.mxu0 %v145
    %484 = vmatprep.subr.mxu0 0.0
    %485 = vmatpush2.msra.mxu0 %v144
    %486 = vmatprep.subr.mxu0 0.0
    %487 = vmatpush2.msra.mxu0 %v143
    %488 = vmatprep.subr.mxu0 0.0
    %489 = vmatpush2.msra.mxu0 %v142
    %490 = vmatprep.subr.mxu0 0.0
    %491 = vmatpush2.msra.mxu0 %v141
    %492 = vmatprep.subr.mxu0 0.0
    %493 = vmatpush2.msra.mxu0 %v140
    %494 = vmatprep.subr.mxu0 0.0
    %495 = vmatpush2.msra.mxu0 %v139
    %496 = vmatprep.subr.mxu0 0.0
    %497 = vmatpush2.msra.mxu0 %v138
    %498 = vmatprep.subr.mxu0 0.0
    %499 = vmatpush2.msra.mxu0 %v137
    %500 = vmatprep.subr.mxu0 0.0
    %501 = vmatpush2.msra.mxu0 %v136
    %502 = vmatprep.mubr.f32.mxu0 %v211
    %503 = vmatmul.mubr.f32.gmra.mxu0 %v209
    %v504 = vpop.f32.mrf.mxu0
    %v505 = vadd.f32 %v435, %v504
    %v506 = vpop.f32.mrf.mxu0
    %507 = vdwg.mxu0
    %508 = vmatprep.subr.mxu0 0.0
    %509 = vmatpush1.msra.mxu0 %v167
    %510 = vmatprep.subr.mxu0 0.0
    %511 = vmatpush1.msra.mxu0 %v166
    %512 = vmatprep.subr.mxu0 0.0
    %513 = vmatpush1.msra.mxu0 %v165
    %514 = vmatprep.subr.mxu0 0.0
    %515 = vmatpush1.msra.mxu0 %v164
    %516 = vmatprep.subr.mxu0 0.0
    %517 = vmatpush1.msra.mxu0 %v163
    %518 = vmatprep.subr.mxu0 0.0
    %519 = vmatpush1.msra.mxu0 %v162
    %520 = vmatprep.subr.mxu0 0.0
    %521 = vmatpush1.msra.mxu0 %v161
    %522 = vmatprep.subr.mxu0 0.0
    %523 = vmatpush1.msra.mxu0 %v160
    %524 = vmatprep.subr.mxu0 0.0
    %525 = vmatpush1.msra.mxu0 %v159
    %526 = vmatprep.subr.mxu0 0.0
    %527 = vmatpush1.msra.mxu0 %v158
    %528 = vmatprep.subr.mxu0 0.0
    %529 = vmatpush1.msra.mxu0 %v157
    %530 = vmatprep.subr.mxu0 0.0
    %531 = vmatpush1.msra.mxu0 %v156
    %532 = vmatprep.subr.mxu0 0.0
    %533 = vmatpush1.msra.mxu0 %v155
    %534 = vmatprep.subr.mxu0 0.0
    %535 = vmatpush1.msra.mxu0 %v154
    %536 = vmatprep.subr.mxu0 0.0
    %537 = vmatpush1.msra.mxu0 %v153
    %538 = vmatprep.subr.mxu0 0.0
    %539 = vmatpush1.msra.mxu0 %v152
    %540 = vmatprep.subr.mxu0 0.0
    %541 = vmatpush2.msra.mxu0 0.0
    %542 = vmatprep.subr.mxu0 0.0
    %543 = vmatpush2.msra.mxu0 0.0
    %544 = vmatprep.subr.mxu0 0.0
    %545 = vmatpush2.msra.mxu0 0.0
    %546 = vmatprep.subr.mxu0 0.0
    %547 = vmatpush2.msra.mxu0 0.0
    %548 = vmatprep.subr.mxu0 0.0
    %549 = vmatpush2.msra.mxu0 0.0
    %550 = vmatprep.subr.mxu0 0.0
    %551 = vmatpush2.msra.mxu0 0.0
    %552 = vmatprep.subr.mxu0 0.0
    %553 = vmatpush2.msra.mxu0 0.0
    %554 = vmatprep.subr.mxu0 0.0
    %555 = vmatpush2.msra.mxu0 0.0
    %556 = vmatprep.subr.mxu0 0.0
    %557 = vmatpush2.msra.mxu0 0.0
    %558 = vmatprep.subr.mxu0 0.0
    %559 = vmatpush2.msra.mxu0 0.0
    %560 = vmatprep.subr.mxu0 0.0
    %561 = vmatpush2.msra.mxu0 0.0
    %562 = vmatprep.subr.mxu0 0.0
    %563 = vmatpush2.msra.mxu0 0.0
    %564 = vmatprep.subr.mxu0 0.0
    %565 = vmatpush2.msra.mxu0 0.0
    %566 = vmatprep.subr.mxu0 0.0
    %567 = vmatpush2.msra.mxu0 0.0
    %568 = vmatprep.subr.mxu0 0.0
    %569 = vmatpush2.msra.mxu0 0.0
    %570 = vmatprep.subr.mxu0 0.0
    %571 = vmatpush2.msra.mxu0 0.0
    %572 = vmatprep.mubr.f32.mxu0 0.0
    %573 = vmatmul.mubr.f32.gmra.mxu0 %v218
    %v574 = vpop.f32.mrf.mxu0
    %v575 = vadd.f32 %v505, %v574
    %v576 = vpop.f32.mrf.mxu0
    %577 = vdwg.mxu0
    %v578 = vmax.f32 %v575, 0.0
    %v579 = vld [vmem:[%s3] sm:$0xff]
    %v580 = vld [vmem:[%s3 + $0x8] sm:$0xff]
    %v581 = vld [vmem:[%s3 + $0x10] sm:$0xff]
    %v582 = vld [vmem:[%s3 + $0x18] sm:$0xff]
    %v583 = vld [vmem:[%s3 + $0x20] sm:$0xff]
    %v584 = vld [vmem:[%s3 + $0x28] sm:$0xff]
    %v585 = vld [vmem:[%s3 + $0x30] sm:$0xff]
    %v586 = vld [vmem:[%s3 + $0x38] sm:$0xff]
    %v587 = vld [vmem:[%s3 + $0x40] sm:$0xff]
    %v588 = vld [vmem:[%s3 + $0x48] sm:$0xff]
    %v589 = vld [vmem:[%s3 + $0x50] sm:$0xff]
    %v590 = vld [vmem:[%s3 + $0x58] sm:$0xff]
    %v591 = vld [vmem:[%s3 + $0x60] sm:$0xf]
    %v592 = vld [vmem:[%s4] sm:$0x1]
    %v594 = vlaneseq
    %v595 = vshrl.u32 %v594, 7
    %v596 = vsub.s32 0, %v595
    %v597 = vrot.slane %v592, %v596
    %vm599 = vcmask 818176
    %v601 = vsel %vm599, %v578, 0
    %vm603 = vcmask 1043456
    %v605 = vsel %vm603, %v591, 0
    %607 = vmatprep.subr.mxu0 0.0
    %608 = vmatpush1.msra.mxu0 0.0
    %609 = vmatprep.subr.mxu0 0.0
    %610 = vmatpush1.msra.mxu0 0.0
    %611 = vmatprep.subr.mxu0 0.0
    %612 = vmatpush1.msra.mxu0 0.0
    %613 = vmatprep.subr.mxu0 0.0
    %614 = vmatpush1.msra.mxu0 %v605
    %615 = vmatprep.subr.mxu0 0.0
    %616 = vmatpush1.msra.mxu0 %v590
    %617 = vmatprep.subr.mxu0 0.0
    %618 = vmatpush1.msra.mxu0 %v589
    %619 = vmatprep.subr.mxu0 0.0
    %620 = vmatpush1.msra.mxu0 %v588
    %621 = vmatprep.subr.mxu0 0.0
    %622 = vmatpush1.msra.mxu0 %v587
    %623 = vmatprep.subr.mxu0 0.0
    %624 = vmatpush1.msra.mxu0 %v586
    %625 = vmatprep.subr.mxu0 0.0
    %626 = vmatpush1.msra.mxu0 %v585
    %627 = vmatprep.subr.mxu0 0.0
    %628 = vmatpush1.msra.mxu0 %v584
    %629 = vmatprep.subr.mxu0 0.0
    %630 = vmatpush1.msra.mxu0 %v583
    %631 = vmatprep.subr.mxu0 0.0
    %632 = vmatpush1.msra.mxu0 %v582
    %633 = vmatprep.subr.mxu0 0.0
    %634 = vmatpush1.msra.mxu0 %v581
    %635 = vmatprep.subr.mxu0 0.0
    %636 = vmatpush1.msra.mxu0 %v580
    %637 = vmatprep.subr.mxu0 0.0
    %638 = vmatpush1.msra.mxu0 %v579
    %639 = vmatprep.subr.mxu0 0.0
    %640 = vmatpush2.msra.mxu0 0.0
    %641 = vmatprep.subr.mxu0 0.0
    %642 = vmatpush2.msra.mxu0 0.0
    %643 = vmatprep.subr.mxu0 0.0
    %644 = vmatpush2.msra.mxu0 0.0
    %645 = vmatprep.subr.mxu0 0.0
    %646 = vmatpush2.msra.mxu0 0.0
    %647 = vmatprep.subr.mxu0 0.0
    %648 = vmatpush2.msra.mxu0 0.0
    %649 = vmatprep.subr.mxu0 0.0
    %650 = vmatpush2.msra.mxu0 0.0
    %651 = vmatprep.subr.mxu0 0.0
    %652 = vmatpush2.msra.mxu0 0.0
    %653 = vmatprep.subr.mxu0 0.0
    %654 = vmatpush2.msra.mxu0 0.0
    %655 = vmatprep.subr.mxu0 0.0
    %656 = vmatpush2.msra.mxu0 0.0
    %657 = vmatprep.subr.mxu0 0.0
    %658 = vmatpush2.msra.mxu0 0.0
    %659 = vmatprep.subr.mxu0 0.0
    %660 = vmatpush2.msra.mxu0 0.0
    %661 = vmatprep.subr.mxu0 0.0
    %662 = vmatpush2.msra.mxu0 0.0
    %663 = vmatprep.subr.mxu0 0.0
    %664 = vmatpush2.msra.mxu0 0.0
    %665 = vmatprep.subr.mxu0 0.0
    %666 = vmatpush2.msra.mxu0 0.0
    %667 = vmatprep.subr.mxu0 0.0
    %668 = vmatpush2.msra.mxu0 0.0
    %669 = vmatprep.subr.mxu0 0.0
    %670 = vmatpush2.msra.mxu0 0.0
    %671 = vmatprep.mubr.f32.mxu0 0.0
    %672 = vmatmul.mubr.f32.gmra.mxu0 %v601
    %v673 = vpop.f32.mrf.mxu0
    %v674 = vadd.f32 %v597, %v673
    %v675 = vpop.f32.mrf.mxu0
    %676 = vdwg.mxu0
    %vm677 = vcmask 74752
    %678 = vst.msk [vmem:[#allocation2] sm:$0x3] %vm677, %v674
    // Predicated region
    $region22: #{cnn_part3_forward.5} parent=1 // pred_check
      _
    $region23: #{cnn_part3_forward.5} parent=1 // pred_check_branch
      %680 = sbr.rel (0) target = $region25
    $region24: #{cnn_part3_forward.5} parent=1 // pred_region
      %s682 = ssub.s32 32, 32
      %683 = vsyncadd [#allocation3], %s682
      %s685 = sshll.u32 [#allocation2], 4
      %s686 = int_to_ptr.vmem [resolvable:$true] %s685
      %688 = dma.vmem_to_hbm [thread:$0]  %s686, 32, %s5, [#allocation3]
    $region25: #{cnn_part3_forward.5} parent=1 // pred_fallthru
      _
    // Predicated region
    $region26: #{cnn_part3_forward.5} parent=1 // pred_check
      _
    $region27: #{cnn_part3_forward.5} parent=1 // pred_check_branch
      %690 = sbr.rel (0) target = $region29
    $region28: #{cnn_part3_forward.5} parent=1 // pred_region
      %691 = dma.done [#allocation3], 32
    $region29: #{cnn_part3_forward.5} parent=1 // pred_fallthru
      _
    %692 = vsyncpa [#allocation3], 1

</llo_original>
